<compile_context>
chip_gen: v7x
topology: tpu7x:2x2x1
jax: 0.10.0
libtpu: 0.0.40
codegen_flags: <defaults>
</compile_context>

<pallas_src>
import jax
import jax.numpy as jnp
import numpy as np
from jax.experimental import pallas as pl
from jax.experimental.pallas import tpu as pltpu

# ---------------- problem sizes (small, consistent with the module) ----------
B = 2          # batch
S = 8          # sequence length == number of graph nodes (module uses 600)
N = B * S      # batch folded into the row axis inside the kernel
DIN = 16       # input_dim
D = 32         # embed_dim
L = 8          # num_layers (module default)
NUM_POS = 600  # pos_embed table size (positions are < 600)
LN_EPS = 1e-5


# ---------------- in-kernel math helpers -------------------------------------
def _erf_f32(x):
    # float32 erf via the XLA rational approximation (|err| ~ 1e-7), built from
    # mul/add/clamp plus an EUP reciprocal so the divide stays off the VALU.
    alpha = (0.00022905065861350646, 0.0034082910107109506,
             0.050955695062380861, 0.18520832239976145, 1.128379143519084)
    beta = (-1.1791602954361697e-7, 0.000023547966471313185,
            0.0010179625278914885, 0.014070470171167667,
            0.11098505178285362, 0.49746925110067538, 1.0)
    x = jnp.clip(x, -4.0, 4.0)
    x2 = x * x
    p = jnp.float32(alpha[0])
    for c in alpha[1:]:
        p = p * x2 + jnp.float32(c)
    q = jnp.float32(beta[0])
    for c in beta[1:]:
        q = q * x2 + jnp.float32(c)
    # EUP approximate reciprocal + one Newton step (~f32 accurate, no VALU div).
    r = pl.reciprocal(q, approx=True)
    r = r * (2.0 - q * r)
    return (x * p) * r


def _gelu_exact(x):
    # F.gelu default (erf-based, not tanh approximation)
    return 0.5 * x * (1.0 + _erf_f32(x * jnp.float32(0.7071067811865476)))


# ---------------- Pallas kernel ----------------------------------------------
def coordinate_gcn_kernel(feat_ref, pe_ref, lmask_ref, rmask_ref,
                          w_in_ref, b_in_ref,
                          gw_ref, gb_ref, lw_ref, lb_ref,
                          x_out_ref):
    # x = input_proj(features) + pos_embed(positions)   -- all B*S rows at once
    x = jnp.dot(feat_ref[...], w_in_ref[...], preferred_element_type=jnp.float32)
    x = x + b_in_ref[...] + pe_ref[...]                      # (N, D)

    # (N, 1) boundary masks for the roll stencil (1 where the row has an
    # in-sequence left / right neighbour).
    lmask = lmask_ref[...]
    rmask = rmask_ref[...]

    num_layers = gw_ref.shape[0]
    for l in range(num_layers):                               # static unroll
        # agg = adj @ x for the tridiagonal adjacency == 3-tap stencil on the
        # XLU (roll matches jnp.roll: roll(x, 1)[i] = x[i-1 mod N]).
        left = pltpu.roll(x, shift=1, axis=0)                 # x[i-1]
        right = pltpu.roll(x, shift=N - 1, axis=0)            # x[i+1]
        agg = x + lmask * left + rmask * right
        # agg = linear(agg)
        agg = jnp.dot(agg, gw_ref[l], preferred_element_type=jnp.float32)
        agg = agg + gb_ref[l]                                 # (N, D)
        # x = LayerNorm(x + agg); var = E[h^2] - mu^2 so both reductions
        # are independent and can overlap in the XLU.
        h = x + agg
        mu = jnp.mean(h, axis=-1, keepdims=True)
        ms = jnp.mean(h * h, axis=-1, keepdims=True)
        var = ms - mu * mu
        h = (h - mu) * jax.lax.rsqrt(var + LN_EPS)
        h = h * lw_ref[l] + lb_ref[l]
        # dropout(gelu(x)) -> gelu(x) in eval mode
        x = _gelu_exact(h)

    x_out_ref[...] = x                                        # (N, D), lane-dense


# ---------------- wrapper -----------------------------------------------------
@jax.jit
def coordinate_gcn_forward(features, positions, mask, params):
    del mask  # unused by the PyTorch forward as well
    # pos-embedding gather stays in JAX glue (table lookup, not a hot loop)
    pe = jnp.take(params["pos_embed"], positions, axis=0)     # (B, S, D)

    feat2 = features.reshape(N, DIN)
    pe2 = pe.reshape(N, D)

    # boundary masks for the stencil: global row i = b*S + s has a left
    # neighbour iff s != 0 and a right neighbour iff s != S - 1
    s_idx = jnp.arange(N, dtype=jnp.int32) % S
    lmask = (s_idx != 0).astype(jnp.float32).reshape(N, 1)
    rmask = (s_idx != S - 1).astype(jnp.float32).reshape(N, 1)

    def full(shape):
        return pl.BlockSpec(shape, lambda i, _s=len(shape): (0,) * _s)

    x = pl.pallas_call(
        coordinate_gcn_kernel,
        out_shape=jax.ShapeDtypeStruct((N, D), jnp.float32),
        grid=(1,),   # single step: whole batch folded into the row axis
        in_specs=[
            full((N, DIN)),    # features (batch folded into rows)
            full((N, D)),      # gathered pos embeddings
            full((N, 1)),      # left-neighbour mask
            full((N, 1)),      # right-neighbour mask
            full((DIN, D)),    # input_proj W (pre-transposed)
            full((1, D)),      # input_proj b
            full((L, D, D)),   # gcn linear W (pre-transposed)
            full((L, 1, D)),   # gcn linear b
            full((L, 1, D)),   # layernorm gamma
            full((L, 1, D)),   # layernorm beta
        ],
        out_specs=full((N, D)),
        # At the real module size (S=600) split B*S into >=2 row tiles with
        # dimension_semantics=("parallel",) so both v7x TensorCores are used;
        # at this toy size a single step is optimal.
        compiler_params=pltpu.CompilerParams(
            dimension_semantics=("arbitrary",)),
    )(feat2, pe2, lmask, rmask,
      params["w_in"], params["b_in"],
      params["gcn_w"], params["gcn_b"],
      params["ln_w"], params["ln_b"])

    # Tiny (D -> 2) output projection + _fix_coordinates stay in plain JAX so
    # the kernel's store is lane-dense (D lanes, not a 2-lane masked store).
    out = x @ params["w_out"] + params["b_out"]               # (N, 2)
    out = out.reshape(B, S, 2)
    out = out.at[:, 0, :].set(jnp.array([0.0, 0.0], jnp.float32))
    out = out.at[:, -1, :].set(jnp.array([600.0, 0.0], jnp.float32))
    return out


# ---------------- deterministic parameter construction ------------------------
def make_params(key):
    ks = jax.random.split(key, 8)
    scale = 0.02
    params = {
        "pos_embed": scale * jax.random.normal(ks[0], (NUM_POS, D), jnp.float32),
        # nn.Linear stores (out, in); we store pre-transposed (in, out) so the
        # kernel computes x @ W directly (same math as x @ W_torch.T).
        "w_in": scale * jax.random.normal(ks[1], (DIN, D), jnp.float32),
        "b_in": scale * jax.random.normal(ks[2], (1, D), jnp.float32),
        "gcn_w": scale * jax.random.normal(ks[3], (L, D, D), jnp.float32),
        "gcn_b": scale * jax.random.normal(ks[4], (L, 1, D), jnp.float32),
        "ln_w": jnp.ones((L, 1, D), jnp.float32),     # PyTorch LayerNorm init
        "ln_b": jnp.zeros((L, 1, D), jnp.float32),
        "w_out": scale * jax.random.normal(ks[5], (D, 2), jnp.float32),
        "b_out": scale * jax.random.normal(ks[6], (1, 2), jnp.float32),
    }
    return params


def build_adjacency(n):
    # eye + super/sub diagonal (same as _build_adjacency); reference only.
    adj = np.eye(n, dtype=np.float32)
    for i in range(n):
        if i > 0:
            adj[i, i - 1] = 1.0
        if i < n - 1:
            adj[i, i + 1] = 1.0
    return jnp.asarray(adj)


# ---------------- pure-JAX reference (dense adjacency, for validation) --------
def reference_forward(features, positions, mask, params, adj):
    del mask
    x = features @ params["w_in"] + params["b_in"] + params["pos_embed"][positions]
    for l in range(L):
        agg = jnp.einsum("ij,bjd->bid", adj, x)
        agg = agg @ params["gcn_w"][l] + params["gcn_b"][l]
        h = x + agg
        mu = h.mean(-1, keepdims=True)
        var = ((h - mu) ** 2).mean(-1, keepdims=True)
        h = (h - mu) / jnp.sqrt(var + LN_EPS) * params["ln_w"][l] + params["ln_b"][l]
        x = jax.nn.gelu(h, approximate=False)                  # exact erf GELU
    out = x @ params["w_out"] + params["b_out"]
    out = out.at[:, 0].set(jnp.array([0.0, 0.0], jnp.float32))
    out = out.at[:, -1].set(jnp.array([600.0, 0.0], jnp.float32))
    return out


# ---------------- main ---------------------------------------------------------
if __name__ == "__main__":
    key = jax.random.PRNGKey(0)
    k_feat, k_pos, k_param = jax.random.split(key, 3)

    features = jax.random.normal(k_feat, (B, S, DIN), jnp.float32)
    positions = jax.random.randint(k_pos, (B, S), 0, NUM_POS, jnp.int32)
    mask = jnp.ones((B, S), jnp.float32)    # unused, kept for API fidelity
    params = make_params(k_param)

    out = coordinate_gcn_forward(features, positions, mask, params)
    out = jax.block_until_ready(out)

    adj = build_adjacency(S)                # dense adjacency only for reference
    ref = reference_forward(features, positions, mask, params, adj)
    ref = jax.block_until_ready(ref)

    assert out.shape == (B, S, 2) and out.dtype == jnp.float32
    np.testing.assert_allclose(np.asarray(out), np.asarray(ref),
                               rtol=1e-3, atol=1e-3)
    print("KERNEL_OK")
</pallas_src>

<mosaic_0001>
module attributes {stable_mosaic.version = 11 : i64} {
  func.func @coordinate_gcn_kernel(%arg0: i32, %arg1: memref<16x16xf32, #tpu.memory_space<vmem>>, %arg2: memref<16x32xf32, #tpu.memory_space<vmem>>, %arg3: memref<16x1xf32, #tpu.memory_space<vmem>>, %arg4: memref<16x1xf32, #tpu.memory_space<vmem>>, %arg5: memref<16x32xf32, #tpu.memory_space<vmem>>, %arg6: memref<1x32xf32, #tpu.memory_space<vmem>>, %arg7: memref<8x32x32xf32, #tpu.memory_space<vmem>>, %arg8: memref<8x1x32xf32, #tpu.memory_space<vmem>>, %arg9: memref<8x1x32xf32, #tpu.memory_space<vmem>>, %arg10: memref<8x1x32xf32, #tpu.memory_space<vmem>>, %arg11: memref<16x32xf32, #tpu.memory_space<vmem>>) attributes {dimension_semantics = [#tpu.dimension_semantics<arbitrary>], iteration_bounds = array<i64: 1>, scalar_prefetch = 0 : i64, scratch_operands = 0 : i64, tpu.core_type = #tpu.core_type<tc>, window_params = [{pipeline_mode = #tpu.pipeline_mode<synchronous>, transform_indices = @transform_0, window_bounds = array<i64: 16, 16>}, {pipeline_mode = #tpu.pipeline_mode<synchronous>, transform_indices = @transform_1, window_bounds = array<i64: 16, 32>}, {pipeline_mode = #tpu.pipeline_mode<synchronous>, transform_indices = @transform_2, window_bounds = array<i64: 16, 1>}, {pipeline_mode = #tpu.pipeline_mode<synchronous>, transform_indices = @transform_3, window_bounds = array<i64: 16, 1>}, {pipeline_mode = #tpu.pipeline_mode<synchronous>, transform_indices = @transform_4, window_bounds = array<i64: 16, 32>}, {pipeline_mode = #tpu.pipeline_mode<synchronous>, transform_indices = @transform_5, window_bounds = array<i64: 1, 32>}, {pipeline_mode = #tpu.pipeline_mode<synchronous>, transform_indices = @transform_6, window_bounds = array<i64: 8, 32, 32>}, {pipeline_mode = #tpu.pipeline_mode<synchronous>, transform_indices = @transform_7, window_bounds = array<i64: 8, 1, 32>}, {pipeline_mode = #tpu.pipeline_mode<synchronous>, transform_indices = @transform_8, window_bounds = array<i64: 8, 1, 32>}, {pipeline_mode = #tpu.pipeline_mode<synchronous>, transform_indices = @transform_9, window_bounds = array<i64: 8, 1, 32>}, {pipeline_mode = #tpu.pipeline_mode<synchronous>, transform_indices = @transform_10, window_bounds = array<i64: 16, 32>}]} {
    %c0 = arith.constant 0 : index
    %c0_0 = arith.constant 0 : index
    %0 = vector.load %arg1[%c0, %c0_0] : memref<16x16xf32, #tpu.memory_space<vmem>>, vector<16x16xf32>
    %c0_1 = arith.constant 0 : index
    %c0_2 = arith.constant 0 : index
    %1 = vector.load %arg5[%c0_1, %c0_2] : memref<16x32xf32, #tpu.memory_space<vmem>>, vector<16x32xf32>
    %cst = arith.constant dense<0.000000e+00> : vector<16x32xf32>
    %2 = tpu.matmul %0, %1, %cst {dimension_numbers = #tpu.dot_dimension_numbers<[1], [0], [0], [1], [0, 0, 1, 1], [], []>} : vector<16x16xf32>, vector<16x32xf32>, vector<16x32xf32> -> vector<16x32xf32>
    %c0_3 = arith.constant 0 : index
    %c0_4 = arith.constant 0 : index
    %3 = vector.load %arg6[%c0_3, %c0_4] : memref<1x32xf32, #tpu.memory_space<vmem>>, vector<1x32xf32>
    %4 = vector.broadcast %3 : vector<1x32xf32> to vector<16x32xf32>
    %5 = arith.addf %2, %4 : vector<16x32xf32>
    %c0_5 = arith.constant 0 : index
    %c0_6 = arith.constant 0 : index
    %6 = vector.load %arg2[%c0_5, %c0_6] : memref<16x32xf32, #tpu.memory_space<vmem>>, vector<16x32xf32>
    %7 = arith.addf %5, %6 : vector<16x32xf32>
    %c0_7 = arith.constant 0 : index
    %c0_8 = arith.constant 0 : index
    %8 = vector.load %arg3[%c0_7, %c0_8] : memref<16x1xf32, #tpu.memory_space<vmem>>, vector<16x1xf32>
    %c0_9 = arith.constant 0 : index
    %c0_10 = arith.constant 0 : index
    %9 = vector.load %arg4[%c0_9, %c0_10] : memref<16x1xf32, #tpu.memory_space<vmem>>, vector<16x1xf32>
    %c1_i32 = arith.constant 1 : i32
    %10 = tpu.dynamic_rotate %7 by %c1_i32 dim 0 : vector<16x32xf32>, i32 -> vector<16x32xf32>
    %c15_i32 = arith.constant 15 : i32
    %11 = tpu.dynamic_rotate %7 by %c15_i32 dim 0 : vector<16x32xf32>, i32 -> vector<16x32xf32>
    %12 = vector.broadcast %8 : vector<16x1xf32> to vector<16x32xf32>
    %13 = arith.mulf %12, %10 : vector<16x32xf32>
    %14 = arith.addf %7, %13 : vector<16x32xf32>
    %15 = vector.broadcast %9 : vector<16x1xf32> to vector<16x32xf32>
    %16 = arith.mulf %15, %11 : vector<16x32xf32>
    %17 = arith.addf %14, %16 : vector<16x32xf32>
    %c0_11 = arith.constant 0 : index
    %c0_12 = arith.constant 0 : index
    %c0_13 = arith.constant 0 : index
    %18 = vector.load %arg7[%c0_11, %c0_12, %c0_13] : memref<8x32x32xf32, #tpu.memory_space<vmem>>, vector<1x32x32xf32>
    %19 = vector.shape_cast %18 : vector<1x32x32xf32> to vector<32x32xf32>
    %cst_14 = arith.constant dense<0.000000e+00> : vector<16x32xf32>
    %20 = tpu.matmul %17, %19, %cst_14 {dimension_numbers = #tpu.dot_dimension_numbers<[1], [0], [0], [1], [0, 0, 1, 1], [], []>} : vector<16x32xf32>, vector<32x32xf32>, vector<16x32xf32> -> vector<16x32xf32>
    %c0_15 = arith.constant 0 : index
    %c0_16 = arith.constant 0 : index
    %c0_17 = arith.constant 0 : index
    %21 = vector.load %arg8[%c0_15, %c0_16, %c0_17] : memref<8x1x32xf32, #tpu.memory_space<vmem>>, vector<1x1x32xf32>
    %22 = vector.shape_cast %21 : vector<1x1x32xf32> to vector<1x32xf32>
    %23 = vector.broadcast %22 : vector<1x32xf32> to vector<16x32xf32>
    %24 = arith.addf %20, %23 : vector<16x32xf32>
    %25 = arith.addf %7, %24 : vector<16x32xf32>
    %cst_18 = arith.constant dense<0.000000e+00> : vector<16xf32>
    %26 = vector.multi_reduction <add>, %25, %cst_18 [1] : vector<16x32xf32> to vector<16xf32>
    %27 = vector.shape_cast %26 : vector<16xf32> to vector<16x1xf32>
    %cst_19 = arith.constant 3.200000e+01 : f32
    %28 = vector.broadcast %cst_19 : f32 to vector<16x1xf32>
    %29 = arith.divf %27, %28 : vector<16x1xf32>
    %30 = arith.mulf %25, %25 : vector<16x32xf32>
    %cst_20 = arith.constant dense<0.000000e+00> : vector<16xf32>
    %31 = vector.multi_reduction <add>, %30, %cst_20 [1] : vector<16x32xf32> to vector<16xf32>
    %32 = vector.shape_cast %31 : vector<16xf32> to vector<16x1xf32>
    %cst_21 = arith.constant 3.200000e+01 : f32
    %33 = vector.broadcast %cst_21 : f32 to vector<16x1xf32>
    %34 = arith.divf %32, %33 : vector<16x1xf32>
    %35 = arith.mulf %29, %29 : vector<16x1xf32>
    %36 = arith.subf %34, %35 : vector<16x1xf32>
    %37 = vector.broadcast %29 : vector<16x1xf32> to vector<16x32xf32>
    %38 = arith.subf %25, %37 : vector<16x32xf32>
    %cst_22 = arith.constant 9.99999974E-6 : f32
    %39 = vector.broadcast %cst_22 : f32 to vector<16x1xf32>
    %40 = arith.addf %36, %39 : vector<16x1xf32>
    %41 = math.rsqrt %40 : vector<16x1xf32>
    %42 = vector.broadcast %41 : vector<16x1xf32> to vector<16x32xf32>
    %43 = arith.mulf %38, %42 : vector<16x32xf32>
    %c0_23 = arith.constant 0 : index
    %c0_24 = arith.constant 0 : index
    %c0_25 = arith.constant 0 : index
    %44 = vector.load %arg9[%c0_23, %c0_24, %c0_25] : memref<8x1x32xf32, #tpu.memory_space<vmem>>, vector<1x1x32xf32>
    %45 = vector.shape_cast %44 : vector<1x1x32xf32> to vector<1x32xf32>
    %46 = vector.broadcast %45 : vector<1x32xf32> to vector<16x32xf32>
    %47 = arith.mulf %43, %46 : vector<16x32xf32>
    %c0_26 = arith.constant 0 : index
    %c0_27 = arith.constant 0 : index
    %c0_28 = arith.constant 0 : index
    %48 = vector.load %arg10[%c0_26, %c0_27, %c0_28] : memref<8x1x32xf32, #tpu.memory_space<vmem>>, vector<1x1x32xf32>
    %49 = vector.shape_cast %48 : vector<1x1x32xf32> to vector<1x32xf32>
    %50 = vector.broadcast %49 : vector<1x32xf32> to vector<16x32xf32>
    %51 = arith.addf %47, %50 : vector<16x32xf32>
    %cst_29 = arith.constant 5.000000e-01 : f32
    %52 = vector.broadcast %cst_29 : f32 to vector<16x32xf32>
    %53 = arith.mulf %52, %51 : vector<16x32xf32>
    %cst_30 = arith.constant 0.707106769 : f32
    %54 = vector.broadcast %cst_30 : f32 to vector<16x32xf32>
    %55 = arith.mulf %51, %54 : vector<16x32xf32>
    %cst_31 = arith.constant -4.000000e+00 : f32
    %cst_32 = arith.constant 4.000000e+00 : f32
    %56 = vector.broadcast %cst_31 : f32 to vector<16x32xf32>
    %57 = arith.maximumf %56, %55 : vector<16x32xf32>
    %58 = vector.broadcast %cst_32 : f32 to vector<16x32xf32>
    %59 = arith.minimumf %58, %57 : vector<16x32xf32>
    %60 = arith.mulf %59, %59 : vector<16x32xf32>
    %cst_33 = arith.constant 2.29050653E-4 : f32
    %61 = vector.broadcast %cst_33 : f32 to vector<16x32xf32>
    %62 = arith.mulf %61, %60 : vector<16x32xf32>
    %cst_34 = arith.constant 0.00340829091 : f32
    %63 = vector.broadcast %cst_34 : f32 to vector<16x32xf32>
    %64 = arith.addf %62, %63 : vector<16x32xf32>
    %65 = arith.mulf %64, %60 : vector<16x32xf32>
    %cst_35 = arith.constant 0.0509556942 : f32
    %66 = vector.broadcast %cst_35 : f32 to vector<16x32xf32>
    %67 = arith.addf %65, %66 : vector<16x32xf32>
    %68 = arith.mulf %67, %60 : vector<16x32xf32>
    %cst_36 = arith.constant 0.185208321 : f32
    %69 = vector.broadcast %cst_36 : f32 to vector<16x32xf32>
    %70 = arith.addf %68, %69 : vector<16x32xf32>
    %71 = arith.mulf %70, %60 : vector<16x32xf32>
    %cst_37 = arith.constant 1.12837911 : f32
    %72 = vector.broadcast %cst_37 : f32 to vector<16x32xf32>
    %73 = arith.addf %71, %72 : vector<16x32xf32>
    %cst_38 = arith.constant -1.17916031E-7 : f32
    %74 = vector.broadcast %cst_38 : f32 to vector<16x32xf32>
    %75 = arith.mulf %74, %60 : vector<16x32xf32>
    %cst_39 = arith.constant 2.35479656E-5 : f32
    %76 = vector.broadcast %cst_39 : f32 to vector<16x32xf32>
    %77 = arith.addf %75, %76 : vector<16x32xf32>
    %78 = arith.mulf %77, %60 : vector<16x32xf32>
    %cst_40 = arith.constant 0.00101796258 : f32
    %79 = vector.broadcast %cst_40 : f32 to vector<16x32xf32>
    %80 = arith.addf %78, %79 : vector<16x32xf32>
    %81 = arith.mulf %80, %60 : vector<16x32xf32>
    %cst_41 = arith.constant 0.0140704699 : f32
    %82 = vector.broadcast %cst_41 : f32 to vector<16x32xf32>
    %83 = arith.addf %81, %82 : vector<16x32xf32>
    %84 = arith.mulf %83, %60 : vector<16x32xf32>
    %cst_42 = arith.constant 0.110985048 : f32
    %85 = vector.broadcast %cst_42 : f32 to vector<16x32xf32>
    %86 = arith.addf %84, %85 : vector<16x32xf32>
    %87 = arith.mulf %86, %60 : vector<16x32xf32>
    %cst_43 = arith.constant 0.497469246 : f32
    %88 = vector.broadcast %cst_43 : f32 to vector<16x32xf32>
    %89 = arith.addf %87, %88 : vector<16x32xf32>
    %90 = arith.mulf %89, %60 : vector<16x32xf32>
    %cst_44 = arith.constant 1.000000e+00 : f32
    %91 = vector.broadcast %cst_44 : f32 to vector<16x32xf32>
    %92 = arith.addf %90, %91 : vector<16x32xf32>
    %93 = tpu.reciprocal %92 {approx = true} : vector<16x32xf32> -> vector<16x32xf32>
    %94 = arith.mulf %92, %93 : vector<16x32xf32>
    %cst_45 = arith.constant 2.000000e+00 : f32
    %95 = vector.broadcast %cst_45 : f32 to vector<16x32xf32>
    %96 = arith.subf %95, %94 : vector<16x32xf32>
    %97 = arith.mulf %93, %96 : vector<16x32xf32>
    %98 = arith.mulf %59, %73 : vector<16x32xf32>
    %99 = arith.mulf %98, %97 : vector<16x32xf32>
    %cst_46 = arith.constant 1.000000e+00 : f32
    %100 = vector.broadcast %cst_46 : f32 to vector<16x32xf32>
    %101 = arith.addf %100, %99 : vector<16x32xf32>
    %102 = arith.mulf %53, %101 : vector<16x32xf32>
    %c1_i32_47 = arith.constant 1 : i32
    %103 = tpu.dynamic_rotate %102 by %c1_i32_47 dim 0 : vector<16x32xf32>, i32 -> vector<16x32xf32>
    %c15_i32_48 = arith.constant 15 : i32
    %104 = tpu.dynamic_rotate %102 by %c15_i32_48 dim 0 : vector<16x32xf32>, i32 -> vector<16x32xf32>
    %105 = vector.broadcast %8 : vector<16x1xf32> to vector<16x32xf32>
    %106 = arith.mulf %105, %103 : vector<16x32xf32>
    %107 = arith.addf %102, %106 : vector<16x32xf32>
    %108 = vector.broadcast %9 : vector<16x1xf32> to vector<16x32xf32>
    %109 = arith.mulf %108, %104 : vector<16x32xf32>
    %110 = arith.addf %107, %109 : vector<16x32xf32>
    %c1 = arith.constant 1 : index
    %c0_49 = arith.constant 0 : index
    %c0_50 = arith.constant 0 : index
    %111 = vector.load %arg7[%c1, %c0_49, %c0_50] : memref<8x32x32xf32, #tpu.memory_space<vmem>>, vector<1x32x32xf32>
    %112 = vector.shape_cast %111 : vector<1x32x32xf32> to vector<32x32xf32>
    %cst_51 = arith.constant dense<0.000000e+00> : vector<16x32xf32>
    %113 = tpu.matmul %110, %112, %cst_51 {dimension_numbers = #tpu.dot_dimension_numbers<[1], [0], [0], [1], [0, 0, 1, 1], [], []>} : vector<16x32xf32>, vector<32x32xf32>, vector<16x32xf32> -> vector<16x32xf32>
    %c1_52 = arith.constant 1 : index
    %c0_53 = arith.constant 0 : index
    %c0_54 = arith.constant 0 : index
    %114 = vector.load %arg8[%c1_52, %c0_53, %c0_54] : memref<8x1x32xf32, #tpu.memory_space<vmem>>, vector<1x1x32xf32>
    %115 = vector.shape_cast %114 : vector<1x1x32xf32> to vector<1x32xf32>
    %116 = vector.broadcast %115 : vector<1x32xf32> to vector<16x32xf32>
    %117 = arith.addf %113, %116 : vector<16x32xf32>
    %118 = arith.addf %102, %117 : vector<16x32xf32>
    %cst_55 = arith.constant dense<0.000000e+00> : vector<16xf32>
    %119 = vector.multi_reduction <add>, %118, %cst_55 [1] : vector<16x32xf32> to vector<16xf32>
    %120 = vector.shape_cast %119 : vector<16xf32> to vector<16x1xf32>
    %cst_56 = arith.constant 3.200000e+01 : f32
    %121 = vector.broadcast %cst_56 : f32 to vector<16x1xf32>
    %122 = arith.divf %120, %121 : vector<16x1xf32>
    %123 = arith.mulf %118, %118 : vector<16x32xf32>
    %cst_57 = arith.constant dense<0.000000e+00> : vector<16xf32>
    %124 = vector.multi_reduction <add>, %123, %cst_57 [1] : vector<16x32xf32> to vector<16xf32>
    %125 = vector.shape_cast %124 : vector<16xf32> to vector<16x1xf32>
    %cst_58 = arith.constant 3.200000e+01 : f32
    %126 = vector.broadcast %cst_58 : f32 to vector<16x1xf32>
    %127 = arith.divf %125, %126 : vector<16x1xf32>
    %128 = arith.mulf %122, %122 : vector<16x1xf32>
    %129 = arith.subf %127, %128 : vector<16x1xf32>
    %130 = vector.broadcast %122 : vector<16x1xf32> to vector<16x32xf32>
    %131 = arith.subf %118, %130 : vector<16x32xf32>
    %cst_59 = arith.constant 9.99999974E-6 : f32
    %132 = vector.broadcast %cst_59 : f32 to vector<16x1xf32>
    %133 = arith.addf %129, %132 : vector<16x1xf32>
    %134 = math.rsqrt %133 : vector<16x1xf32>
    %135 = vector.broadcast %134 : vector<16x1xf32> to vector<16x32xf32>
    %136 = arith.mulf %131, %135 : vector<16x32xf32>
    %c1_60 = arith.constant 1 : index
    %c0_61 = arith.constant 0 : index
    %c0_62 = arith.constant 0 : index
    %137 = vector.load %arg9[%c1_60, %c0_61, %c0_62] : memref<8x1x32xf32, #tpu.memory_space<vmem>>, vector<1x1x32xf32>
    %138 = vector.shape_cast %137 : vector<1x1x32xf32> to vector<1x32xf32>
    %139 = vector.broadcast %138 : vector<1x32xf32> to vector<16x32xf32>
    %140 = arith.mulf %136, %139 : vector<16x32xf32>
    %c1_63 = arith.constant 1 : index
    %c0_64 = arith.constant 0 : index
    %c0_65 = arith.constant 0 : index
    %141 = vector.load %arg10[%c1_63, %c0_64, %c0_65] : memref<8x1x32xf32, #tpu.memory_space<vmem>>, vector<1x1x32xf32>
    %142 = vector.shape_cast %141 : vector<1x1x32xf32> to vector<1x32xf32>
    %143 = vector.broadcast %142 : vector<1x32xf32> to vector<16x32xf32>
    %144 = arith.addf %140, %143 : vector<16x32xf32>
    %cst_66 = arith.constant 5.000000e-01 : f32
    %145 = vector.broadcast %cst_66 : f32 to vector<16x32xf32>
    %146 = arith.mulf %145, %144 : vector<16x32xf32>
    %cst_67 = arith.constant 0.707106769 : f32
    %147 = vector.broadcast %cst_67 : f32 to vector<16x32xf32>
    %148 = arith.mulf %144, %147 : vector<16x32xf32>
    %cst_68 = arith.constant -4.000000e+00 : f32
    %cst_69 = arith.constant 4.000000e+00 : f32
    %149 = vector.broadcast %cst_68 : f32 to vector<16x32xf32>
    %150 = arith.maximumf %149, %148 : vector<16x32xf32>
    %151 = vector.broadcast %cst_69 : f32 to vector<16x32xf32>
    %152 = arith.minimumf %151, %150 : vector<16x32xf32>
    %153 = arith.mulf %152, %152 : vector<16x32xf32>
    %cst_70 = arith.constant 2.29050653E-4 : f32
    %154 = vector.broadcast %cst_70 : f32 to vector<16x32xf32>
    %155 = arith.mulf %154, %153 : vector<16x32xf32>
    %cst_71 = arith.constant 0.00340829091 : f32
    %156 = vector.broadcast %cst_71 : f32 to vector<16x32xf32>
    %157 = arith.addf %155, %156 : vector<16x32xf32>
    %158 = arith.mulf %157, %153 : vector<16x32xf32>
    %cst_72 = arith.constant 0.0509556942 : f32
    %159 = vector.broadcast %cst_72 : f32 to vector<16x32xf32>
    %160 = arith.addf %158, %159 : vector<16x32xf32>
    %161 = arith.mulf %160, %153 : vector<16x32xf32>
    %cst_73 = arith.constant 0.185208321 : f32
    %162 = vector.broadcast %cst_73 : f32 to vector<16x32xf32>
    %163 = arith.addf %161, %162 : vector<16x32xf32>
    %164 = arith.mulf %163, %153 : vector<16x32xf32>
    %cst_74 = arith.constant 1.12837911 : f32
    %165 = vector.broadcast %cst_74 : f32 to vector<16x32xf32>
    %166 = arith.addf %164, %165 : vector<16x32xf32>
    %cst_75 = arith.constant -1.17916031E-7 : f32
    %167 = vector.broadcast %cst_75 : f32 to vector<16x32xf32>
    %168 = arith.mulf %167, %153 : vector<16x32xf32>
    %cst_76 = arith.constant 2.35479656E-5 : f32
    %169 = vector.broadcast %cst_76 : f32 to vector<16x32xf32>
    %170 = arith.addf %168, %169 : vector<16x32xf32>
    %171 = arith.mulf %170, %153 : vector<16x32xf32>
    %cst_77 = arith.constant 0.00101796258 : f32
    %172 = vector.broadcast %cst_77 : f32 to vector<16x32xf32>
    %173 = arith.addf %171, %172 : vector<16x32xf32>
    %174 = arith.mulf %173, %153 : vector<16x32xf32>
    %cst_78 = arith.constant 0.0140704699 : f32
    %175 = vector.broadcast %cst_78 : f32 to vector<16x32xf32>
    %176 = arith.addf %174, %175 : vector<16x32xf32>
    %177 = arith.mulf %176, %153 : vector<16x32xf32>
    %cst_79 = arith.constant 0.110985048 : f32
    %178 = vector.broadcast %cst_79 : f32 to vector<16x32xf32>
    %179 = arith.addf %177, %178 : vector<16x32xf32>
    %180 = arith.mulf %179, %153 : vector<16x32xf32>
    %cst_80 = arith.constant 0.497469246 : f32
    %181 = vector.broadcast %cst_80 : f32 to vector<16x32xf32>
    %182 = arith.addf %180, %181 : vector<16x32xf32>
    %183 = arith.mulf %182, %153 : vector<16x32xf32>
    %cst_81 = arith.constant 1.000000e+00 : f32
    %184 = vector.broadcast %cst_81 : f32 to vector<16x32xf32>
    %185 = arith.addf %183, %184 : vector<16x32xf32>
    %186 = tpu.reciprocal %185 {approx = true} : vector<16x32xf32> -> vector<16x32xf32>
    %187 = arith.mulf %185, %186 : vector<16x32xf32>
    %cst_82 = arith.constant 2.000000e+00 : f32
    %188 = vector.broadcast %cst_82 : f32 to vector<16x32xf32>
    %189 = arith.subf %188, %187 : vector<16x32xf32>
    %190 = arith.mulf %186, %189 : vector<16x32xf32>
    %191 = arith.mulf %152, %166 : vector<16x32xf32>
    %192 = arith.mulf %191, %190 : vector<16x32xf32>
    %cst_83 = arith.constant 1.000000e+00 : f32
    %193 = vector.broadcast %cst_83 : f32 to vector<16x32xf32>
    %194 = arith.addf %193, %192 : vector<16x32xf32>
    %195 = arith.mulf %146, %194 : vector<16x32xf32>
    %c1_i32_84 = arith.constant 1 : i32
    %196 = tpu.dynamic_rotate %195 by %c1_i32_84 dim 0 : vector<16x32xf32>, i32 -> vector<16x32xf32>
    %c15_i32_85 = arith.constant 15 : i32
    %197 = tpu.dynamic_rotate %195 by %c15_i32_85 dim 0 : vector<16x32xf32>, i32 -> vector<16x32xf32>
    %198 = vector.broadcast %8 : vector<16x1xf32> to vector<16x32xf32>
    %199 = arith.mulf %198, %196 : vector<16x32xf32>
    %200 = arith.addf %195, %199 : vector<16x32xf32>
    %201 = vector.broadcast %9 : vector<16x1xf32> to vector<16x32xf32>
    %202 = arith.mulf %201, %197 : vector<16x32xf32>
    %203 = arith.addf %200, %202 : vector<16x32xf32>
    %c2 = arith.constant 2 : index
    %c0_86 = arith.constant 0 : index
    %c0_87 = arith.constant 0 : index
    %204 = vector.load %arg7[%c2, %c0_86, %c0_87] : memref<8x32x32xf32, #tpu.memory_space<vmem>>, vector<1x32x32xf32>
    %205 = vector.shape_cast %204 : vector<1x32x32xf32> to vector<32x32xf32>
    %cst_88 = arith.constant dense<0.000000e+00> : vector<16x32xf32>
    %206 = tpu.matmul %203, %205, %cst_88 {dimension_numbers = #tpu.dot_dimension_numbers<[1], [0], [0], [1], [0, 0, 1, 1], [], []>} : vector<16x32xf32>, vector<32x32xf32>, vector<16x32xf32> -> vector<16x32xf32>
    %c2_89 = arith.constant 2 : index
    %c0_90 = arith.constant 0 : index
    %c0_91 = arith.constant 0 : index
    %207 = vector.load %arg8[%c2_89, %c0_90, %c0_91] : memref<8x1x32xf32, #tpu.memory_space<vmem>>, vector<1x1x32xf32>
    %208 = vector.shape_cast %207 : vector<1x1x32xf32> to vector<1x32xf32>
    %209 = vector.broadcast %208 : vector<1x32xf32> to vector<16x32xf32>
    %210 = arith.addf %206, %209 : vector<16x32xf32>
    %211 = arith.addf %195, %210 : vector<16x32xf32>
    %cst_92 = arith.constant dense<0.000000e+00> : vector<16xf32>
    %212 = vector.multi_reduction <add>, %211, %cst_92 [1] : vector<16x32xf32> to vector<16xf32>
    %213 = vector.shape_cast %212 : vector<16xf32> to vector<16x1xf32>
    %cst_93 = arith.constant 3.200000e+01 : f32
    %214 = vector.broadcast %cst_93 : f32 to vector<16x1xf32>
    %215 = arith.divf %213, %214 : vector<16x1xf32>
    %216 = arith.mulf %211, %211 : vector<16x32xf32>
    %cst_94 = arith.constant dense<0.000000e+00> : vector<16xf32>
    %217 = vector.multi_reduction <add>, %216, %cst_94 [1] : vector<16x32xf32> to vector<16xf32>
    %218 = vector.shape_cast %217 : vector<16xf32> to vector<16x1xf32>
    %cst_95 = arith.constant 3.200000e+01 : f32
    %219 = vector.broadcast %cst_95 : f32 to vector<16x1xf32>
    %220 = arith.divf %218, %219 : vector<16x1xf32>
    %221 = arith.mulf %215, %215 : vector<16x1xf32>
    %222 = arith.subf %220, %221 : vector<16x1xf32>
    %223 = vector.broadcast %215 : vector<16x1xf32> to vector<16x32xf32>
    %224 = arith.subf %211, %223 : vector<16x32xf32>
    %cst_96 = arith.constant 9.99999974E-6 : f32
    %225 = vector.broadcast %cst_96 : f32 to vector<16x1xf32>
    %226 = arith.addf %222, %225 : vector<16x1xf32>
    %227 = math.rsqrt %226 : vector<16x1xf32>
    %228 = vector.broadcast %227 : vector<16x1xf32> to vector<16x32xf32>
    %229 = arith.mulf %224, %228 : vector<16x32xf32>
    %c2_97 = arith.constant 2 : index
    %c0_98 = arith.constant 0 : index
    %c0_99 = arith.constant 0 : index
    %230 = vector.load %arg9[%c2_97, %c0_98, %c0_99] : memref<8x1x32xf32, #tpu.memory_space<vmem>>, vector<1x1x32xf32>
    %231 = vector.shape_cast %230 : vector<1x1x32xf32> to vector<1x32xf32>
    %232 = vector.broadcast %231 : vector<1x32xf32> to vector<16x32xf32>
    %233 = arith.mulf %229, %232 : vector<16x32xf32>
    %c2_100 = arith.constant 2 : index
    %c0_101 = arith.constant 0 : index
    %c0_102 = arith.constant 0 : index
    %234 = vector.load %arg10[%c2_100, %c0_101, %c0_102] : memref<8x1x32xf32, #tpu.memory_space<vmem>>, vector<1x1x32xf32>
    %235 = vector.shape_cast %234 : vector<1x1x32xf32> to vector<1x32xf32>
    %236 = vector.broadcast %235 : vector<1x32xf32> to vector<16x32xf32>
    %237 = arith.addf %233, %236 : vector<16x32xf32>
    %cst_103 = arith.constant 5.000000e-01 : f32
    %238 = vector.broadcast %cst_103 : f32 to vector<16x32xf32>
    %239 = arith.mulf %238, %237 : vector<16x32xf32>
    %cst_104 = arith.constant 0.707106769 : f32
    %240 = vector.broadcast %cst_104 : f32 to vector<16x32xf32>
    %241 = arith.mulf %237, %240 : vector<16x32xf32>
    %cst_105 = arith.constant -4.000000e+00 : f32
    %cst_106 = arith.constant 4.000000e+00 : f32
    %242 = vector.broadcast %cst_105 : f32 to vector<16x32xf32>
    %243 = arith.maximumf %242, %241 : vector<16x32xf32>
    %244 = vector.broadcast %cst_106 : f32 to vector<16x32xf32>
    %245 = arith.minimumf %244, %243 : vector<16x32xf32>
    %246 = arith.mulf %245, %245 : vector<16x32xf32>
    %cst_107 = arith.constant 2.29050653E-4 : f32
    %247 = vector.broadcast %cst_107 : f32 to vector<16x32xf32>
    %248 = arith.mulf %247, %246 : vector<16x32xf32>
    %cst_108 = arith.constant 0.00340829091 : f32
    %249 = vector.broadcast %cst_108 : f32 to vector<16x32xf32>
    %250 = arith.addf %248, %249 : vector<16x32xf32>
    %251 = arith.mulf %250, %246 : vector<16x32xf32>
    %cst_109 = arith.constant 0.0509556942 : f32
    %252 = vector.broadcast %cst_109 : f32 to vector<16x32xf32>
    %253 = arith.addf %251, %252 : vector<16x32xf32>
    %254 = arith.mulf %253, %246 : vector<16x32xf32>
    %cst_110 = arith.constant 0.185208321 : f32
    %255 = vector.broadcast %cst_110 : f32 to vector<16x32xf32>
    %256 = arith.addf %254, %255 : vector<16x32xf32>
    %257 = arith.mulf %256, %246 : vector<16x32xf32>
    %cst_111 = arith.constant 1.12837911 : f32
    %258 = vector.broadcast %cst_111 : f32 to vector<16x32xf32>
    %259 = arith.addf %257, %258 : vector<16x32xf32>
    %cst_112 = arith.constant -1.17916031E-7 : f32
    %260 = vector.broadcast %cst_112 : f32 to vector<16x32xf32>
    %261 = arith.mulf %260, %246 : vector<16x32xf32>
    %cst_113 = arith.constant 2.35479656E-5 : f32
    %262 = vector.broadcast %cst_113 : f32 to vector<16x32xf32>
    %263 = arith.addf %261, %262 : vector<16x32xf32>
    %264 = arith.mulf %263, %246 : vector<16x32xf32>
    %cst_114 = arith.constant 0.00101796258 : f32
    %265 = vector.broadcast %cst_114 : f32 to vector<16x32xf32>
    %266 = arith.addf %264, %265 : vector<16x32xf32>
    %267 = arith.mulf %266, %246 : vector<16x32xf32>
    %cst_115 = arith.constant 0.0140704699 : f32
    %268 = vector.broadcast %cst_115 : f32 to vector<16x32xf32>
    %269 = arith.addf %267, %268 : vector<16x32xf32>
    %270 = arith.mulf %269, %246 : vector<16x32xf32>
    %cst_116 = arith.constant 0.110985048 : f32
    %271 = vector.broadcast %cst_116 : f32 to vector<16x32xf32>
    %272 = arith.addf %270, %271 : vector<16x32xf32>
    %273 = arith.mulf %272, %246 : vector<16x32xf32>
    %cst_117 = arith.constant 0.497469246 : f32
    %274 = vector.broadcast %cst_117 : f32 to vector<16x32xf32>
    %275 = arith.addf %273, %274 : vector<16x32xf32>
    %276 = arith.mulf %275, %246 : vector<16x32xf32>
    %cst_118 = arith.constant 1.000000e+00 : f32
    %277 = vector.broadcast %cst_118 : f32 to vector<16x32xf32>
    %278 = arith.addf %276, %277 : vector<16x32xf32>
    %279 = tpu.reciprocal %278 {approx = true} : vector<16x32xf32> -> vector<16x32xf32>
    %280 = arith.mulf %278, %279 : vector<16x32xf32>
    %cst_119 = arith.constant 2.000000e+00 : f32
    %281 = vector.broadcast %cst_119 : f32 to vector<16x32xf32>
    %282 = arith.subf %281, %280 : vector<16x32xf32>
    %283 = arith.mulf %279, %282 : vector<16x32xf32>
    %284 = arith.mulf %245, %259 : vector<16x32xf32>
    %285 = arith.mulf %284, %283 : vector<16x32xf32>
    %cst_120 = arith.constant 1.000000e+00 : f32
    %286 = vector.broadcast %cst_120 : f32 to vector<16x32xf32>
    %287 = arith.addf %286, %285 : vector<16x32xf32>
    %288 = arith.mulf %239, %287 : vector<16x32xf32>
    %c1_i32_121 = arith.constant 1 : i32
    %289 = tpu.dynamic_rotate %288 by %c1_i32_121 dim 0 : vector<16x32xf32>, i32 -> vector<16x32xf32>
    %c15_i32_122 = arith.constant 15 : i32
    %290 = tpu.dynamic_rotate %288 by %c15_i32_122 dim 0 : vector<16x32xf32>, i32 -> vector<16x32xf32>
    %291 = vector.broadcast %8 : vector<16x1xf32> to vector<16x32xf32>
    %292 = arith.mulf %291, %289 : vector<16x32xf32>
    %293 = arith.addf %288, %292 : vector<16x32xf32>
    %294 = vector.broadcast %9 : vector<16x1xf32> to vector<16x32xf32>
    %295 = arith.mulf %294, %290 : vector<16x32xf32>
    %296 = arith.addf %293, %295 : vector<16x32xf32>
    %c3 = arith.constant 3 : index
    %c0_123 = arith.constant 0 : index
    %c0_124 = arith.constant 0 : index
    %297 = vector.load %arg7[%c3, %c0_123, %c0_124] : memref<8x32x32xf32, #tpu.memory_space<vmem>>, vector<1x32x32xf32>
    %298 = vector.shape_cast %297 : vector<1x32x32xf32> to vector<32x32xf32>
    %cst_125 = arith.constant dense<0.000000e+00> : vector<16x32xf32>
    %299 = tpu.matmul %296, %298, %cst_125 {dimension_numbers = #tpu.dot_dimension_numbers<[1], [0], [0], [1], [0, 0, 1, 1], [], []>} : vector<16x32xf32>, vector<32x32xf32>, vector<16x32xf32> -> vector<16x32xf32>
    %c3_126 = arith.constant 3 : index
    %c0_127 = arith.constant 0 : index
    %c0_128 = arith.constant 0 : index
    %300 = vector.load %arg8[%c3_126, %c0_127, %c0_128] : memref<8x1x32xf32, #tpu.memory_space<vmem>>, vector<1x1x32xf32>
    %301 = vector.shape_cast %300 : vector<1x1x32xf32> to vector<1x32xf32>
    %302 = vector.broadcast %301 : vector<1x32xf32> to vector<16x32xf32>
    %303 = arith.addf %299, %302 : vector<16x32xf32>
    %304 = arith.addf %288, %303 : vector<16x32xf32>
    %cst_129 = arith.constant dense<0.000000e+00> : vector<16xf32>
    %305 = vector.multi_reduction <add>, %304, %cst_129 [1] : vector<16x32xf32> to vector<16xf32>
    %306 = vector.shape_cast %305 : vector<16xf32> to vector<16x1xf32>
    %cst_130 = arith.constant 3.200000e+01 : f32
    %307 = vector.broadcast %cst_130 : f32 to vector<16x1xf32>
    %308 = arith.divf %306, %307 : vector<16x1xf32>
    %309 = arith.mulf %304, %304 : vector<16x32xf32>
    %cst_131 = arith.constant dense<0.000000e+00> : vector<16xf32>
    %310 = vector.multi_reduction <add>, %309, %cst_131 [1] : vector<16x32xf32> to vector<16xf32>
    %311 = vector.shape_cast %310 : vector<16xf32> to vector<16x1xf32>
    %cst_132 = arith.constant 3.200000e+01 : f32
    %312 = vector.broadcast %cst_132 : f32 to vector<16x1xf32>
    %313 = arith.divf %311, %312 : vector<16x1xf32>
    %314 = arith.mulf %308, %308 : vector<16x1xf32>
    %315 = arith.subf %313, %314 : vector<16x1xf32>
    %316 = vector.broadcast %308 : vector<16x1xf32> to vector<16x32xf32>
    %317 = arith.subf %304, %316 : vector<16x32xf32>
    %cst_133 = arith.constant 9.99999974E-6 : f32
    %318 = vector.broadcast %cst_133 : f32 to vector<16x1xf32>
    %319 = arith.addf %315, %318 : vector<16x1xf32>
    %320 = math.rsqrt %319 : vector<16x1xf32>
    %321 = vector.broadcast %320 : vector<16x1xf32> to vector<16x32xf32>
    %322 = arith.mulf %317, %321 : vector<16x32xf32>
    %c3_134 = arith.constant 3 : index
    %c0_135 = arith.constant 0 : index
    %c0_136 = arith.constant 0 : index
    %323 = vector.load %arg9[%c3_134, %c0_135, %c0_136] : memref<8x1x32xf32, #tpu.memory_space<vmem>>, vector<1x1x32xf32>
    %324 = vector.shape_cast %323 : vector<1x1x32xf32> to vector<1x32xf32>
    %325 = vector.broadcast %324 : vector<1x32xf32> to vector<16x32xf32>
    %326 = arith.mulf %322, %325 : vector<16x32xf32>
    %c3_137 = arith.constant 3 : index
    %c0_138 = arith.constant 0 : index
    %c0_139 = arith.constant 0 : index
    %327 = vector.load %arg10[%c3_137, %c0_138, %c0_139] : memref<8x1x32xf32, #tpu.memory_space<vmem>>, vector<1x1x32xf32>
    %328 = vector.shape_cast %327 : vector<1x1x32xf32> to vector<1x32xf32>
    %329 = vector.broadcast %328 : vector<1x32xf32> to vector<16x32xf32>
    %330 = arith.addf %326, %329 : vector<16x32xf32>
    %cst_140 = arith.constant 5.000000e-01 : f32
    %331 = vector.broadcast %cst_140 : f32 to vector<16x32xf32>
    %332 = arith.mulf %331, %330 : vector<16x32xf32>
    %cst_141 = arith.constant 0.707106769 : f32
    %333 = vector.broadcast %cst_141 : f32 to vector<16x32xf32>
    %334 = arith.mulf %330, %333 : vector<16x32xf32>
    %cst_142 = arith.constant -4.000000e+00 : f32
    %cst_143 = arith.constant 4.000000e+00 : f32
    %335 = vector.broadcast %cst_142 : f32 to vector<16x32xf32>
    %336 = arith.maximumf %335, %334 : vector<16x32xf32>
    %337 = vector.broadcast %cst_143 : f32 to vector<16x32xf32>
    %338 = arith.minimumf %337, %336 : vector<16x32xf32>
    %339 = arith.mulf %338, %338 : vector<16x32xf32>
    %cst_144 = arith.constant 2.29050653E-4 : f32
    %340 = vector.broadcast %cst_144 : f32 to vector<16x32xf32>
    %341 = arith.mulf %340, %339 : vector<16x32xf32>
    %cst_145 = arith.constant 0.00340829091 : f32
    %342 = vector.broadcast %cst_145 : f32 to vector<16x32xf32>
    %343 = arith.addf %341, %342 : vector<16x32xf32>
    %344 = arith.mulf %343, %339 : vector<16x32xf32>
    %cst_146 = arith.constant 0.0509556942 : f32
    %345 = vector.broadcast %cst_146 : f32 to vector<16x32xf32>
    %346 = arith.addf %344, %345 : vector<16x32xf32>
    %347 = arith.mulf %346, %339 : vector<16x32xf32>
    %cst_147 = arith.constant 0.185208321 : f32
    %348 = vector.broadcast %cst_147 : f32 to vector<16x32xf32>
    %349 = arith.addf %347, %348 : vector<16x32xf32>
    %350 = arith.mulf %349, %339 : vector<16x32xf32>
    %cst_148 = arith.constant 1.12837911 : f32
    %351 = vector.broadcast %cst_148 : f32 to vector<16x32xf32>
    %352 = arith.addf %350, %351 : vector<16x32xf32>
    %cst_149 = arith.constant -1.17916031E-7 : f32
    %353 = vector.broadcast %cst_149 : f32 to vector<16x32xf32>
    %354 = arith.mulf %353, %339 : vector<16x32xf32>
    %cst_150 = arith.constant 2.35479656E-5 : f32
    %355 = vector.broadcast %cst_150 : f32 to vector<16x32xf32>
    %356 = arith.addf %354, %355 : vector<16x32xf32>
    %357 = arith.mulf %356, %339 : vector<16x32xf32>
    %cst_151 = arith.constant 0.00101796258 : f32
    %358 = vector.broadcast %cst_151 : f32 to vector<16x32xf32>
    %359 = arith.addf %357, %358 : vector<16x32xf32>
    %360 = arith.mulf %359, %339 : vector<16x32xf32>
    %cst_152 = arith.constant 0.0140704699 : f32
    %361 = vector.broadcast %cst_152 : f32 to vector<16x32xf32>
    %362 = arith.addf %360, %361 : vector<16x32xf32>
    %363 = arith.mulf %362, %339 : vector<16x32xf32>
    %cst_153 = arith.constant 0.110985048 : f32
    %364 = vector.broadcast %cst_153 : f32 to vector<16x32xf32>
    %365 = arith.addf %363, %364 : vector<16x32xf32>
    %366 = arith.mulf %365, %339 : vector<16x32xf32>
    %cst_154 = arith.constant 0.497469246 : f32
    %367 = vector.broadcast %cst_154 : f32 to vector<16x32xf32>
    %368 = arith.addf %366, %367 : vector<16x32xf32>
    %369 = arith.mulf %368, %339 : vector<16x32xf32>
    %cst_155 = arith.constant 1.000000e+00 : f32
    %370 = vector.broadcast %cst_155 : f32 to vector<16x32xf32>
    %371 = arith.addf %369, %370 : vector<16x32xf32>
    %372 = tpu.reciprocal %371 {approx = true} : vector<16x32xf32> -> vector<16x32xf32>
    %373 = arith.mulf %371, %372 : vector<16x32xf32>
    %cst_156 = arith.constant 2.000000e+00 : f32
    %374 = vector.broadcast %cst_156 : f32 to vector<16x32xf32>
    %375 = arith.subf %374, %373 : vector<16x32xf32>
    %376 = arith.mulf %372, %375 : vector<16x32xf32>
    %377 = arith.mulf %338, %352 : vector<16x32xf32>
    %378 = arith.mulf %377, %376 : vector<16x32xf32>
    %cst_157 = arith.constant 1.000000e+00 : f32
    %379 = vector.broadcast %cst_157 : f32 to vector<16x32xf32>
    %380 = arith.addf %379, %378 : vector<16x32xf32>
    %381 = arith.mulf %332, %380 : vector<16x32xf32>
    %c1_i32_158 = arith.constant 1 : i32
    %382 = tpu.dynamic_rotate %381 by %c1_i32_158 dim 0 : vector<16x32xf32>, i32 -> vector<16x32xf32>
    %c15_i32_159 = arith.constant 15 : i32
    %383 = tpu.dynamic_rotate %381 by %c15_i32_159 dim 0 : vector<16x32xf32>, i32 -> vector<16x32xf32>
    %384 = vector.broadcast %8 : vector<16x1xf32> to vector<16x32xf32>
    %385 = arith.mulf %384, %382 : vector<16x32xf32>
    %386 = arith.addf %381, %385 : vector<16x32xf32>
    %387 = vector.broadcast %9 : vector<16x1xf32> to vector<16x32xf32>
    %388 = arith.mulf %387, %383 : vector<16x32xf32>
    %389 = arith.addf %386, %388 : vector<16x32xf32>
    %c4 = arith.constant 4 : index
    %c0_160 = arith.constant 0 : index
    %c0_161 = arith.constant 0 : index
    %390 = vector.load %arg7[%c4, %c0_160, %c0_161] : memref<8x32x32xf32, #tpu.memory_space<vmem>>, vector<1x32x32xf32>
    %391 = vector.shape_cast %390 : vector<1x32x32xf32> to vector<32x32xf32>
    %cst_162 = arith.constant dense<0.000000e+00> : vector<16x32xf32>
    %392 = tpu.matmul %389, %391, %cst_162 {dimension_numbers = #tpu.dot_dimension_numbers<[1], [0], [0], [1], [0, 0, 1, 1], [], []>} : vector<16x32xf32>, vector<32x32xf32>, vector<16x32xf32> -> vector<16x32xf32>
    %c4_163 = arith.constant 4 : index
    %c0_164 = arith.constant 0 : index
    %c0_165 = arith.constant 0 : index
    %393 = vector.load %arg8[%c4_163, %c0_164, %c0_165] : memref<8x1x32xf32, #tpu.memory_space<vmem>>, vector<1x1x32xf32>
    %394 = vector.shape_cast %393 : vector<1x1x32xf32> to vector<1x32xf32>
    %395 = vector.broadcast %394 : vector<1x32xf32> to vector<16x32xf32>
    %396 = arith.addf %392, %395 : vector<16x32xf32>
    %397 = arith.addf %381, %396 : vector<16x32xf32>
    %cst_166 = arith.constant dense<0.000000e+00> : vector<16xf32>
    %398 = vector.multi_reduction <add>, %397, %cst_166 [1] : vector<16x32xf32> to vector<16xf32>
    %399 = vector.shape_cast %398 : vector<16xf32> to vector<16x1xf32>
    %cst_167 = arith.constant 3.200000e+01 : f32
    %400 = vector.broadcast %cst_167 : f32 to vector<16x1xf32>
    %401 = arith.divf %399, %400 : vector<16x1xf32>
    %402 = arith.mulf %397, %397 : vector<16x32xf32>
    %cst_168 = arith.constant dense<0.000000e+00> : vector<16xf32>
    %403 = vector.multi_reduction <add>, %402, %cst_168 [1] : vector<16x32xf32> to vector<16xf32>
    %404 = vector.shape_cast %403 : vector<16xf32> to vector<16x1xf32>
    %cst_169 = arith.constant 3.200000e+01 : f32
    %405 = vector.broadcast %cst_169 : f32 to vector<16x1xf32>
    %406 = arith.divf %404, %405 : vector<16x1xf32>
    %407 = arith.mulf %401, %401 : vector<16x1xf32>
    %408 = arith.subf %406, %407 : vector<16x1xf32>
    %409 = vector.broadcast %401 : vector<16x1xf32> to vector<16x32xf32>
    %410 = arith.subf %397, %409 : vector<16x32xf32>
    %cst_170 = arith.constant 9.99999974E-6 : f32
    %411 = vector.broadcast %cst_170 : f32 to vector<16x1xf32>
    %412 = arith.addf %408, %411 : vector<16x1xf32>
    %413 = math.rsqrt %412 : vector<16x1xf32>
    %414 = vector.broadcast %413 : vector<16x1xf32> to vector<16x32xf32>
    %415 = arith.mulf %410, %414 : vector<16x32xf32>
    %c4_171 = arith.constant 4 : index
    %c0_172 = arith.constant 0 : index
    %c0_173 = arith.constant 0 : index
    %416 = vector.load %arg9[%c4_171, %c0_172, %c0_173] : memref<8x1x32xf32, #tpu.memory_space<vmem>>, vector<1x1x32xf32>
    %417 = vector.shape_cast %416 : vector<1x1x32xf32> to vector<1x32xf32>
    %418 = vector.broadcast %417 : vector<1x32xf32> to vector<16x32xf32>
    %419 = arith.mulf %415, %418 : vector<16x32xf32>
    %c4_174 = arith.constant 4 : index
    %c0_175 = arith.constant 0 : index
    %c0_176 = arith.constant 0 : index
    %420 = vector.load %arg10[%c4_174, %c0_175, %c0_176] : memref<8x1x32xf32, #tpu.memory_space<vmem>>, vector<1x1x32xf32>
    %421 = vector.shape_cast %420 : vector<1x1x32xf32> to vector<1x32xf32>
    %422 = vector.broadcast %421 : vector<1x32xf32> to vector<16x32xf32>
    %423 = arith.addf %419, %422 : vector<16x32xf32>
    %cst_177 = arith.constant 5.000000e-01 : f32
    %424 = vector.broadcast %cst_177 : f32 to vector<16x32xf32>
    %425 = arith.mulf %424, %423 : vector<16x32xf32>
    %cst_178 = arith.constant 0.707106769 : f32
    %426 = vector.broadcast %cst_178 : f32 to vector<16x32xf32>
    %427 = arith.mulf %423, %426 : vector<16x32xf32>
    %cst_179 = arith.constant -4.000000e+00 : f32
    %cst_180 = arith.constant 4.000000e+00 : f32
    %428 = vector.broadcast %cst_179 : f32 to vector<16x32xf32>
    %429 = arith.maximumf %428, %427 : vector<16x32xf32>
    %430 = vector.broadcast %cst_180 : f32 to vector<16x32xf32>
    %431 = arith.minimumf %430, %429 : vector<16x32xf32>
    %432 = arith.mulf %431, %431 : vector<16x32xf32>
    %cst_181 = arith.constant 2.29050653E-4 : f32
    %433 = vector.broadcast %cst_181 : f32 to vector<16x32xf32>
    %434 = arith.mulf %433, %432 : vector<16x32xf32>
    %cst_182 = arith.constant 0.00340829091 : f32
    %435 = vector.broadcast %cst_182 : f32 to vector<16x32xf32>
    %436 = arith.addf %434, %435 : vector<16x32xf32>
    %437 = arith.mulf %436, %432 : vector<16x32xf32>
    %cst_183 = arith.constant 0.0509556942 : f32
    %438 = vector.broadcast %cst_183 : f32 to vector<16x32xf32>
    %439 = arith.addf %437, %438 : vector<16x32xf32>
    %440 = arith.mulf %439, %432 : vector<16x32xf32>
    %cst_184 = arith.constant 0.185208321 : f32
    %441 = vector.broadcast %cst_184 : f32 to vector<16x32xf32>
    %442 = arith.addf %440, %441 : vector<16x32xf32>
    %443 = arith.mulf %442, %432 : vector<16x32xf32>
    %cst_185 = arith.constant 1.12837911 : f32
    %444 = vector.broadcast %cst_185 : f32 to vector<16x32xf32>
    %445 = arith.addf %443, %444 : vector<16x32xf32>
    %cst_186 = arith.constant -1.17916031E-7 : f32
    %446 = vector.broadcast %cst_186 : f32 to vector<16x32xf32>
    %447 = arith.mulf %446, %432 : vector<16x32xf32>
    %cst_187 = arith.constant 2.35479656E-5 : f32
    %448 = vector.broadcast %cst_187 : f32 to vector<16x32xf32>
    %449 = arith.addf %447, %448 : vector<16x32xf32>
    %450 = arith.mulf %449, %432 : vector<16x32xf32>
    %cst_188 = arith.constant 0.00101796258 : f32
    %451 = vector.broadcast %cst_188 : f32 to vector<16x32xf32>
    %452 = arith.addf %450, %451 : vector<16x32xf32>
    %453 = arith.mulf %452, %432 : vector<16x32xf32>
    %cst_189 = arith.constant 0.0140704699 : f32
    %454 = vector.broadcast %cst_189 : f32 to vector<16x32xf32>
    %455 = arith.addf %453, %454 : vector<16x32xf32>
    %456 = arith.mulf %455, %432 : vector<16x32xf32>
    %cst_190 = arith.constant 0.110985048 : f32
    %457 = vector.broadcast %cst_190 : f32 to vector<16x32xf32>
    %458 = arith.addf %456, %457 : vector<16x32xf32>
    %459 = arith.mulf %458, %432 : vector<16x32xf32>
    %cst_191 = arith.constant 0.497469246 : f32
    %460 = vector.broadcast %cst_191 : f32 to vector<16x32xf32>
    %461 = arith.addf %459, %460 : vector<16x32xf32>
    %462 = arith.mulf %461, %432 : vector<16x32xf32>
    %cst_192 = arith.constant 1.000000e+00 : f32
    %463 = vector.broadcast %cst_192 : f32 to vector<16x32xf32>
    %464 = arith.addf %462, %463 : vector<16x32xf32>
    %465 = tpu.reciprocal %464 {approx = true} : vector<16x32xf32> -> vector<16x32xf32>
    %466 = arith.mulf %464, %465 : vector<16x32xf32>
    %cst_193 = arith.constant 2.000000e+00 : f32
    %467 = vector.broadcast %cst_193 : f32 to vector<16x32xf32>
    %468 = arith.subf %467, %466 : vector<16x32xf32>
    %469 = arith.mulf %465, %468 : vector<16x32xf32>
    %470 = arith.mulf %431, %445 : vector<16x32xf32>
    %471 = arith.mulf %470, %469 : vector<16x32xf32>
    %cst_194 = arith.constant 1.000000e+00 : f32
    %472 = vector.broadcast %cst_194 : f32 to vector<16x32xf32>
    %473 = arith.addf %472, %471 : vector<16x32xf32>
    %474 = arith.mulf %425, %473 : vector<16x32xf32>
    %c1_i32_195 = arith.constant 1 : i32
    %475 = tpu.dynamic_rotate %474 by %c1_i32_195 dim 0 : vector<16x32xf32>, i32 -> vector<16x32xf32>
    %c15_i32_196 = arith.constant 15 : i32
    %476 = tpu.dynamic_rotate %474 by %c15_i32_196 dim 0 : vector<16x32xf32>, i32 -> vector<16x32xf32>
    %477 = vector.broadcast %8 : vector<16x1xf32> to vector<16x32xf32>
    %478 = arith.mulf %477, %475 : vector<16x32xf32>
    %479 = arith.addf %474, %478 : vector<16x32xf32>
    %480 = vector.broadcast %9 : vector<16x1xf32> to vector<16x32xf32>
    %481 = arith.mulf %480, %476 : vector<16x32xf32>
    %482 = arith.addf %479, %481 : vector<16x32xf32>
    %c5 = arith.constant 5 : index
    %c0_197 = arith.constant 0 : index
    %c0_198 = arith.constant 0 : index
    %483 = vector.load %arg7[%c5, %c0_197, %c0_198] : memref<8x32x32xf32, #tpu.memory_space<vmem>>, vector<1x32x32xf32>
    %484 = vector.shape_cast %483 : vector<1x32x32xf32> to vector<32x32xf32>
    %cst_199 = arith.constant dense<0.000000e+00> : vector<16x32xf32>
    %485 = tpu.matmul %482, %484, %cst_199 {dimension_numbers = #tpu.dot_dimension_numbers<[1], [0], [0], [1], [0, 0, 1, 1], [], []>} : vector<16x32xf32>, vector<32x32xf32>, vector<16x32xf32> -> vector<16x32xf32>
    %c5_200 = arith.constant 5 : index
    %c0_201 = arith.constant 0 : index
    %c0_202 = arith.constant 0 : index
    %486 = vector.load %arg8[%c5_200, %c0_201, %c0_202] : memref<8x1x32xf32, #tpu.memory_space<vmem>>, vector<1x1x32xf32>
    %487 = vector.shape_cast %486 : vector<1x1x32xf32> to vector<1x32xf32>
    %488 = vector.broadcast %487 : vector<1x32xf32> to vector<16x32xf32>
    %489 = arith.addf %485, %488 : vector<16x32xf32>
    %490 = arith.addf %474, %489 : vector<16x32xf32>
    %cst_203 = arith.constant dense<0.000000e+00> : vector<16xf32>
    %491 = vector.multi_reduction <add>, %490, %cst_203 [1] : vector<16x32xf32> to vector<16xf32>
    %492 = vector.shape_cast %491 : vector<16xf32> to vector<16x1xf32>
    %cst_204 = arith.constant 3.200000e+01 : f32
    %493 = vector.broadcast %cst_204 : f32 to vector<16x1xf32>
    %494 = arith.divf %492, %493 : vector<16x1xf32>
    %495 = arith.mulf %490, %490 : vector<16x32xf32>
    %cst_205 = arith.constant dense<0.000000e+00> : vector<16xf32>
    %496 = vector.multi_reduction <add>, %495, %cst_205 [1] : vector<16x32xf32> to vector<16xf32>
    %497 = vector.shape_cast %496 : vector<16xf32> to vector<16x1xf32>
    %cst_206 = arith.constant 3.200000e+01 : f32
    %498 = vector.broadcast %cst_206 : f32 to vector<16x1xf32>
    %499 = arith.divf %497, %498 : vector<16x1xf32>
    %500 = arith.mulf %494, %494 : vector<16x1xf32>
    %501 = arith.subf %499, %500 : vector<16x1xf32>
    %502 = vector.broadcast %494 : vector<16x1xf32> to vector<16x32xf32>
    %503 = arith.subf %490, %502 : vector<16x32xf32>
    %cst_207 = arith.constant 9.99999974E-6 : f32
    %504 = vector.broadcast %cst_207 : f32 to vector<16x1xf32>
    %505 = arith.addf %501, %504 : vector<16x1xf32>
    %506 = math.rsqrt %505 : vector<16x1xf32>
    %507 = vector.broadcast %506 : vector<16x1xf32> to vector<16x32xf32>
    %508 = arith.mulf %503, %507 : vector<16x32xf32>
    %c5_208 = arith.constant 5 : index
    %c0_209 = arith.constant 0 : index
    %c0_210 = arith.constant 0 : index
    %509 = vector.load %arg9[%c5_208, %c0_209, %c0_210] : memref<8x1x32xf32, #tpu.memory_space<vmem>>, vector<1x1x32xf32>
    %510 = vector.shape_cast %509 : vector<1x1x32xf32> to vector<1x32xf32>
    %511 = vector.broadcast %510 : vector<1x32xf32> to vector<16x32xf32>
    %512 = arith.mulf %508, %511 : vector<16x32xf32>
    %c5_211 = arith.constant 5 : index
    %c0_212 = arith.constant 0 : index
    %c0_213 = arith.constant 0 : index
    %513 = vector.load %arg10[%c5_211, %c0_212, %c0_213] : memref<8x1x32xf32, #tpu.memory_space<vmem>>, vector<1x1x32xf32>
    %514 = vector.shape_cast %513 : vector<1x1x32xf32> to vector<1x32xf32>
    %515 = vector.broadcast %514 : vector<1x32xf32> to vector<16x32xf32>
    %516 = arith.addf %512, %515 : vector<16x32xf32>
    %cst_214 = arith.constant 5.000000e-01 : f32
    %517 = vector.broadcast %cst_214 : f32 to vector<16x32xf32>
    %518 = arith.mulf %517, %516 : vector<16x32xf32>
    %cst_215 = arith.constant 0.707106769 : f32
    %519 = vector.broadcast %cst_215 : f32 to vector<16x32xf32>
    %520 = arith.mulf %516, %519 : vector<16x32xf32>
    %cst_216 = arith.constant -4.000000e+00 : f32
    %cst_217 = arith.constant 4.000000e+00 : f32
    %521 = vector.broadcast %cst_216 : f32 to vector<16x32xf32>
    %522 = arith.maximumf %521, %520 : vector<16x32xf32>
    %523 = vector.broadcast %cst_217 : f32 to vector<16x32xf32>
    %524 = arith.minimumf %523, %522 : vector<16x32xf32>
    %525 = arith.mulf %524, %524 : vector<16x32xf32>
    %cst_218 = arith.constant 2.29050653E-4 : f32
    %526 = vector.broadcast %cst_218 : f32 to vector<16x32xf32>
    %527 = arith.mulf %526, %525 : vector<16x32xf32>
    %cst_219 = arith.constant 0.00340829091 : f32
    %528 = vector.broadcast %cst_219 : f32 to vector<16x32xf32>
    %529 = arith.addf %527, %528 : vector<16x32xf32>
    %530 = arith.mulf %529, %525 : vector<16x32xf32>
    %cst_220 = arith.constant 0.0509556942 : f32
    %531 = vector.broadcast %cst_220 : f32 to vector<16x32xf32>
    %532 = arith.addf %530, %531 : vector<16x32xf32>
    %533 = arith.mulf %532, %525 : vector<16x32xf32>
    %cst_221 = arith.constant 0.185208321 : f32
    %534 = vector.broadcast %cst_221 : f32 to vector<16x32xf32>
    %535 = arith.addf %533, %534 : vector<16x32xf32>
    %536 = arith.mulf %535, %525 : vector<16x32xf32>
    %cst_222 = arith.constant 1.12837911 : f32
    %537 = vector.broadcast %cst_222 : f32 to vector<16x32xf32>
    %538 = arith.addf %536, %537 : vector<16x32xf32>
    %cst_223 = arith.constant -1.17916031E-7 : f32
    %539 = vector.broadcast %cst_223 : f32 to vector<16x32xf32>
    %540 = arith.mulf %539, %525 : vector<16x32xf32>
    %cst_224 = arith.constant 2.35479656E-5 : f32
    %541 = vector.broadcast %cst_224 : f32 to vector<16x32xf32>
    %542 = arith.addf %540, %541 : vector<16x32xf32>
    %543 = arith.mulf %542, %525 : vector<16x32xf32>
    %cst_225 = arith.constant 0.00101796258 : f32
    %544 = vector.broadcast %cst_225 : f32 to vector<16x32xf32>
    %545 = arith.addf %543, %544 : vector<16x32xf32>
    %546 = arith.mulf %545, %525 : vector<16x32xf32>
    %cst_226 = arith.constant 0.0140704699 : f32
    %547 = vector.broadcast %cst_226 : f32 to vector<16x32xf32>
    %548 = arith.addf %546, %547 : vector<16x32xf32>
    %549 = arith.mulf %548, %525 : vector<16x32xf32>
    %cst_227 = arith.constant 0.110985048 : f32
    %550 = vector.broadcast %cst_227 : f32 to vector<16x32xf32>
    %551 = arith.addf %549, %550 : vector<16x32xf32>
    %552 = arith.mulf %551, %525 : vector<16x32xf32>
    %cst_228 = arith.constant 0.497469246 : f32
    %553 = vector.broadcast %cst_228 : f32 to vector<16x32xf32>
    %554 = arith.addf %552, %553 : vector<16x32xf32>
    %555 = arith.mulf %554, %525 : vector<16x32xf32>
    %cst_229 = arith.constant 1.000000e+00 : f32
    %556 = vector.broadcast %cst_229 : f32 to vector<16x32xf32>
    %557 = arith.addf %555, %556 : vector<16x32xf32>
    %558 = tpu.reciprocal %557 {approx = true} : vector<16x32xf32> -> vector<16x32xf32>
    %559 = arith.mulf %557, %558 : vector<16x32xf32>
    %cst_230 = arith.constant 2.000000e+00 : f32
    %560 = vector.broadcast %cst_230 : f32 to vector<16x32xf32>
    %561 = arith.subf %560, %559 : vector<16x32xf32>
    %562 = arith.mulf %558, %561 : vector<16x32xf32>
    %563 = arith.mulf %524, %538 : vector<16x32xf32>
    %564 = arith.mulf %563, %562 : vector<16x32xf32>
    %cst_231 = arith.constant 1.000000e+00 : f32
    %565 = vector.broadcast %cst_231 : f32 to vector<16x32xf32>
    %566 = arith.addf %565, %564 : vector<16x32xf32>
    %567 = arith.mulf %518, %566 : vector<16x32xf32>
    %c1_i32_232 = arith.constant 1 : i32
    %568 = tpu.dynamic_rotate %567 by %c1_i32_232 dim 0 : vector<16x32xf32>, i32 -> vector<16x32xf32>
    %c15_i32_233 = arith.constant 15 : i32
    %569 = tpu.dynamic_rotate %567 by %c15_i32_233 dim 0 : vector<16x32xf32>, i32 -> vector<16x32xf32>
    %570 = vector.broadcast %8 : vector<16x1xf32> to vector<16x32xf32>
    %571 = arith.mulf %570, %568 : vector<16x32xf32>
    %572 = arith.addf %567, %571 : vector<16x32xf32>
    %573 = vector.broadcast %9 : vector<16x1xf32> to vector<16x32xf32>
    %574 = arith.mulf %573, %569 : vector<16x32xf32>
    %575 = arith.addf %572, %574 : vector<16x32xf32>
    %c6 = arith.constant 6 : index
    %c0_234 = arith.constant 0 : index
    %c0_235 = arith.constant 0 : index
    %576 = vector.load %arg7[%c6, %c0_234, %c0_235] : memref<8x32x32xf32, #tpu.memory_space<vmem>>, vector<1x32x32xf32>
    %577 = vector.shape_cast %576 : vector<1x32x32xf32> to vector<32x32xf32>
    %cst_236 = arith.constant dense<0.000000e+00> : vector<16x32xf32>
    %578 = tpu.matmul %575, %577, %cst_236 {dimension_numbers = #tpu.dot_dimension_numbers<[1], [0], [0], [1], [0, 0, 1, 1], [], []>} : vector<16x32xf32>, vector<32x32xf32>, vector<16x32xf32> -> vector<16x32xf32>
    %c6_237 = arith.constant 6 : index
    %c0_238 = arith.constant 0 : index
    %c0_239 = arith.constant 0 : index
    %579 = vector.load %arg8[%c6_237, %c0_238, %c0_239] : memref<8x1x32xf32, #tpu.memory_space<vmem>>, vector<1x1x32xf32>
    %580 = vector.shape_cast %579 : vector<1x1x32xf32> to vector<1x32xf32>
    %581 = vector.broadcast %580 : vector<1x32xf32> to vector<16x32xf32>
    %582 = arith.addf %578, %581 : vector<16x32xf32>
    %583 = arith.addf %567, %582 : vector<16x32xf32>
    %cst_240 = arith.constant dense<0.000000e+00> : vector<16xf32>
    %584 = vector.multi_reduction <add>, %583, %cst_240 [1] : vector<16x32xf32> to vector<16xf32>
    %585 = vector.shape_cast %584 : vector<16xf32> to vector<16x1xf32>
    %cst_241 = arith.constant 3.200000e+01 : f32
    %586 = vector.broadcast %cst_241 : f32 to vector<16x1xf32>
    %587 = arith.divf %585, %586 : vector<16x1xf32>
    %588 = arith.mulf %583, %583 : vector<16x32xf32>
    %cst_242 = arith.constant dense<0.000000e+00> : vector<16xf32>
    %589 = vector.multi_reduction <add>, %588, %cst_242 [1] : vector<16x32xf32> to vector<16xf32>
    %590 = vector.shape_cast %589 : vector<16xf32> to vector<16x1xf32>
    %cst_243 = arith.constant 3.200000e+01 : f32
    %591 = vector.broadcast %cst_243 : f32 to vector<16x1xf32>
    %592 = arith.divf %590, %591 : vector<16x1xf32>
    %593 = arith.mulf %587, %587 : vector<16x1xf32>
    %594 = arith.subf %592, %593 : vector<16x1xf32>
    %595 = vector.broadcast %587 : vector<16x1xf32> to vector<16x32xf32>
    %596 = arith.subf %583, %595 : vector<16x32xf32>
    %cst_244 = arith.constant 9.99999974E-6 : f32
    %597 = vector.broadcast %cst_244 : f32 to vector<16x1xf32>
    %598 = arith.addf %594, %597 : vector<16x1xf32>
    %599 = math.rsqrt %598 : vector<16x1xf32>
    %600 = vector.broadcast %599 : vector<16x1xf32> to vector<16x32xf32>
    %601 = arith.mulf %596, %600 : vector<16x32xf32>
    %c6_245 = arith.constant 6 : index
    %c0_246 = arith.constant 0 : index
    %c0_247 = arith.constant 0 : index
    %602 = vector.load %arg9[%c6_245, %c0_246, %c0_247] : memref<8x1x32xf32, #tpu.memory_space<vmem>>, vector<1x1x32xf32>
    %603 = vector.shape_cast %602 : vector<1x1x32xf32> to vector<1x32xf32>
    %604 = vector.broadcast %603 : vector<1x32xf32> to vector<16x32xf32>
    %605 = arith.mulf %601, %604 : vector<16x32xf32>
    %c6_248 = arith.constant 6 : index
    %c0_249 = arith.constant 0 : index
    %c0_250 = arith.constant 0 : index
    %606 = vector.load %arg10[%c6_248, %c0_249, %c0_250] : memref<8x1x32xf32, #tpu.memory_space<vmem>>, vector<1x1x32xf32>
    %607 = vector.shape_cast %606 : vector<1x1x32xf32> to vector<1x32xf32>
    %608 = vector.broadcast %607 : vector<1x32xf32> to vector<16x32xf32>
    %609 = arith.addf %605, %608 : vector<16x32xf32>
    %cst_251 = arith.constant 5.000000e-01 : f32
    %610 = vector.broadcast %cst_251 : f32 to vector<16x32xf32>
    %611 = arith.mulf %610, %609 : vector<16x32xf32>
    %cst_252 = arith.constant 0.707106769 : f32
    %612 = vector.broadcast %cst_252 : f32 to vector<16x32xf32>
    %613 = arith.mulf %609, %612 : vector<16x32xf32>
    %cst_253 = arith.constant -4.000000e+00 : f32
    %cst_254 = arith.constant 4.000000e+00 : f32
    %614 = vector.broadcast %cst_253 : f32 to vector<16x32xf32>
    %615 = arith.maximumf %614, %613 : vector<16x32xf32>
    %616 = vector.broadcast %cst_254 : f32 to vector<16x32xf32>
    %617 = arith.minimumf %616, %615 : vector<16x32xf32>
    %618 = arith.mulf %617, %617 : vector<16x32xf32>
    %cst_255 = arith.constant 2.29050653E-4 : f32
    %619 = vector.broadcast %cst_255 : f32 to vector<16x32xf32>
    %620 = arith.mulf %619, %618 : vector<16x32xf32>
    %cst_256 = arith.constant 0.00340829091 : f32
    %621 = vector.broadcast %cst_256 : f32 to vector<16x32xf32>
    %622 = arith.addf %620, %621 : vector<16x32xf32>
    %623 = arith.mulf %622, %618 : vector<16x32xf32>
    %cst_257 = arith.constant 0.0509556942 : f32
    %624 = vector.broadcast %cst_257 : f32 to vector<16x32xf32>
    %625 = arith.addf %623, %624 : vector<16x32xf32>
    %626 = arith.mulf %625, %618 : vector<16x32xf32>
    %cst_258 = arith.constant 0.185208321 : f32
    %627 = vector.broadcast %cst_258 : f32 to vector<16x32xf32>
    %628 = arith.addf %626, %627 : vector<16x32xf32>
    %629 = arith.mulf %628, %618 : vector<16x32xf32>
    %cst_259 = arith.constant 1.12837911 : f32
    %630 = vector.broadcast %cst_259 : f32 to vector<16x32xf32>
    %631 = arith.addf %629, %630 : vector<16x32xf32>
    %cst_260 = arith.constant -1.17916031E-7 : f32
    %632 = vector.broadcast %cst_260 : f32 to vector<16x32xf32>
    %633 = arith.mulf %632, %618 : vector<16x32xf32>
    %cst_261 = arith.constant 2.35479656E-5 : f32
    %634 = vector.broadcast %cst_261 : f32 to vector<16x32xf32>
    %635 = arith.addf %633, %634 : vector<16x32xf32>
    %636 = arith.mulf %635, %618 : vector<16x32xf32>
    %cst_262 = arith.constant 0.00101796258 : f32
    %637 = vector.broadcast %cst_262 : f32 to vector<16x32xf32>
    %638 = arith.addf %636, %637 : vector<16x32xf32>
    %639 = arith.mulf %638, %618 : vector<16x32xf32>
    %cst_263 = arith.constant 0.0140704699 : f32
    %640 = vector.broadcast %cst_263 : f32 to vector<16x32xf32>
    %641 = arith.addf %639, %640 : vector<16x32xf32>
    %642 = arith.mulf %641, %618 : vector<16x32xf32>
    %cst_264 = arith.constant 0.110985048 : f32
    %643 = vector.broadcast %cst_264 : f32 to vector<16x32xf32>
    %644 = arith.addf %642, %643 : vector<16x32xf32>
    %645 = arith.mulf %644, %618 : vector<16x32xf32>
    %cst_265 = arith.constant 0.497469246 : f32
    %646 = vector.broadcast %cst_265 : f32 to vector<16x32xf32>
    %647 = arith.addf %645, %646 : vector<16x32xf32>
    %648 = arith.mulf %647, %618 : vector<16x32xf32>
    %cst_266 = arith.constant 1.000000e+00 : f32
    %649 = vector.broadcast %cst_266 : f32 to vector<16x32xf32>
    %650 = arith.addf %648, %649 : vector<16x32xf32>
    %651 = tpu.reciprocal %650 {approx = true} : vector<16x32xf32> -> vector<16x32xf32>
    %652 = arith.mulf %650, %651 : vector<16x32xf32>
    %cst_267 = arith.constant 2.000000e+00 : f32
    %653 = vector.broadcast %cst_267 : f32 to vector<16x32xf32>
    %654 = arith.subf %653, %652 : vector<16x32xf32>
    %655 = arith.mulf %651, %654 : vector<16x32xf32>
    %656 = arith.mulf %617, %631 : vector<16x32xf32>
    %657 = arith.mulf %656, %655 : vector<16x32xf32>
    %cst_268 = arith.constant 1.000000e+00 : f32
    %658 = vector.broadcast %cst_268 : f32 to vector<16x32xf32>
    %659 = arith.addf %658, %657 : vector<16x32xf32>
    %660 = arith.mulf %611, %659 : vector<16x32xf32>
    %c1_i32_269 = arith.constant 1 : i32
    %661 = tpu.dynamic_rotate %660 by %c1_i32_269 dim 0 : vector<16x32xf32>, i32 -> vector<16x32xf32>
    %c15_i32_270 = arith.constant 15 : i32
    %662 = tpu.dynamic_rotate %660 by %c15_i32_270 dim 0 : vector<16x32xf32>, i32 -> vector<16x32xf32>
    %663 = vector.broadcast %8 : vector<16x1xf32> to vector<16x32xf32>
    %664 = arith.mulf %663, %661 : vector<16x32xf32>
    %665 = arith.addf %660, %664 : vector<16x32xf32>
    %666 = vector.broadcast %9 : vector<16x1xf32> to vector<16x32xf32>
    %667 = arith.mulf %666, %662 : vector<16x32xf32>
    %668 = arith.addf %665, %667 : vector<16x32xf32>
    %c7 = arith.constant 7 : index
    %c0_271 = arith.constant 0 : index
    %c0_272 = arith.constant 0 : index
    %669 = vector.load %arg7[%c7, %c0_271, %c0_272] : memref<8x32x32xf32, #tpu.memory_space<vmem>>, vector<1x32x32xf32>
    %670 = vector.shape_cast %669 : vector<1x32x32xf32> to vector<32x32xf32>
    %cst_273 = arith.constant dense<0.000000e+00> : vector<16x32xf32>
    %671 = tpu.matmul %668, %670, %cst_273 {dimension_numbers = #tpu.dot_dimension_numbers<[1], [0], [0], [1], [0, 0, 1, 1], [], []>} : vector<16x32xf32>, vector<32x32xf32>, vector<16x32xf32> -> vector<16x32xf32>
    %c7_274 = arith.constant 7 : index
    %c0_275 = arith.constant 0 : index
    %c0_276 = arith.constant 0 : index
    %672 = vector.load %arg8[%c7_274, %c0_275, %c0_276] : memref<8x1x32xf32, #tpu.memory_space<vmem>>, vector<1x1x32xf32>
    %673 = vector.shape_cast %672 : vector<1x1x32xf32> to vector<1x32xf32>
    %674 = vector.broadcast %673 : vector<1x32xf32> to vector<16x32xf32>
    %675 = arith.addf %671, %674 : vector<16x32xf32>
    %676 = arith.addf %660, %675 : vector<16x32xf32>
    %cst_277 = arith.constant dense<0.000000e+00> : vector<16xf32>
    %677 = vector.multi_reduction <add>, %676, %cst_277 [1] : vector<16x32xf32> to vector<16xf32>
    %678 = vector.shape_cast %677 : vector<16xf32> to vector<16x1xf32>
    %cst_278 = arith.constant 3.200000e+01 : f32
    %679 = vector.broadcast %cst_278 : f32 to vector<16x1xf32>
    %680 = arith.divf %678, %679 : vector<16x1xf32>
    %681 = arith.mulf %676, %676 : vector<16x32xf32>
    %cst_279 = arith.constant dense<0.000000e+00> : vector<16xf32>
    %682 = vector.multi_reduction <add>, %681, %cst_279 [1] : vector<16x32xf32> to vector<16xf32>
    %683 = vector.shape_cast %682 : vector<16xf32> to vector<16x1xf32>
    %cst_280 = arith.constant 3.200000e+01 : f32
    %684 = vector.broadcast %cst_280 : f32 to vector<16x1xf32>
    %685 = arith.divf %683, %684 : vector<16x1xf32>
    %686 = arith.mulf %680, %680 : vector<16x1xf32>
    %687 = arith.subf %685, %686 : vector<16x1xf32>
    %688 = vector.broadcast %680 : vector<16x1xf32> to vector<16x32xf32>
    %689 = arith.subf %676, %688 : vector<16x32xf32>
    %cst_281 = arith.constant 9.99999974E-6 : f32
    %690 = vector.broadcast %cst_281 : f32 to vector<16x1xf32>
    %691 = arith.addf %687, %690 : vector<16x1xf32>
    %692 = math.rsqrt %691 : vector<16x1xf32>
    %693 = vector.broadcast %692 : vector<16x1xf32> to vector<16x32xf32>
    %694 = arith.mulf %689, %693 : vector<16x32xf32>
    %c7_282 = arith.constant 7 : index
    %c0_283 = arith.constant 0 : index
    %c0_284 = arith.constant 0 : index
    %695 = vector.load %arg9[%c7_282, %c0_283, %c0_284] : memref<8x1x32xf32, #tpu.memory_space<vmem>>, vector<1x1x32xf32>
    %696 = vector.shape_cast %695 : vector<1x1x32xf32> to vector<1x32xf32>
    %697 = vector.broadcast %696 : vector<1x32xf32> to vector<16x32xf32>
    %698 = arith.mulf %694, %697 : vector<16x32xf32>
    %c7_285 = arith.constant 7 : index
    %c0_286 = arith.constant 0 : index
    %c0_287 = arith.constant 0 : index
    %699 = vector.load %arg10[%c7_285, %c0_286, %c0_287] : memref<8x1x32xf32, #tpu.memory_space<vmem>>, vector<1x1x32xf32>
    %700 = vector.shape_cast %699 : vector<1x1x32xf32> to vector<1x32xf32>
    %701 = vector.broadcast %700 : vector<1x32xf32> to vector<16x32xf32>
    %702 = arith.addf %698, %701 : vector<16x32xf32>
    %cst_288 = arith.constant 5.000000e-01 : f32
    %703 = vector.broadcast %cst_288 : f32 to vector<16x32xf32>
    %704 = arith.mulf %703, %702 : vector<16x32xf32>
    %cst_289 = arith.constant 0.707106769 : f32
    %705 = vector.broadcast %cst_289 : f32 to vector<16x32xf32>
    %706 = arith.mulf %702, %705 : vector<16x32xf32>
    %cst_290 = arith.constant -4.000000e+00 : f32
    %cst_291 = arith.constant 4.000000e+00 : f32
    %707 = vector.broadcast %cst_290 : f32 to vector<16x32xf32>
    %708 = arith.maximumf %707, %706 : vector<16x32xf32>
    %709 = vector.broadcast %cst_291 : f32 to vector<16x32xf32>
    %710 = arith.minimumf %709, %708 : vector<16x32xf32>
    %711 = arith.mulf %710, %710 : vector<16x32xf32>
    %cst_292 = arith.constant 2.29050653E-4 : f32
    %712 = vector.broadcast %cst_292 : f32 to vector<16x32xf32>
    %713 = arith.mulf %712, %711 : vector<16x32xf32>
    %cst_293 = arith.constant 0.00340829091 : f32
    %714 = vector.broadcast %cst_293 : f32 to vector<16x32xf32>
    %715 = arith.addf %713, %714 : vector<16x32xf32>
    %716 = arith.mulf %715, %711 : vector<16x32xf32>
    %cst_294 = arith.constant 0.0509556942 : f32
    %717 = vector.broadcast %cst_294 : f32 to vector<16x32xf32>
    %718 = arith.addf %716, %717 : vector<16x32xf32>
    %719 = arith.mulf %718, %711 : vector<16x32xf32>
    %cst_295 = arith.constant 0.185208321 : f32
    %720 = vector.broadcast %cst_295 : f32 to vector<16x32xf32>
    %721 = arith.addf %719, %720 : vector<16x32xf32>
    %722 = arith.mulf %721, %711 : vector<16x32xf32>
    %cst_296 = arith.constant 1.12837911 : f32
    %723 = vector.broadcast %cst_296 : f32 to vector<16x32xf32>
    %724 = arith.addf %722, %723 : vector<16x32xf32>
    %cst_297 = arith.constant -1.17916031E-7 : f32
    %725 = vector.broadcast %cst_297 : f32 to vector<16x32xf32>
    %726 = arith.mulf %725, %711 : vector<16x32xf32>
    %cst_298 = arith.constant 2.35479656E-5 : f32
    %727 = vector.broadcast %cst_298 : f32 to vector<16x32xf32>
    %728 = arith.addf %726, %727 : vector<16x32xf32>
    %729 = arith.mulf %728, %711 : vector<16x32xf32>
    %cst_299 = arith.constant 0.00101796258 : f32
    %730 = vector.broadcast %cst_299 : f32 to vector<16x32xf32>
    %731 = arith.addf %729, %730 : vector<16x32xf32>
    %732 = arith.mulf %731, %711 : vector<16x32xf32>
    %cst_300 = arith.constant 0.0140704699 : f32
    %733 = vector.broadcast %cst_300 : f32 to vector<16x32xf32>
    %734 = arith.addf %732, %733 : vector<16x32xf32>
    %735 = arith.mulf %734, %711 : vector<16x32xf32>
    %cst_301 = arith.constant 0.110985048 : f32
    %736 = vector.broadcast %cst_301 : f32 to vector<16x32xf32>
    %737 = arith.addf %735, %736 : vector<16x32xf32>
    %738 = arith.mulf %737, %711 : vector<16x32xf32>
    %cst_302 = arith.constant 0.497469246 : f32
    %739 = vector.broadcast %cst_302 : f32 to vector<16x32xf32>
    %740 = arith.addf %738, %739 : vector<16x32xf32>
    %741 = arith.mulf %740, %711 : vector<16x32xf32>
    %cst_303 = arith.constant 1.000000e+00 : f32
    %742 = vector.broadcast %cst_303 : f32 to vector<16x32xf32>
    %743 = arith.addf %741, %742 : vector<16x32xf32>
    %744 = tpu.reciprocal %743 {approx = true} : vector<16x32xf32> -> vector<16x32xf32>
    %745 = arith.mulf %743, %744 : vector<16x32xf32>
    %cst_304 = arith.constant 2.000000e+00 : f32
    %746 = vector.broadcast %cst_304 : f32 to vector<16x32xf32>
    %747 = arith.subf %746, %745 : vector<16x32xf32>
    %748 = arith.mulf %744, %747 : vector<16x32xf32>
    %749 = arith.mulf %710, %724 : vector<16x32xf32>
    %750 = arith.mulf %749, %748 : vector<16x32xf32>
    %cst_305 = arith.constant 1.000000e+00 : f32
    %751 = vector.broadcast %cst_305 : f32 to vector<16x32xf32>
    %752 = arith.addf %751, %750 : vector<16x32xf32>
    %753 = arith.mulf %704, %752 : vector<16x32xf32>
    %c0_306 = arith.constant 0 : index
    %c0_307 = arith.constant 0 : index
    %754 = vector.load %arg11[%c0_306, %c0_307] : memref<16x32xf32, #tpu.memory_space<vmem>>, vector<16x32xf32>
    tpu.vector_store %arg11[%c0_306, %c0_307], %753 {strides = array<i32>} : memref<16x32xf32, #tpu.memory_space<vmem>>, vector<16x32xf32>,
    return
  }
  func.func @transform_0(%arg0: i32) -> (i32, i32) {
    %c0_i32 = arith.constant 0 : i32
    %c0_i32_0 = arith.constant 0 : i32
    %c0_i32_1 = arith.constant 0 : i32
    return %c0_i32, %c0_i32_0 : i32, i32
  }
  func.func @transform_1(%arg0: i32) -> (i32, i32) {
    %c0_i32 = arith.constant 0 : i32
    %c0_i32_0 = arith.constant 0 : i32
    %c0_i32_1 = arith.constant 0 : i32
    return %c0_i32, %c0_i32_0 : i32, i32
  }
  func.func @transform_2(%arg0: i32) -> (i32, i32) {
    %c0_i32 = arith.constant 0 : i32
    %c0_i32_0 = arith.constant 0 : i32
    %c0_i32_1 = arith.constant 0 : i32
    return %c0_i32, %c0_i32_0 : i32, i32
  }
  func.func @transform_3(%arg0: i32) -> (i32, i32) {
    %c0_i32 = arith.constant 0 : i32
    %c0_i32_0 = arith.constant 0 : i32
    %c0_i32_1 = arith.constant 0 : i32
    return %c0_i32, %c0_i32_0 : i32, i32
  }
  func.func @transform_4(%arg0: i32) -> (i32, i32) {
    %c0_i32 = arith.constant 0 : i32
    %c0_i32_0 = arith.constant 0 : i32
    %c0_i32_1 = arith.constant 0 : i32
    return %c0_i32, %c0_i32_0 : i32, i32
  }
  func.func @transform_5(%arg0: i32) -> (i32, i32) {
    %c0_i32 = arith.constant 0 : i32
    %c0_i32_0 = arith.constant 0 : i32
    %c0_i32_1 = arith.constant 0 : i32
    return %c0_i32, %c0_i32_0 : i32, i32
  }
  func.func @transform_6(%arg0: i32) -> (i32, i32, i32) {
    %c0_i32 = arith.constant 0 : i32
    %c0_i32_0 = arith.constant 0 : i32
    %c0_i32_1 = arith.constant 0 : i32
    %c0_i32_2 = arith.constant 0 : i32
    return %c0_i32, %c0_i32_0, %c0_i32_1 : i32, i32, i32
  }
  func.func @transform_7(%arg0: i32) -> (i32, i32, i32) {
    %c0_i32 = arith.constant 0 : i32
    %c0_i32_0 = arith.constant 0 : i32
    %c0_i32_1 = arith.constant 0 : i32
    %c0_i32_2 = arith.constant 0 : i32
    return %c0_i32, %c0_i32_0, %c0_i32_1 : i32, i32, i32
  }
  func.func @transform_8(%arg0: i32) -> (i32, i32, i32) {
    %c0_i32 = arith.constant 0 : i32
    %c0_i32_0 = arith.constant 0 : i32
    %c0_i32_1 = arith.constant 0 : i32
    %c0_i32_2 = arith.constant 0 : i32
    return %c0_i32, %c0_i32_0, %c0_i32_1 : i32, i32, i32
  }
  func.func @transform_9(%arg0: i32) -> (i32, i32, i32) {
    %c0_i32 = arith.constant 0 : i32
    %c0_i32_0 = arith.constant 0 : i32
    %c0_i32_1 = arith.constant 0 : i32
    %c0_i32_2 = arith.constant 0 : i32
    return %c0_i32, %c0_i32_0, %c0_i32_1 : i32, i32, i32
  }
  func.func @transform_10(%arg0: i32) -> (i32, i32) {
    %c0_i32 = arith.constant 0 : i32
    %c0_i32_0 = arith.constant 0 : i32
    %c0_i32_1 = arith.constant 0 : i32
    return %c0_i32, %c0_i32_0 : i32, i32
  }
}

</mosaic_0001>

<llo_original>
// kernel: coordinate_gcn_forward.1
$region0: #{coordinate_gcn_forward.1}
  #allocation0 [shape = 'u32[]', space=smem, size = 0x4, offset = 0x4, fixed_abs, tag = 'smem constant byte address 0x4 - core index']
  #allocation1 [shape = 'u32[144,128]{1,0:T(1,128)}', space=vmem, size = 0x12000, scoped, tag = 'internal scratch']
  %s0 = inlined_call_operand.vmem [shape: f32[16,16], index: 0, kind: input, shape index: {}]
  %s1 = inlined_call_operand.vmem [shape: f32[16,32], index: 1, kind: input, shape index: {}]
  %s2 = inlined_call_operand.vmem [shape: f32[16,1], index: 2, kind: input, shape index: {}]
  %s3 = inlined_call_operand.vmem [shape: f32[16,1], index: 3, kind: input, shape index: {}]
  %s4 = inlined_call_operand.vmem [shape: f32[16,32], index: 4, kind: input, shape index: {}]
  %s5 = inlined_call_operand.vmem [shape: f32[1,32], index: 5, kind: input, shape index: {}]
  %s6 = inlined_call_operand.vmem [shape: f32[8,32,32], index: 6, kind: input, shape index: {}]
  %s7 = inlined_call_operand.vmem [shape: f32[8,1,32], index: 7, kind: input, shape index: {}]
  %s8 = inlined_call_operand.vmem [shape: f32[8,1,32], index: 8, kind: input, shape index: {}]
  %s9 = inlined_call_operand.vmem [shape: f32[8,1,32], index: 9, kind: input, shape index: {}]
  %s10 = inlined_call_operand.vmem [shape: f32[16,32], index: 10, kind: output, shape index: {}]
  %s11 = sld [smem:[#allocation0]]
  $region50: #{coordinate_gcn_forward.1} parent=0
    _
  %s13 = ssub.s32 1, %s11
  %s14 = scalar_select 0, %s13, %s11
  // Predicated region
  $region2: #{coordinate_gcn_forward.1} parent=0 // pred_check
    _
  $region3: #{coordinate_gcn_forward.1} parent=0 // pred_check_branch
    %16 = sbr.rel (0) target = $region5
  $region4: #{coordinate_gcn_forward.1} parent=0 // pred_region
    _
  $region5: #{coordinate_gcn_forward.1} parent=0 // pred_fallthru
    _
  // Predicated region
  $region6: #{coordinate_gcn_forward.1} parent=0 // pred_check
    _
  $region7: #{coordinate_gcn_forward.1} parent=0 // pred_check_branch
    %18 = sbr.rel (0) target = $region9
  $region8: #{coordinate_gcn_forward.1} parent=0 // pred_region
    _
  $region9: #{coordinate_gcn_forward.1} parent=0 // pred_fallthru
    _
  // Predicated region
  $region10: #{coordinate_gcn_forward.1} parent=0 // pred_check
    _
  $region11: #{coordinate_gcn_forward.1} parent=0 // pred_check_branch
    %20 = sbr.rel (0) target = $region13
  $region12: #{coordinate_gcn_forward.1} parent=0 // pred_region
    _
  $region13: #{coordinate_gcn_forward.1} parent=0 // pred_fallthru
    _
  // Predicated region
  $region14: #{coordinate_gcn_forward.1} parent=0 // pred_check
    _
  $region15: #{coordinate_gcn_forward.1} parent=0 // pred_check_branch
    %22 = sbr.rel (0) target = $region17
  $region16: #{coordinate_gcn_forward.1} parent=0 // pred_region
    _
  $region17: #{coordinate_gcn_forward.1} parent=0 // pred_fallthru
    _
  // Predicated region
  $region18: #{coordinate_gcn_forward.1} parent=0 // pred_check
    _
  $region19: #{coordinate_gcn_forward.1} parent=0 // pred_check_branch
    %24 = sbr.rel (0) target = $region21
  $region20: #{coordinate_gcn_forward.1} parent=0 // pred_region
    _
  $region21: #{coordinate_gcn_forward.1} parent=0 // pred_fallthru
    _
  // Predicated region
  $region22: #{coordinate_gcn_forward.1} parent=0 // pred_check
    _
  $region23: #{coordinate_gcn_forward.1} parent=0 // pred_check_branch
    %26 = sbr.rel (0) target = $region25
  $region24: #{coordinate_gcn_forward.1} parent=0 // pred_region
    _
  $region25: #{coordinate_gcn_forward.1} parent=0 // pred_fallthru
    _
  // Predicated region
  $region26: #{coordinate_gcn_forward.1} parent=0 // pred_check
    _
  $region27: #{coordinate_gcn_forward.1} parent=0 // pred_check_branch
    %28 = sbr.rel (0) target = $region29
  $region28: #{coordinate_gcn_forward.1} parent=0 // pred_region
    _
  $region29: #{coordinate_gcn_forward.1} parent=0 // pred_fallthru
    _
  // Predicated region
  $region30: #{coordinate_gcn_forward.1} parent=0 // pred_check
    _
  $region31: #{coordinate_gcn_forward.1} parent=0 // pred_check_branch
    %30 = sbr.rel (0) target = $region33
  $region32: #{coordinate_gcn_forward.1} parent=0 // pred_region
    _
  $region33: #{coordinate_gcn_forward.1} parent=0 // pred_fallthru
    _
  // Predicated region
  $region34: #{coordinate_gcn_forward.1} parent=0 // pred_check
    _
  $region35: #{coordinate_gcn_forward.1} parent=0 // pred_check_branch
    %32 = sbr.rel (0) target = $region37
  $region36: #{coordinate_gcn_forward.1} parent=0 // pred_region
    _
  $region37: #{coordinate_gcn_forward.1} parent=0 // pred_fallthru
    _
  // Predicated region
  $region38: #{coordinate_gcn_forward.1} parent=0 // pred_check
    _
  $region39: #{coordinate_gcn_forward.1} parent=0 // pred_check_branch
    %34 = sbr.rel (0) target = $region41
  $region40: #{coordinate_gcn_forward.1} parent=0 // pred_region
    _
  $region41: #{coordinate_gcn_forward.1} parent=0 // pred_fallthru
    _
  %v35 = vld [vmem:[%s0] sm:$0xff]
  %v36 = vld [vmem:[%s0 + $0x8] sm:$0xff]
  %v37 = vld [vmem:[%s4] sm:$0xff]
  %v38 = vld [vmem:[%s4 + $0x8] sm:$0xff]
  %v39 = vld [vmem:[%s5] sm:$0x1]
  %v41 = vlaneseq
  %v42 = vshrl.u32 %v41, 7
  %v43 = vsub.s32 0, %v42
  %v44 = vrot.slane %v39, %v43
  %vm46 = vcmask 130048
  %v48 = vsel %vm46, %v35, 0
  %v51 = vsel %vm46, %v36, 0
  %53 = vmatprep.subr.mxu0 0.0
  %54 = vmatpush1.msra.mxu0 %v37
  %55 = vmatprep.subr.mxu0 0.0
  %56 = vmatpush1.msra.mxu0 %v38
  %57 = vmatprep.subr.mxu0 0.0
  %58 = vmatpush1.msra.mxu0 0.0
  %59 = vmatprep.subr.mxu0 0.0
  %60 = vmatpush1.msra.mxu0 0.0
  %61 = vmatprep.subr.mxu0 0.0
  %62 = vmatpush1.msra.mxu0 0.0
  %63 = vmatprep.subr.mxu0 0.0
  %64 = vmatpush1.msra.mxu0 0.0
  %65 = vmatprep.subr.mxu0 0.0
  %66 = vmatpush1.msra.mxu0 0.0
  %67 = vmatprep.subr.mxu0 0.0
  %68 = vmatpush1.msra.mxu0 0.0
  %69 = vmatprep.subr.mxu0 0.0
  %70 = vmatpush1.msra.mxu0 0.0
  %71 = vmatprep.subr.mxu0 0.0
  %72 = vmatpush1.msra.mxu0 0.0
  %73 = vmatprep.subr.mxu0 0.0
  %74 = vmatpush1.msra.mxu0 0.0
  %75 = vmatprep.subr.mxu0 0.0
  %76 = vmatpush1.msra.mxu0 0.0
  %77 = vmatprep.subr.mxu0 0.0
  %78 = vmatpush1.msra.mxu0 0.0
  %79 = vmatprep.subr.mxu0 0.0
  %80 = vmatpush1.msra.mxu0 0.0
  %81 = vmatprep.subr.mxu0 0.0
  %82 = vmatpush1.msra.mxu0 0.0
  %83 = vmatprep.subr.mxu0 0.0
  %84 = vmatpush1.msra.mxu0 0.0
  %85 = vmatprep.subr.mxu0 0.0
  %86 = vmatpush1.msra.mxu0 0.0
  %87 = vmatprep.subr.mxu0 0.0
  %88 = vmatpush1.msra.mxu0 0.0
  %89 = vmatprep.subr.mxu0 0.0
  %90 = vmatpush1.msra.mxu0 0.0
  %91 = vmatprep.subr.mxu0 0.0
  %92 = vmatpush1.msra.mxu0 0.0
  %93 = vmatprep.subr.mxu0 0.0
  %94 = vmatpush1.msra.mxu0 0.0
  %95 = vmatprep.subr.mxu0 0.0
  %96 = vmatpush1.msra.mxu0 0.0
  %97 = vmatprep.subr.mxu0 0.0
  %98 = vmatpush1.msra.mxu0 0.0
  %99 = vmatprep.subr.mxu0 0.0
  %100 = vmatpush1.msra.mxu0 0.0
  %101 = vmatprep.subr.mxu0 0.0
  %102 = vmatpush1.msra.mxu0 0.0
  %103 = vmatprep.subr.mxu0 0.0
  %104 = vmatpush1.msra.mxu0 0.0
  %105 = vmatprep.subr.mxu0 0.0
  %106 = vmatpush1.msra.mxu0 0.0
  %107 = vmatprep.subr.mxu0 0.0
  %108 = vmatpush1.msra.mxu0 0.0
  %109 = vmatprep.subr.mxu0 0.0
  %110 = vmatpush1.msra.mxu0 0.0
  %111 = vmatprep.subr.mxu0 0.0
  %112 = vmatpush1.msra.mxu0 0.0
  %113 = vmatprep.subr.mxu0 0.0
  %114 = vmatpush1.msra.mxu0 0.0
  %115 = vmatprep.subr.mxu0 0.0
  %116 = vmatpush1.msra.mxu0 0.0
  %117 = vmatprep.mubr.f32.mxu0 0.0
  %118 = vmatmul.mubr.f32.gmra.mrb[0].mxu0 %v48
  %v119 = vpop.f32.mrb[0].mxu0
  %v120 = vadd.f32 %v44, %v119
  %v121 = vpop.f32.mrb[0].mxu0
  %122 = vmatprep.mubr.f32.mxu0 0.0
  %123 = vmatmul.mubr.f32.gmra.mrb[0].mxu0 %v51
  %v124 = vpop.f32.mrb[0].mxu0
  %v125 = vadd.f32 %v44, %v124
  %v126 = vpop.f32.mrb[0].mxu0
  %127 = vdwg.mxu0
  %v128 = vld [vmem:[%s1] sm:$0xff]
  %v129 = vld [vmem:[%s1 + $0x8] sm:$0xff]
  %v130 = vadd.f32 %v120, %v128
  %v131 = vadd.f32 %v125, %v129
  %v132 = vld [vmem:[%s2] sm:$0xff]
  %v133 = vld [vmem:[%s2 + $0x8] sm:$0xff]
  %v134 = vld [vmem:[%s3] sm:$0xff]
  %v135 = vld [vmem:[%s3 + $0x8] sm:$0xff]
  %v136 = vrot.slane %v130, 7
  %v137 = vrot.slane %v131, 7
  %v138 = vlaneseq
  %v139 = vshrl.u32 %v138, 7
  %vm140 = vcmp.lt.s32.totalorder %v139, 1
  %v141 = vsel %vm140, %v136, %v137
  %v142 = vsel %vm140, %v137, %v136
  %v143 = vrot.slane %v130, 1
  %v144 = vrot.slane %v131, 1
  %vm145 = vcmp.lt.s32.totalorder %v139, 7
  %v146 = vsel %vm145, %v143, %v144
  %v147 = vsel %vm145, %v144, %v143
  %149 = vset.pattern.permute.xlu0 0
  %150 = vperm.xlu0 %149, %v132
  %v151 = vpop.permute.xlu0 %150
  %154 = vset.pattern.permute.xlu0 0
  %155 = vperm.xlu0 %154, %v133
  %v156 = vpop.permute.xlu0 %155
  %v158 = vmul.f32 %v151, %v142
  %v159 = vmul.f32 %v156, %v141
  %v160 = vadd.f32 %v130, %v158
  %v161 = vadd.f32 %v131, %v159
  %163 = vset.pattern.permute.xlu0 0
  %164 = vperm.xlu0 %163, %v134
  %v165 = vpop.permute.xlu0 %164
  %168 = vset.pattern.permute.xlu0 0
  %169 = vperm.xlu0 %168, %v135
  %v170 = vpop.permute.xlu0 %169
  %v172 = vmul.f32 %v165, %v146
  %v173 = vmul.f32 %v170, %v147
  %v174 = vadd.f32 %v160, %v172
  %v175 = vadd.f32 %v161, %v173
  %v176 = vld [vmem:[%s6] sm:$0xff]
  %v177 = vld [vmem:[%s6 + $0x8] sm:$0xff]
  %v178 = vld [vmem:[%s6 + $0x10] sm:$0xff]
  %v179 = vld [vmem:[%s6 + $0x18] sm:$0xff]
  %v180 = vld [vmem:[%s7] sm:$0x1]
  %v182 = vlaneseq
  %v183 = vshrl.u32 %v182, 7
  %v184 = vsub.s32 0, %v183
  %v185 = vrot.slane %v180, %v184
  %vm187 = vcmask 261120
  %v189 = vsel %vm187, %v174, 0
  %v192 = vsel %vm187, %v175, 0
  %194 = vmatprep.subr.mxu0 0.0
  %195 = vmatpush1.msra.mxu0 %v176
  %196 = vmatprep.subr.mxu0 0.0
  %197 = vmatpush1.msra.mxu0 %v177
  %198 = vmatprep.subr.mxu0 0.0
  %199 = vmatpush1.msra.mxu0 %v178
  %200 = vmatprep.subr.mxu0 0.0
  %201 = vmatpush1.msra.mxu0 %v179
  %202 = vmatprep.subr.mxu0 0.0
  %203 = vmatpush1.msra.mxu0 0.0
  %204 = vmatprep.subr.mxu0 0.0
  %205 = vmatpush1.msra.mxu0 0.0
  %206 = vmatprep.subr.mxu0 0.0
  %207 = vmatpush1.msra.mxu0 0.0
  %208 = vmatprep.subr.mxu0 0.0
  %209 = vmatpush1.msra.mxu0 0.0
  %210 = vmatprep.subr.mxu0 0.0
  %211 = vmatpush1.msra.mxu0 0.0
  %212 = vmatprep.subr.mxu0 0.0
  %213 = vmatpush1.msra.mxu0 0.0
  %214 = vmatprep.subr.mxu0 0.0
  %215 = vmatpush1.msra.mxu0 0.0
  %216 = vmatprep.subr.mxu0 0.0
  %217 = vmatpush1.msra.mxu0 0.0
  %218 = vmatprep.subr.mxu0 0.0
  %219 = vmatpush1.msra.mxu0 0.0
  %220 = vmatprep.subr.mxu0 0.0
  %221 = vmatpush1.msra.mxu0 0.0
  %222 = vmatprep.subr.mxu0 0.0
  %223 = vmatpush1.msra.mxu0 0.0
  %224 = vmatprep.subr.mxu0 0.0
  %225 = vmatpush1.msra.mxu0 0.0
  %226 = vmatprep.subr.mxu0 0.0
  %227 = vmatpush1.msra.mxu0 0.0
  %228 = vmatprep.subr.mxu0 0.0
  %229 = vmatpush1.msra.mxu0 0.0
  %230 = vmatprep.subr.mxu0 0.0
  %231 = vmatpush1.msra.mxu0 0.0
  %232 = vmatprep.subr.mxu0 0.0
  %233 = vmatpush1.msra.mxu0 0.0
  %234 = vmatprep.subr.mxu0 0.0
  %235 = vmatpush1.msra.mxu0 0.0
  %236 = vmatprep.subr.mxu0 0.0
  %237 = vmatpush1.msra.mxu0 0.0
  %238 = vmatprep.subr.mxu0 0.0
  %239 = vmatpush1.msra.mxu0 0.0
  %240 = vmatprep.subr.mxu0 0.0
  %241 = vmatpush1.msra.mxu0 0.0
  %242 = vmatprep.subr.mxu0 0.0
  %243 = vmatpush1.msra.mxu0 0.0
  %244 = vmatprep.subr.mxu0 0.0
  %245 = vmatpush1.msra.mxu0 0.0
  %246 = vmatprep.subr.mxu0 0.0
  %247 = vmatpush1.msra.mxu0 0.0
  %248 = vmatprep.subr.mxu0 0.0
  %249 = vmatpush1.msra.mxu0 0.0
  %250 = vmatprep.subr.mxu0 0.0
  %251 = vmatpush1.msra.mxu0 0.0
  %252 = vmatprep.subr.mxu0 0.0
  %253 = vmatpush1.msra.mxu0 0.0
  %254 = vmatprep.subr.mxu0 0.0
  %255 = vmatpush1.msra.mxu0 0.0
  %256 = vmatprep.subr.mxu0 0.0
  %257 = vmatpush1.msra.mxu0 0.0
  %258 = vmatprep.mubr.f32.mxu0 0.0
  %259 = vmatmul.mubr.f32.gmra.mrb[0].mxu0 %v189
  %v260 = vpop.f32.mrb[0].mxu0
  %v261 = vadd.f32 %v185, %v260
  %v262 = vpop.f32.mrb[0].mxu0
  %263 = vmatprep.mubr.f32.mxu0 0.0
  %264 = vmatmul.mubr.f32.gmra.mrb[0].mxu0 %v192
  %v265 = vpop.f32.mrb[0].mxu0
  %v266 = vadd.f32 %v185, %v265
  %v267 = vpop.f32.mrb[0].mxu0
  %268 = vdwg.mxu0
  %v269 = vadd.f32 %v130, %v261
  %v270 = vadd.f32 %v131, %v266
  %v271 = vsel %vm187, %v269, 0.0
  %272 = vadd.xlane.f32.xlu0 %v271
  %v273 = vpop.xlane.xlu0 %272
  %v274 = vsel %vm187, %v270, 0.0
  %275 = vadd.xlane.f32.xlu0 %v274
  %v276 = vpop.xlane.xlu0 %275
  %v277 = vrcp.pop 32.0
  %v278 = vmul.f32 %v273, %v277
  %v279 = vmul.f32 %v276, %v277
  %v280 = vmul.f32 %v269, %v269
  %v281 = vmul.f32 %v270, %v270
  %v282 = vsel %vm187, %v280, 0.0
  %283 = vadd.xlane.f32.xlu0 %v282
  %v284 = vpop.xlane.xlu0 %283
  %v285 = vsel %vm187, %v281, 0.0
  %286 = vadd.xlane.f32.xlu0 %v285
  %v287 = vpop.xlane.xlu0 %286
  %v288 = vmul.f32 %v284, %v277
  %v289 = vmul.f32 %v287, %v277
  %v290 = vmul.f32 %v278, %v278
  %v291 = vmul.f32 %v279, %v279
  %v292 = vsub.f32 %v288, %v290
  %v293 = vsub.f32 %v289, %v291
  %v294 = vsub.f32 %v269, %v278
  %v295 = vsub.f32 %v270, %v279
  %v296 = vadd.f32 %v292, 1e-05
  %v297 = vadd.f32 %v293, 1e-05
  %v298 = vrsqrt.pop %v296
  %v299 = vrsqrt.pop %v297
  %v300 = vmul.f32 %v294, %v298
  %v301 = vmul.f32 %v295, %v299
  %v302 = vld [vmem:[%s8] sm:$0x1]
  %v304 = vlaneseq
  %v305 = vshrl.u32 %v304, 7
  %v306 = vsub.s32 0, %v305
  %v307 = vrot.slane %v302, %v306
  %v309 = vmul.f32 %v300, %v307
  %v310 = vmul.f32 %v301, %v307
  %v311 = vld [vmem:[%s9] sm:$0x1]
  %v313 = vlaneseq
  %v314 = vshrl.u32 %v313, 7
  %v315 = vsub.s32 0, %v314
  %v316 = vrot.slane %v311, %v315
  %v318 = vadd.f32 %v309, %v316
  %v319 = vadd.f32 %v310, %v316
  %v320 = vmul.f32 %v318, 0.5
  %v321 = vmul.f32 %v319, 0.5
  %v322 = vmul.f32 %v318, 0.70710677
  %v323 = vmul.f32 %v319, 0.70710677
  %v324 = vmax.f32 %v322, -4.0
  %v325 = vmax.f32 %v323, -4.0
  %v326 = vmin.f32 %v324, 4.0
  %v327 = vmin.f32 %v325, 4.0
  %v328 = vmul.f32 %v326, %v326
  %v329 = vmul.f32 %v327, %v327
  %v330 = vmul.f32 %v328, 0.00022905065
  %v331 = vmul.f32 %v329, 0.00022905065
  %v332 = vadd.f32 %v330, 0.003408291
  %v333 = vadd.f32 %v331, 0.003408291
  %v334 = vmul.f32 %v332, %v328
  %v335 = vmul.f32 %v333, %v329
  %v336 = vadd.f32 %v334, 0.050955694
  %v337 = vadd.f32 %v335, 0.050955694
  %v338 = vmul.f32 %v336, %v328
  %v339 = vmul.f32 %v337, %v329
  %v340 = vadd.f32 %v338, 0.18520832
  %v341 = vadd.f32 %v339, 0.18520832
  %v342 = vmul.f32 %v340, %v328
  %v343 = vmul.f32 %v341, %v329
  %v344 = vadd.f32 %v342, 1.1283791
  %v345 = vadd.f32 %v343, 1.1283791
  %v346 = vmul.f32 %v328, -1.1791603e-07
  %v347 = vmul.f32 %v329, -1.1791603e-07
  %v348 = vadd.f32 %v346, 2.3547966e-05
  %v349 = vadd.f32 %v347, 2.3547966e-05
  %v350 = vmul.f32 %v348, %v328
  %v351 = vmul.f32 %v349, %v329
  %v352 = vadd.f32 %v350, 0.0010179626
  %v353 = vadd.f32 %v351, 0.0010179626
  %v354 = vmul.f32 %v352, %v328
  %v355 = vmul.f32 %v353, %v329
  %v356 = vadd.f32 %v354, 0.01407047
  %v357 = vadd.f32 %v355, 0.01407047
  %v358 = vmul.f32 %v356, %v328
  %v359 = vmul.f32 %v357, %v329
  %v360 = vadd.f32 %v358, 0.11098505
  %v361 = vadd.f32 %v359, 0.11098505
  %v362 = vmul.f32 %v360, %v328
  %v363 = vmul.f32 %v361, %v329
  %v364 = vadd.f32 %v362, 0.49746925
  %v365 = vadd.f32 %v363, 0.49746925
  %v366 = vmul.f32 %v364, %v328
  %v367 = vmul.f32 %v365, %v329
  %v368 = vadd.f32 %v366, 1.0
  %v369 = vadd.f32 %v367, 1.0
  %v370 = vrcp.pop %v368
  %v371 = vrcp.pop %v369
  %v372 = vmul.f32 %v368, %v370
  %v373 = vmul.f32 %v369, %v371
  %v374 = vsub.f32 2.0, %v372
  %v375 = vsub.f32 2.0, %v373
  %v376 = vmul.f32 %v370, %v374
  %v377 = vmul.f32 %v371, %v375
  %v378 = vmul.f32 %v326, %v344
  %v379 = vmul.f32 %v327, %v345
  %v380 = vmul.f32 %v378, %v376
  %v381 = vmul.f32 %v379, %v377
  %v382 = vadd.f32 %v380, 1.0
  %v383 = vadd.f32 %v381, 1.0
  %v384 = vmul.f32 %v320, %v382
  %v385 = vmul.f32 %v321, %v383
  %v386 = vrot.slane %v384, 7
  %v387 = vrot.slane %v385, 7
  %v388 = vsel %vm140, %v386, %v387
  %v389 = vsel %vm140, %v387, %v386
  %v390 = vrot.slane %v384, 1
  %v391 = vrot.slane %v385, 1
  %v392 = vsel %vm145, %v390, %v391
  %v393 = vsel %vm145, %v391, %v390
  %v394 = vmul.f32 %v151, %v389
  %v395 = vmul.f32 %v156, %v388
  %v396 = vadd.f32 %v384, %v394
  %v397 = vadd.f32 %v385, %v395
  %v398 = vmul.f32 %v165, %v392
  %v399 = vmul.f32 %v170, %v393
  %v400 = vadd.f32 %v396, %v398
  %v401 = vadd.f32 %v397, %v399
  %s402 = scalar_lea.vmem %s6, 32
  %v403 = vld [vmem:[%s402] sm:$0xff]
  %v404 = vld [vmem:[%s402 + $0x8] sm:$0xff]
  %v405 = vld [vmem:[%s402 + $0x10] sm:$0xff]
  %v406 = vld [vmem:[%s402 + $0x18] sm:$0xff]
  %s407 = scalar_lea.vmem %s7, 1
  %v408 = vld [vmem:[%s407] sm:$0x1]
  %v410 = vlaneseq
  %v411 = vshrl.u32 %v410, 7
  %v412 = vsub.s32 0, %v411
  %v413 = vrot.slane %v408, %v412
  %v416 = vsel %vm187, %v400, 0
  %v419 = vsel %vm187, %v401, 0
  %421 = vmatprep.subr.mxu0 0.0
  %422 = vmatpush1.msra.mxu0 %v403
  %423 = vmatprep.subr.mxu0 0.0
  %424 = vmatpush1.msra.mxu0 %v404
  %425 = vmatprep.subr.mxu0 0.0
  %426 = vmatpush1.msra.mxu0 %v405
  %427 = vmatprep.subr.mxu0 0.0
  %428 = vmatpush1.msra.mxu0 %v406
  %429 = vmatprep.subr.mxu0 0.0
  %430 = vmatpush1.msra.mxu0 0.0
  %431 = vmatprep.subr.mxu0 0.0
  %432 = vmatpush1.msra.mxu0 0.0
  %433 = vmatprep.subr.mxu0 0.0
  %434 = vmatpush1.msra.mxu0 0.0
  %435 = vmatprep.subr.mxu0 0.0
  %436 = vmatpush1.msra.mxu0 0.0
  %437 = vmatprep.subr.mxu0 0.0
  %438 = vmatpush1.msra.mxu0 0.0
  %439 = vmatprep.subr.mxu0 0.0
  %440 = vmatpush1.msra.mxu0 0.0
  %441 = vmatprep.subr.mxu0 0.0
  %442 = vmatpush1.msra.mxu0 0.0
  %443 = vmatprep.subr.mxu0 0.0
  %444 = vmatpush1.msra.mxu0 0.0
  %445 = vmatprep.subr.mxu0 0.0
  %446 = vmatpush1.msra.mxu0 0.0
  %447 = vmatprep.subr.mxu0 0.0
  %448 = vmatpush1.msra.mxu0 0.0
  %449 = vmatprep.subr.mxu0 0.0
  %450 = vmatpush1.msra.mxu0 0.0
  %451 = vmatprep.subr.mxu0 0.0
  %452 = vmatpush1.msra.mxu0 0.0
  %453 = vmatprep.subr.mxu0 0.0
  %454 = vmatpush1.msra.mxu0 0.0
  %455 = vmatprep.subr.mxu0 0.0
  %456 = vmatpush1.msra.mxu0 0.0
  %457 = vmatprep.subr.mxu0 0.0
  %458 = vmatpush1.msra.mxu0 0.0
  %459 = vmatprep.subr.mxu0 0.0
  %460 = vmatpush1.msra.mxu0 0.0
  %461 = vmatprep.subr.mxu0 0.0
  %462 = vmatpush1.msra.mxu0 0.0
  %463 = vmatprep.subr.mxu0 0.0
  %464 = vmatpush1.msra.mxu0 0.0
  %465 = vmatprep.subr.mxu0 0.0
  %466 = vmatpush1.msra.mxu0 0.0
  %467 = vmatprep.subr.mxu0 0.0
  %468 = vmatpush1.msra.mxu0 0.0
  %469 = vmatprep.subr.mxu0 0.0
  %470 = vmatpush1.msra.mxu0 0.0
  %471 = vmatprep.subr.mxu0 0.0
  %472 = vmatpush1.msra.mxu0 0.0
  %473 = vmatprep.subr.mxu0 0.0
  %474 = vmatpush1.msra.mxu0 0.0
  %475 = vmatprep.subr.mxu0 0.0
  %476 = vmatpush1.msra.mxu0 0.0
  %477 = vmatprep.subr.mxu0 0.0
  %478 = vmatpush1.msra.mxu0 0.0
  %479 = vmatprep.subr.mxu0 0.0
  %480 = vmatpush1.msra.mxu0 0.0
  %481 = vmatprep.subr.mxu0 0.0
  %482 = vmatpush1.msra.mxu0 0.0
  %483 = vmatprep.subr.mxu0 0.0
  %484 = vmatpush1.msra.mxu0 0.0
  %485 = vmatprep.mubr.f32.mxu0 0.0
  %486 = vmatmul.mubr.f32.gmra.mrb[0].mxu0 %v416
  %v487 = vpop.f32.mrb[0].mxu0
  %v488 = vadd.f32 %v413, %v487
  %v489 = vpop.f32.mrb[0].mxu0
  %490 = vmatprep.mubr.f32.mxu0 0.0
  %491 = vmatmul.mubr.f32.gmra.mrb[0].mxu0 %v419
  %v492 = vpop.f32.mrb[0].mxu0
  %v493 = vadd.f32 %v413, %v492
  %v494 = vpop.f32.mrb[0].mxu0
  %495 = vdwg.mxu0
  %v496 = vadd.f32 %v384, %v488
  %v497 = vadd.f32 %v385, %v493
  %v498 = vsel %vm187, %v496, 0.0
  %499 = vadd.xlane.f32.xlu0 %v498
  %v500 = vpop.xlane.xlu0 %499
  %v501 = vsel %vm187, %v497, 0.0
  %502 = vadd.xlane.f32.xlu0 %v501
  %v503 = vpop.xlane.xlu0 %502
  %v504 = vmul.f32 %v500, %v277
  %v505 = vmul.f32 %v503, %v277
  %v506 = vmul.f32 %v496, %v496
  %v507 = vmul.f32 %v497, %v497
  %v508 = vsel %vm187, %v506, 0.0
  %509 = vadd.xlane.f32.xlu0 %v508
  %v510 = vpop.xlane.xlu0 %509
  %v511 = vsel %vm187, %v507, 0.0
  %512 = vadd.xlane.f32.xlu0 %v511
  %v513 = vpop.xlane.xlu0 %512
  %v514 = vmul.f32 %v510, %v277
  %v515 = vmul.f32 %v513, %v277
  %v516 = vmul.f32 %v504, %v504
  %v517 = vmul.f32 %v505, %v505
  %v518 = vsub.f32 %v514, %v516
  %v519 = vsub.f32 %v515, %v517
  %v520 = vsub.f32 %v496, %v504
  %v521 = vsub.f32 %v497, %v505
  %v522 = vadd.f32 %v518, 1e-05
  %v523 = vadd.f32 %v519, 1e-05
  %v524 = vrsqrt.pop %v522
  %v525 = vrsqrt.pop %v523
  %v526 = vmul.f32 %v520, %v524
  %v527 = vmul.f32 %v521, %v525
  %s528 = scalar_lea.vmem %s8, 1
  %v529 = vld [vmem:[%s528] sm:$0x1]
  %v531 = vlaneseq
  %v532 = vshrl.u32 %v531, 7
  %v533 = vsub.s32 0, %v532
  %v534 = vrot.slane %v529, %v533
  %v536 = vmul.f32 %v526, %v534
  %v537 = vmul.f32 %v527, %v534
  %s538 = scalar_lea.vmem %s9, 1
  %v539 = vld [vmem:[%s538] sm:$0x1]
  %v541 = vlaneseq
  %v542 = vshrl.u32 %v541, 7
  %v543 = vsub.s32 0, %v542
  %v544 = vrot.slane %v539, %v543
  %v546 = vadd.f32 %v536, %v544
  %v547 = vadd.f32 %v537, %v544
  %v548 = vmul.f32 %v546, 0.5
  %v549 = vmul.f32 %v547, 0.5
  %v550 = vmul.f32 %v546, 0.70710677
  %v551 = vmul.f32 %v547, 0.70710677
  %v552 = vmax.f32 %v550, -4.0
  %v553 = vmax.f32 %v551, -4.0
  %v554 = vmin.f32 %v552, 4.0
  %v555 = vmin.f32 %v553, 4.0
  %v556 = vmul.f32 %v554, %v554
  %v557 = vmul.f32 %v555, %v555
  %v558 = vmul.f32 %v556, 0.00022905065
  %v559 = vmul.f32 %v557, 0.00022905065
  %v560 = vadd.f32 %v558, 0.003408291
  %v561 = vadd.f32 %v559, 0.003408291
  %v562 = vmul.f32 %v560, %v556
  %v563 = vmul.f32 %v561, %v557
  %v564 = vadd.f32 %v562, 0.050955694
  %v565 = vadd.f32 %v563, 0.050955694
  %v566 = vmul.f32 %v564, %v556
  %v567 = vmul.f32 %v565, %v557
  %v568 = vadd.f32 %v566, 0.18520832
  %v569 = vadd.f32 %v567, 0.18520832
  %v570 = vmul.f32 %v568, %v556
  %v571 = vmul.f32 %v569, %v557
  %v572 = vadd.f32 %v570, 1.1283791
  %v573 = vadd.f32 %v571, 1.1283791
  %v574 = vmul.f32 %v556, -1.1791603e-07
  %v575 = vmul.f32 %v557, -1.1791603e-07
  %v576 = vadd.f32 %v574, 2.3547966e-05
  %v577 = vadd.f32 %v575, 2.3547966e-05
  %v578 = vmul.f32 %v576, %v556
  %v579 = vmul.f32 %v577, %v557
  %v580 = vadd.f32 %v578, 0.0010179626
  %v581 = vadd.f32 %v579, 0.0010179626
  %v582 = vmul.f32 %v580, %v556
  %v583 = vmul.f32 %v581, %v557
  %v584 = vadd.f32 %v582, 0.01407047
  %v585 = vadd.f32 %v583, 0.01407047
  %v586 = vmul.f32 %v584, %v556
  %v587 = vmul.f32 %v585, %v557
  %v588 = vadd.f32 %v586, 0.11098505
  %v589 = vadd.f32 %v587, 0.11098505
  %v590 = vmul.f32 %v588, %v556
  %v591 = vmul.f32 %v589, %v557
  %v592 = vadd.f32 %v590, 0.49746925
  %v593 = vadd.f32 %v591, 0.49746925
  %v594 = vmul.f32 %v592, %v556
  %v595 = vmul.f32 %v593, %v557
  %v596 = vadd.f32 %v594, 1.0
  %v597 = vadd.f32 %v595, 1.0
  %v598 = vrcp.pop %v596
  %v599 = vrcp.pop %v597
  %v600 = vmul.f32 %v596, %v598
  %v601 = vmul.f32 %v597, %v599
  %v602 = vsub.f32 2.0, %v600
  %v603 = vsub.f32 2.0, %v601
  %v604 = vmul.f32 %v598, %v602
  %v605 = vmul.f32 %v599, %v603
  %v606 = vmul.f32 %v554, %v572
  %v607 = vmul.f32 %v555, %v573
  %v608 = vmul.f32 %v606, %v604
  %v609 = vmul.f32 %v607, %v605
  %v610 = vadd.f32 %v608, 1.0
  %v611 = vadd.f32 %v609, 1.0
  %v612 = vmul.f32 %v548, %v610
  %v613 = vmul.f32 %v549, %v611
  %v614 = vrot.slane %v612, 7
  %v615 = vrot.slane %v613, 7
  %v616 = vsel %vm140, %v614, %v615
  %v617 = vsel %vm140, %v615, %v614
  %v618 = vrot.slane %v612, 1
  %v619 = vrot.slane %v613, 1
  %v620 = vsel %vm145, %v618, %v619
  %v621 = vsel %vm145, %v619, %v618
  %v622 = vmul.f32 %v151, %v617
  %v623 = vmul.f32 %v156, %v616
  %v624 = vadd.f32 %v612, %v622
  %v625 = vadd.f32 %v613, %v623
  %v626 = vmul.f32 %v165, %v620
  %v627 = vmul.f32 %v170, %v621
  %v628 = vadd.f32 %v624, %v626
  %v629 = vadd.f32 %v625, %v627
  %s630 = scalar_lea.vmem %s6, 64
  %v631 = vld [vmem:[%s630] sm:$0xff]
  %v632 = vld [vmem:[%s630 + $0x8] sm:$0xff]
  %v633 = vld [vmem:[%s630 + $0x10] sm:$0xff]
  %v634 = vld [vmem:[%s630 + $0x18] sm:$0xff]
  %s635 = scalar_lea.vmem %s7, 2
  %v636 = vld [vmem:[%s635] sm:$0x1]
  %v638 = vlaneseq
  %v639 = vshrl.u32 %v638, 7
  %v640 = vsub.s32 0, %v639
  %v641 = vrot.slane %v636, %v640
  %v644 = vsel %vm187, %v628, 0
  %v647 = vsel %vm187, %v629, 0
  %649 = vmatprep.subr.mxu0 0.0
  %650 = vmatpush1.msra.mxu0 %v631
  %651 = vmatprep.subr.mxu0 0.0
  %652 = vmatpush1.msra.mxu0 %v632
  %653 = vmatprep.subr.mxu0 0.0
  %654 = vmatpush1.msra.mxu0 %v633
  %655 = vmatprep.subr.mxu0 0.0
  %656 = vmatpush1.msra.mxu0 %v634
  %657 = vmatprep.subr.mxu0 0.0
  %658 = vmatpush1.msra.mxu0 0.0
  %659 = vmatprep.subr.mxu0 0.0
  %660 = vmatpush1.msra.mxu0 0.0
  %661 = vmatprep.subr.mxu0 0.0
  %662 = vmatpush1.msra.mxu0 0.0
  %663 = vmatprep.subr.mxu0 0.0
  %664 = vmatpush1.msra.mxu0 0.0
  %665 = vmatprep.subr.mxu0 0.0
  %666 = vmatpush1.msra.mxu0 0.0
  %667 = vmatprep.subr.mxu0 0.0
  %668 = vmatpush1.msra.mxu0 0.0
  %669 = vmatprep.subr.mxu0 0.0
  %670 = vmatpush1.msra.mxu0 0.0
  %671 = vmatprep.subr.mxu0 0.0
  %672 = vmatpush1.msra.mxu0 0.0
  %673 = vmatprep.subr.mxu0 0.0
  %674 = vmatpush1.msra.mxu0 0.0
  %675 = vmatprep.subr.mxu0 0.0
  %676 = vmatpush1.msra.mxu0 0.0
  %677 = vmatprep.subr.mxu0 0.0
  %678 = vmatpush1.msra.mxu0 0.0
  %679 = vmatprep.subr.mxu0 0.0
  %680 = vmatpush1.msra.mxu0 0.0
  %681 = vmatprep.subr.mxu0 0.0
  %682 = vmatpush1.msra.mxu0 0.0
  %683 = vmatprep.subr.mxu0 0.0
  %684 = vmatpush1.msra.mxu0 0.0
  %685 = vmatprep.subr.mxu0 0.0
  %686 = vmatpush1.msra.mxu0 0.0
  %687 = vmatprep.subr.mxu0 0.0
  %688 = vmatpush1.msra.mxu0 0.0
  %689 = vmatprep.subr.mxu0 0.0
  %690 = vmatpush1.msra.mxu0 0.0
  %691 = vmatprep.subr.mxu0 0.0
  %692 = vmatpush1.msra.mxu0 0.0
  %693 = vmatprep.subr.mxu0 0.0
  %694 = vmatpush1.msra.mxu0 0.0
  %695 = vmatprep.subr.mxu0 0.0
  %696 = vmatpush1.msra.mxu0 0.0
  %697 = vmatprep.subr.mxu0 0.0
  %698 = vmatpush1.msra.mxu0 0.0
  %699 = vmatprep.subr.mxu0 0.0
  %700 = vmatpush1.msra.mxu0 0.0
  %701 = vmatprep.subr.mxu0 0.0
  %702 = vmatpush1.msra.mxu0 0.0
  %703 = vmatprep.subr.mxu0 0.0
  %704 = vmatpush1.msra.mxu0 0.0
  %705 = vmatprep.subr.mxu0 0.0
  %706 = vmatpush1.msra.mxu0 0.0
  %707 = vmatprep.subr.mxu0 0.0
  %708 = vmatpush1.msra.mxu0 0.0
  %709 = vmatprep.subr.mxu0 0.0
  %710 = vmatpush1.msra.mxu0 0.0
  %711 = vmatprep.subr.mxu0 0.0
  %712 = vmatpush1.msra.mxu0 0.0
  %713 = vmatprep.mubr.f32.mxu0 0.0
  %714 = vmatmul.mubr.f32.gmra.mrb[0].mxu0 %v644
  %v715 = vpop.f32.mrb[0].mxu0
  %v716 = vadd.f32 %v641, %v715
  %v717 = vpop.f32.mrb[0].mxu0
  %718 = vmatprep.mubr.f32.mxu0 0.0
  %719 = vmatmul.mubr.f32.gmra.mrb[0].mxu0 %v647
  %v720 = vpop.f32.mrb[0].mxu0
  %v721 = vadd.f32 %v641, %v720
  %v722 = vpop.f32.mrb[0].mxu0
  %723 = vdwg.mxu0
  %v724 = vadd.f32 %v612, %v716
  %v725 = vadd.f32 %v613, %v721
  %v726 = vsel %vm187, %v724, 0.0
  %727 = vadd.xlane.f32.xlu0 %v726
  %v728 = vpop.xlane.xlu0 %727
  %v729 = vsel %vm187, %v725, 0.0
  %730 = vadd.xlane.f32.xlu0 %v729
  %v731 = vpop.xlane.xlu0 %730
  %v732 = vmul.f32 %v728, %v277
  %v733 = vmul.f32 %v731, %v277
  %v734 = vmul.f32 %v724, %v724
  %v735 = vmul.f32 %v725, %v725
  %v736 = vsel %vm187, %v734, 0.0
  %737 = vadd.xlane.f32.xlu0 %v736
  %v738 = vpop.xlane.xlu0 %737
  %v739 = vsel %vm187, %v735, 0.0
  %740 = vadd.xlane.f32.xlu0 %v739
  %v741 = vpop.xlane.xlu0 %740
  %v742 = vmul.f32 %v738, %v277
  %v743 = vmul.f32 %v741, %v277
  %v744 = vmul.f32 %v732, %v732
  %v745 = vmul.f32 %v733, %v733
  %v746 = vsub.f32 %v742, %v744
  %v747 = vsub.f32 %v743, %v745
  %v748 = vsub.f32 %v724, %v732
  %v749 = vsub.f32 %v725, %v733
  %v750 = vadd.f32 %v746, 1e-05
  %v751 = vadd.f32 %v747, 1e-05
  %v752 = vrsqrt.pop %v750
  %v753 = vrsqrt.pop %v751
  %v754 = vmul.f32 %v748, %v752
  %v755 = vmul.f32 %v749, %v753
  %s756 = scalar_lea.vmem %s8, 2
  %v757 = vld [vmem:[%s756] sm:$0x1]
  %v759 = vlaneseq
  %v760 = vshrl.u32 %v759, 7
  %v761 = vsub.s32 0, %v760
  %v762 = vrot.slane %v757, %v761
  %v764 = vmul.f32 %v754, %v762
  %v765 = vmul.f32 %v755, %v762
  %s766 = scalar_lea.vmem %s9, 2
  %v767 = vld [vmem:[%s766] sm:$0x1]
  %v769 = vlaneseq
  %v770 = vshrl.u32 %v769, 7
  %v771 = vsub.s32 0, %v770
  %v772 = vrot.slane %v767, %v771
  %v774 = vadd.f32 %v764, %v772
  %v775 = vadd.f32 %v765, %v772
  %v776 = vmul.f32 %v774, 0.5
  %v777 = vmul.f32 %v775, 0.5
  %v778 = vmul.f32 %v774, 0.70710677
  %v779 = vmul.f32 %v775, 0.70710677
  %v780 = vmax.f32 %v778, -4.0
  %v781 = vmax.f32 %v779, -4.0
  %v782 = vmin.f32 %v780, 4.0
  %v783 = vmin.f32 %v781, 4.0
  %v784 = vmul.f32 %v782, %v782
  %v785 = vmul.f32 %v783, %v783
  %v786 = vmul.f32 %v784, 0.00022905065
  %v787 = vmul.f32 %v785, 0.00022905065
  %v788 = vadd.f32 %v786, 0.003408291
  %v789 = vadd.f32 %v787, 0.003408291
  %v790 = vmul.f32 %v788, %v784
  %v791 = vmul.f32 %v789, %v785
  %v792 = vadd.f32 %v790, 0.050955694
  %v793 = vadd.f32 %v791, 0.050955694
  %v794 = vmul.f32 %v792, %v784
  %v795 = vmul.f32 %v793, %v785
  %v796 = vadd.f32 %v794, 0.18520832
  %v797 = vadd.f32 %v795, 0.18520832
  %v798 = vmul.f32 %v796, %v784
  %v799 = vmul.f32 %v797, %v785
  %v800 = vadd.f32 %v798, 1.1283791
  %v801 = vadd.f32 %v799, 1.1283791
  %v802 = vmul.f32 %v784, -1.1791603e-07
  %v803 = vmul.f32 %v785, -1.1791603e-07
  %v804 = vadd.f32 %v802, 2.3547966e-05
  %v805 = vadd.f32 %v803, 2.3547966e-05
  %v806 = vmul.f32 %v804, %v784
  %v807 = vmul.f32 %v805, %v785
  %v808 = vadd.f32 %v806, 0.0010179626
  %v809 = vadd.f32 %v807, 0.0010179626
  %v810 = vmul.f32 %v808, %v784
  %v811 = vmul.f32 %v809, %v785
  %v812 = vadd.f32 %v810, 0.01407047
  %v813 = vadd.f32 %v811, 0.01407047
  %v814 = vmul.f32 %v812, %v784
  %v815 = vmul.f32 %v813, %v785
  %v816 = vadd.f32 %v814, 0.11098505
  %v817 = vadd.f32 %v815, 0.11098505
  %v818 = vmul.f32 %v816, %v784
  %v819 = vmul.f32 %v817, %v785
  %v820 = vadd.f32 %v818, 0.49746925
  %v821 = vadd.f32 %v819, 0.49746925
  %v822 = vmul.f32 %v820, %v784
  %v823 = vmul.f32 %v821, %v785
  %v824 = vadd.f32 %v822, 1.0
  %v825 = vadd.f32 %v823, 1.0
  %v826 = vrcp.pop %v824
  %v827 = vrcp.pop %v825
  %v828 = vmul.f32 %v824, %v826
  %v829 = vmul.f32 %v825, %v827
  %v830 = vsub.f32 2.0, %v828
  %v831 = vsub.f32 2.0, %v829
  %v832 = vmul.f32 %v826, %v830
  %v833 = vmul.f32 %v827, %v831
  %v834 = vmul.f32 %v782, %v800
  %v835 = vmul.f32 %v783, %v801
  %v836 = vmul.f32 %v834, %v832
  %v837 = vmul.f32 %v835, %v833
  %v838 = vadd.f32 %v836, 1.0
  %v839 = vadd.f32 %v837, 1.0
  %v840 = vmul.f32 %v776, %v838
  %v841 = vmul.f32 %v777, %v839
  %v842 = vrot.slane %v840, 7
  %v843 = vrot.slane %v841, 7
  %v844 = vsel %vm140, %v842, %v843
  %v845 = vsel %vm140, %v843, %v842
  %v846 = vrot.slane %v840, 1
  %v847 = vrot.slane %v841, 1
  %v848 = vsel %vm145, %v846, %v847
  %v849 = vsel %vm145, %v847, %v846
  %v850 = vmul.f32 %v151, %v845
  %v851 = vmul.f32 %v156, %v844
  %v852 = vadd.f32 %v840, %v850
  %v853 = vadd.f32 %v841, %v851
  %v854 = vmul.f32 %v165, %v848
  %v855 = vmul.f32 %v170, %v849
  %v856 = vadd.f32 %v852, %v854
  %v857 = vadd.f32 %v853, %v855
  %s858 = scalar_lea.vmem %s6, 96
  %v859 = vld [vmem:[%s858] sm:$0xff]
  %v860 = vld [vmem:[%s858 + $0x8] sm:$0xff]
  %v861 = vld [vmem:[%s858 + $0x10] sm:$0xff]
  %v862 = vld [vmem:[%s858 + $0x18] sm:$0xff]
  %s863 = scalar_lea.vmem %s7, 3
  %v864 = vld [vmem:[%s863] sm:$0x1]
  %v866 = vlaneseq
  %v867 = vshrl.u32 %v866, 7
  %v868 = vsub.s32 0, %v867
  %v869 = vrot.slane %v864, %v868
  %v872 = vsel %vm187, %v856, 0
  %v875 = vsel %vm187, %v857, 0
  %877 = vmatprep.subr.mxu0 0.0
  %878 = vmatpush1.msra.mxu0 %v859
  %879 = vmatprep.subr.mxu0 0.0
  %880 = vmatpush1.msra.mxu0 %v860
  %881 = vmatprep.subr.mxu0 0.0
  %882 = vmatpush1.msra.mxu0 %v861
  %883 = vmatprep.subr.mxu0 0.0
  %884 = vmatpush1.msra.mxu0 %v862
  %885 = vmatprep.subr.mxu0 0.0
  %886 = vmatpush1.msra.mxu0 0.0
  %887 = vmatprep.subr.mxu0 0.0
  %888 = vmatpush1.msra.mxu0 0.0
  %889 = vmatprep.subr.mxu0 0.0
  %890 = vmatpush1.msra.mxu0 0.0
  %891 = vmatprep.subr.mxu0 0.0
  %892 = vmatpush1.msra.mxu0 0.0
  %893 = vmatprep.subr.mxu0 0.0
  %894 = vmatpush1.msra.mxu0 0.0
  %895 = vmatprep.subr.mxu0 0.0
  %896 = vmatpush1.msra.mxu0 0.0
  %897 = vmatprep.subr.mxu0 0.0
  %898 = vmatpush1.msra.mxu0 0.0
  %899 = vmatprep.subr.mxu0 0.0
  %900 = vmatpush1.msra.mxu0 0.0
  %901 = vmatprep.subr.mxu0 0.0
  %902 = vmatpush1.msra.mxu0 0.0
  %903 = vmatprep.subr.mxu0 0.0
  %904 = vmatpush1.msra.mxu0 0.0
  %905 = vmatprep.subr.mxu0 0.0
  %906 = vmatpush1.msra.mxu0 0.0
  %907 = vmatprep.subr.mxu0 0.0
  %908 = vmatpush1.msra.mxu0 0.0
  %909 = vmatprep.subr.mxu0 0.0
  %910 = vmatpush1.msra.mxu0 0.0
  %911 = vmatprep.subr.mxu0 0.0
  %912 = vmatpush1.msra.mxu0 0.0
  %913 = vmatprep.subr.mxu0 0.0
  %914 = vmatpush1.msra.mxu0 0.0
  %915 = vmatprep.subr.mxu0 0.0
  %916 = vmatpush1.msra.mxu0 0.0
  %917 = vmatprep.subr.mxu0 0.0
  %918 = vmatpush1.msra.mxu0 0.0
  %919 = vmatprep.subr.mxu0 0.0
  %920 = vmatpush1.msra.mxu0 0.0
  %921 = vmatprep.subr.mxu0 0.0
  %922 = vmatpush1.msra.mxu0 0.0
  %923 = vmatprep.subr.mxu0 0.0
  %924 = vmatpush1.msra.mxu0 0.0
  %925 = vmatprep.subr.mxu0 0.0
  %926 = vmatpush1.msra.mxu0 0.0
  %927 = vmatprep.subr.mxu0 0.0
  %928 = vmatpush1.msra.mxu0 0.0
  %929 = vmatprep.subr.mxu0 0.0
  %930 = vmatpush1.msra.mxu0 0.0
  %931 = vmatprep.subr.mxu0 0.0
  %932 = vmatpush1.msra.mxu0 0.0
  %933 = vmatprep.subr.mxu0 0.0
  %934 = vmatpush1.msra.mxu0 0.0
  %935 = vmatprep.subr.mxu0 0.0
  %936 = vmatpush1.msra.mxu0 0.0
  %937 = vmatprep.subr.mxu0 0.0
  %938 = vmatpush1.msra.mxu0 0.0
  %939 = vmatprep.subr.mxu0 0.0
  %940 = vmatpush1.msra.mxu0 0.0
  %941 = vmatprep.mubr.f32.mxu0 0.0
  %942 = vmatmul.mubr.f32.gmra.mrb[0].mxu0 %v872
  %v943 = vpop.f32.mrb[0].mxu0
  %v944 = vadd.f32 %v869, %v943
  %v945 = vpop.f32.mrb[0].mxu0
  %946 = vmatprep.mubr.f32.mxu0 0.0
  %947 = vmatmul.mubr.f32.gmra.mrb[0].mxu0 %v875
  %v948 = vpop.f32.mrb[0].mxu0
  %v949 = vadd.f32 %v869, %v948
  %v950 = vpop.f32.mrb[0].mxu0
  %951 = vdwg.mxu0
  %v952 = vadd.f32 %v840, %v944
  %v953 = vadd.f32 %v841, %v949
  %v954 = vsel %vm187, %v952, 0.0
  %955 = vadd.xlane.f32.xlu0 %v954
  %v956 = vpop.xlane.xlu0 %955
  %v957 = vsel %vm187, %v953, 0.0
  %958 = vadd.xlane.f32.xlu0 %v957
  %v959 = vpop.xlane.xlu0 %958
  %v960 = vmul.f32 %v956, %v277
  %v961 = vmul.f32 %v959, %v277
  %v962 = vmul.f32 %v952, %v952
  %v963 = vmul.f32 %v953, %v953
  %v964 = vsel %vm187, %v962, 0.0
  %965 = vadd.xlane.f32.xlu0 %v964
  %v966 = vpop.xlane.xlu0 %965
  %v967 = vsel %vm187, %v963, 0.0
  %968 = vadd.xlane.f32.xlu0 %v967
  %v969 = vpop.xlane.xlu0 %968
  %v970 = vmul.f32 %v966, %v277
  %v971 = vmul.f32 %v969, %v277
  %v972 = vmul.f32 %v960, %v960
  %v973 = vmul.f32 %v961, %v961
  %v974 = vsub.f32 %v970, %v972
  %v975 = vsub.f32 %v971, %v973
  %v976 = vsub.f32 %v952, %v960
  %v977 = vsub.f32 %v953, %v961
  %v978 = vadd.f32 %v974, 1e-05
  %v979 = vadd.f32 %v975, 1e-05
  %v980 = vrsqrt.pop %v978
  %v981 = vrsqrt.pop %v979
  %v982 = vmul.f32 %v976, %v980
  %v983 = vmul.f32 %v977, %v981
  %s984 = scalar_lea.vmem %s8, 3
  %v985 = vld [vmem:[%s984] sm:$0x1]
  %v987 = vlaneseq
  %v988 = vshrl.u32 %v987, 7
  %v989 = vsub.s32 0, %v988
  %v990 = vrot.slane %v985, %v989
  %v992 = vmul.f32 %v982, %v990
  %v993 = vmul.f32 %v983, %v990
  %s994 = scalar_lea.vmem %s9, 3
  %v995 = vld [vmem:[%s994] sm:$0x1]
  %v997 = vlaneseq
  %v998 = vshrl.u32 %v997, 7
  %v999 = vsub.s32 0, %v998
  %v1000 = vrot.slane %v995, %v999
  %v1002 = vadd.f32 %v992, %v1000
  %v1003 = vadd.f32 %v993, %v1000
  %v1004 = vmul.f32 %v1002, 0.5
  %v1005 = vmul.f32 %v1003, 0.5
  %v1006 = vmul.f32 %v1002, 0.70710677
  %v1007 = vmul.f32 %v1003, 0.70710677
  %v1008 = vmax.f32 %v1006, -4.0
  %v1009 = vmax.f32 %v1007, -4.0
  %v1010 = vmin.f32 %v1008, 4.0
  %v1011 = vmin.f32 %v1009, 4.0
  %v1012 = vmul.f32 %v1010, %v1010
  %v1013 = vmul.f32 %v1011, %v1011
  %v1014 = vmul.f32 %v1012, 0.00022905065
  %v1015 = vmul.f32 %v1013, 0.00022905065
  %v1016 = vadd.f32 %v1014, 0.003408291
  %v1017 = vadd.f32 %v1015, 0.003408291
  %v1018 = vmul.f32 %v1016, %v1012
  %v1019 = vmul.f32 %v1017, %v1013
  %v1020 = vadd.f32 %v1018, 0.050955694
  %v1021 = vadd.f32 %v1019, 0.050955694
  %v1022 = vmul.f32 %v1020, %v1012
  %v1023 = vmul.f32 %v1021, %v1013
  %v1024 = vadd.f32 %v1022, 0.18520832
  %v1025 = vadd.f32 %v1023, 0.18520832
  %v1026 = vmul.f32 %v1024, %v1012
  %v1027 = vmul.f32 %v1025, %v1013
  %v1028 = vadd.f32 %v1026, 1.1283791
  %v1029 = vadd.f32 %v1027, 1.1283791
  %v1030 = vmul.f32 %v1012, -1.1791603e-07
  %v1031 = vmul.f32 %v1013, -1.1791603e-07
  %v1032 = vadd.f32 %v1030, 2.3547966e-05
  %v1033 = vadd.f32 %v1031, 2.3547966e-05
  %v1034 = vmul.f32 %v1032, %v1012
  %v1035 = vmul.f32 %v1033, %v1013
  %v1036 = vadd.f32 %v1034, 0.0010179626
  %v1037 = vadd.f32 %v1035, 0.0010179626
  %v1038 = vmul.f32 %v1036, %v1012
  %v1039 = vmul.f32 %v1037, %v1013
  %v1040 = vadd.f32 %v1038, 0.01407047
  %v1041 = vadd.f32 %v1039, 0.01407047
  %v1042 = vmul.f32 %v1040, %v1012
  %v1043 = vmul.f32 %v1041, %v1013
  %v1044 = vadd.f32 %v1042, 0.11098505
  %v1045 = vadd.f32 %v1043, 0.11098505
  %v1046 = vmul.f32 %v1044, %v1012
  %v1047 = vmul.f32 %v1045, %v1013
  %v1048 = vadd.f32 %v1046, 0.49746925
  %v1049 = vadd.f32 %v1047, 0.49746925
  %v1050 = vmul.f32 %v1048, %v1012
  %v1051 = vmul.f32 %v1049, %v1013
  %v1052 = vadd.f32 %v1050, 1.0
  %v1053 = vadd.f32 %v1051, 1.0
  %v1054 = vrcp.pop %v1052
  %v1055 = vrcp.pop %v1053
  %v1056 = vmul.f32 %v1052, %v1054
  %v1057 = vmul.f32 %v1053, %v1055
  %v1058 = vsub.f32 2.0, %v1056
  %v1059 = vsub.f32 2.0, %v1057
  %v1060 = vmul.f32 %v1054, %v1058
  %v1061 = vmul.f32 %v1055, %v1059
  %v1062 = vmul.f32 %v1010, %v1028
  %v1063 = vmul.f32 %v1011, %v1029
  %v1064 = vmul.f32 %v1062, %v1060
  %v1065 = vmul.f32 %v1063, %v1061
  %v1066 = vadd.f32 %v1064, 1.0
  %v1067 = vadd.f32 %v1065, 1.0
  %v1068 = vmul.f32 %v1004, %v1066
  %v1069 = vmul.f32 %v1005, %v1067
  %v1070 = vrot.slane %v1068, 7
  %v1071 = vrot.slane %v1069, 7
  %v1072 = vsel %vm140, %v1070, %v1071
  %v1073 = vsel %vm140, %v1071, %v1070
  %v1074 = vrot.slane %v1068, 1
  %v1075 = vrot.slane %v1069, 1
  %v1076 = vsel %vm145, %v1074, %v1075
  %v1077 = vsel %vm145, %v1075, %v1074
  %v1078 = vmul.f32 %v151, %v1073
  %v1079 = vmul.f32 %v156, %v1072
  %v1080 = vadd.f32 %v1068, %v1078
  %v1081 = vadd.f32 %v1069, %v1079
  %v1082 = vmul.f32 %v165, %v1076
  %v1083 = vmul.f32 %v170, %v1077
  %v1084 = vadd.f32 %v1080, %v1082
  %v1085 = vadd.f32 %v1081, %v1083
  %s1086 = scalar_lea.vmem %s6, 128
  %v1087 = vld [vmem:[%s1086] sm:$0xff]
  %v1088 = vld [vmem:[%s1086 + $0x8] sm:$0xff]
  %v1089 = vld [vmem:[%s1086 + $0x10] sm:$0xff]
  %v1090 = vld [vmem:[%s1086 + $0x18] sm:$0xff]
  %s1091 = scalar_lea.vmem %s7, 4
  %v1092 = vld [vmem:[%s1091] sm:$0x1]
  %v1094 = vlaneseq
  %v1095 = vshrl.u32 %v1094, 7
  %v1096 = vsub.s32 0, %v1095
  %v1097 = vrot.slane %v1092, %v1096
  %v1100 = vsel %vm187, %v1084, 0
  %v1103 = vsel %vm187, %v1085, 0
  %1105 = vmatprep.subr.mxu0 0.0
  %1106 = vmatpush1.msra.mxu0 %v1087
  %1107 = vmatprep.subr.mxu0 0.0
  %1108 = vmatpush1.msra.mxu0 %v1088
  %1109 = vmatprep.subr.mxu0 0.0
  %1110 = vmatpush1.msra.mxu0 %v1089
  %1111 = vmatprep.subr.mxu0 0.0
  %1112 = vmatpush1.msra.mxu0 %v1090
  %1113 = vmatprep.subr.mxu0 0.0
  %1114 = vmatpush1.msra.mxu0 0.0
  %1115 = vmatprep.subr.mxu0 0.0
  %1116 = vmatpush1.msra.mxu0 0.0
  %1117 = vmatprep.subr.mxu0 0.0
  %1118 = vmatpush1.msra.mxu0 0.0
  %1119 = vmatprep.subr.mxu0 0.0
  %1120 = vmatpush1.msra.mxu0 0.0
  %1121 = vmatprep.subr.mxu0 0.0
  %1122 = vmatpush1.msra.mxu0 0.0
  %1123 = vmatprep.subr.mxu0 0.0
  %1124 = vmatpush1.msra.mxu0 0.0
  %1125 = vmatprep.subr.mxu0 0.0
  %1126 = vmatpush1.msra.mxu0 0.0
  %1127 = vmatprep.subr.mxu0 0.0
  %1128 = vmatpush1.msra.mxu0 0.0
  %1129 = vmatprep.subr.mxu0 0.0
  %1130 = vmatpush1.msra.mxu0 0.0
  %1131 = vmatprep.subr.mxu0 0.0
  %1132 = vmatpush1.msra.mxu0 0.0
  %1133 = vmatprep.subr.mxu0 0.0
  %1134 = vmatpush1.msra.mxu0 0.0
  %1135 = vmatprep.subr.mxu0 0.0
  %1136 = vmatpush1.msra.mxu0 0.0
  %1137 = vmatprep.subr.mxu0 0.0
  %1138 = vmatpush1.msra.mxu0 0.0
  %1139 = vmatprep.subr.mxu0 0.0
  %1140 = vmatpush1.msra.mxu0 0.0
  %1141 = vmatprep.subr.mxu0 0.0
  %1142 = vmatpush1.msra.mxu0 0.0
  %1143 = vmatprep.subr.mxu0 0.0
  %1144 = vmatpush1.msra.mxu0 0.0
  %1145 = vmatprep.subr.mxu0 0.0
  %1146 = vmatpush1.msra.mxu0 0.0
  %1147 = vmatprep.subr.mxu0 0.0
  %1148 = vmatpush1.msra.mxu0 0.0
  %1149 = vmatprep.subr.mxu0 0.0
  %1150 = vmatpush1.msra.mxu0 0.0
  %1151 = vmatprep.subr.mxu0 0.0
  %1152 = vmatpush1.msra.mxu0 0.0
  %1153 = vmatprep.subr.mxu0 0.0
  %1154 = vmatpush1.msra.mxu0 0.0
  %1155 = vmatprep.subr.mxu0 0.0
  %1156 = vmatpush1.msra.mxu0 0.0
  %1157 = vmatprep.subr.mxu0 0.0
  %1158 = vmatpush1.msra.mxu0 0.0
  %1159 = vmatprep.subr.mxu0 0.0
  %1160 = vmatpush1.msra.mxu0 0.0
  %1161 = vmatprep.subr.mxu0 0.0
  %1162 = vmatpush1.msra.mxu0 0.0
  %1163 = vmatprep.subr.mxu0 0.0
  %1164 = vmatpush1.msra.mxu0 0.0
  %1165 = vmatprep.subr.mxu0 0.0
  %1166 = vmatpush1.msra.mxu0 0.0
  %1167 = vmatprep.subr.mxu0 0.0
  %1168 = vmatpush1.msra.mxu0 0.0
  %1169 = vmatprep.mubr.f32.mxu0 0.0
  %1170 = vmatmul.mubr.f32.gmra.mrb[0].mxu0 %v1100
  %v1171 = vpop.f32.mrb[0].mxu0
  %v1172 = vadd.f32 %v1097, %v1171
  %v1173 = vpop.f32.mrb[0].mxu0
  %1174 = vmatprep.mubr.f32.mxu0 0.0
  %1175 = vmatmul.mubr.f32.gmra.mrb[0].mxu0 %v1103
  %v1176 = vpop.f32.mrb[0].mxu0
  %v1177 = vadd.f32 %v1097, %v1176
  %v1178 = vpop.f32.mrb[0].mxu0
  %1179 = vdwg.mxu0
  %v1180 = vadd.f32 %v1068, %v1172
  %v1181 = vadd.f32 %v1069, %v1177
  %v1182 = vsel %vm187, %v1180, 0.0
  %1183 = vadd.xlane.f32.xlu0 %v1182
  %v1184 = vpop.xlane.xlu0 %1183
  %v1185 = vsel %vm187, %v1181, 0.0
  %1186 = vadd.xlane.f32.xlu0 %v1185
  %v1187 = vpop.xlane.xlu0 %1186
  %v1188 = vmul.f32 %v1184, %v277
  %v1189 = vmul.f32 %v1187, %v277
  %v1190 = vmul.f32 %v1180, %v1180
  %v1191 = vmul.f32 %v1181, %v1181
  %v1192 = vsel %vm187, %v1190, 0.0
  %1193 = vadd.xlane.f32.xlu0 %v1192
  %v1194 = vpop.xlane.xlu0 %1193
  %v1195 = vsel %vm187, %v1191, 0.0
  %1196 = vadd.xlane.f32.xlu0 %v1195
  %v1197 = vpop.xlane.xlu0 %1196
  %v1198 = vmul.f32 %v1194, %v277
  %v1199 = vmul.f32 %v1197, %v277
  %v1200 = vmul.f32 %v1188, %v1188
  %v1201 = vmul.f32 %v1189, %v1189
  %v1202 = vsub.f32 %v1198, %v1200
  %v1203 = vsub.f32 %v1199, %v1201
  %v1204 = vsub.f32 %v1180, %v1188
  %v1205 = vsub.f32 %v1181, %v1189
  %v1206 = vadd.f32 %v1202, 1e-05
  %v1207 = vadd.f32 %v1203, 1e-05
  %v1208 = vrsqrt.pop %v1206
  %v1209 = vrsqrt.pop %v1207
  %v1210 = vmul.f32 %v1204, %v1208
  %v1211 = vmul.f32 %v1205, %v1209
  %s1212 = scalar_lea.vmem %s8, 4
  %v1213 = vld [vmem:[%s1212] sm:$0x1]
  %v1215 = vlaneseq
  %v1216 = vshrl.u32 %v1215, 7
  %v1217 = vsub.s32 0, %v1216
  %v1218 = vrot.slane %v1213, %v1217
  %v1220 = vmul.f32 %v1210, %v1218
  %v1221 = vmul.f32 %v1211, %v1218
  %s1222 = scalar_lea.vmem %s9, 4
  %v1223 = vld [vmem:[%s1222] sm:$0x1]
  %v1225 = vlaneseq
  %v1226 = vshrl.u32 %v1225, 7
  %v1227 = vsub.s32 0, %v1226
  %v1228 = vrot.slane %v1223, %v1227
  %v1230 = vadd.f32 %v1220, %v1228
  %v1231 = vadd.f32 %v1221, %v1228
  %v1232 = vmul.f32 %v1230, 0.5
  %v1233 = vmul.f32 %v1231, 0.5
  %v1234 = vmul.f32 %v1230, 0.70710677
  %v1235 = vmul.f32 %v1231, 0.70710677
  %v1236 = vmax.f32 %v1234, -4.0
  %v1237 = vmax.f32 %v1235, -4.0
  %v1238 = vmin.f32 %v1236, 4.0
  %v1239 = vmin.f32 %v1237, 4.0
  %v1240 = vmul.f32 %v1238, %v1238
  %v1241 = vmul.f32 %v1239, %v1239
  %v1242 = vmul.f32 %v1240, 0.00022905065
  %v1243 = vmul.f32 %v1241, 0.00022905065
  %v1244 = vadd.f32 %v1242, 0.003408291
  %v1245 = vadd.f32 %v1243, 0.003408291
  %v1246 = vmul.f32 %v1244, %v1240
  %v1247 = vmul.f32 %v1245, %v1241
  %v1248 = vadd.f32 %v1246, 0.050955694
  %v1249 = vadd.f32 %v1247, 0.050955694
  %v1250 = vmul.f32 %v1248, %v1240
  %v1251 = vmul.f32 %v1249, %v1241
  %v1252 = vadd.f32 %v1250, 0.18520832
  %v1253 = vadd.f32 %v1251, 0.18520832
  %v1254 = vmul.f32 %v1252, %v1240
  %v1255 = vmul.f32 %v1253, %v1241
  %v1256 = vadd.f32 %v1254, 1.1283791
  %v1257 = vadd.f32 %v1255, 1.1283791
  %v1258 = vmul.f32 %v1240, -1.1791603e-07
  %v1259 = vmul.f32 %v1241, -1.1791603e-07
  %v1260 = vadd.f32 %v1258, 2.3547966e-05
  %v1261 = vadd.f32 %v1259, 2.3547966e-05
  %v1262 = vmul.f32 %v1260, %v1240
  %v1263 = vmul.f32 %v1261, %v1241
  %v1264 = vadd.f32 %v1262, 0.0010179626
  %v1265 = vadd.f32 %v1263, 0.0010179626
  %v1266 = vmul.f32 %v1264, %v1240
  %v1267 = vmul.f32 %v1265, %v1241
  %v1268 = vadd.f32 %v1266, 0.01407047
  %v1269 = vadd.f32 %v1267, 0.01407047
  %v1270 = vmul.f32 %v1268, %v1240
  %v1271 = vmul.f32 %v1269, %v1241
  %v1272 = vadd.f32 %v1270, 0.11098505
  %v1273 = vadd.f32 %v1271, 0.11098505
  %v1274 = vmul.f32 %v1272, %v1240
  %v1275 = vmul.f32 %v1273, %v1241
  %v1276 = vadd.f32 %v1274, 0.49746925
  %v1277 = vadd.f32 %v1275, 0.49746925
  %v1278 = vmul.f32 %v1276, %v1240
  %v1279 = vmul.f32 %v1277, %v1241
  %v1280 = vadd.f32 %v1278, 1.0
  %v1281 = vadd.f32 %v1279, 1.0
  %v1282 = vrcp.pop %v1280
  %v1283 = vrcp.pop %v1281
  %v1284 = vmul.f32 %v1280, %v1282
  %v1285 = vmul.f32 %v1281, %v1283
  %v1286 = vsub.f32 2.0, %v1284
  %v1287 = vsub.f32 2.0, %v1285
  %v1288 = vmul.f32 %v1282, %v1286
  %v1289 = vmul.f32 %v1283, %v1287
  %v1290 = vmul.f32 %v1238, %v1256
  %v1291 = vmul.f32 %v1239, %v1257
  %v1292 = vmul.f32 %v1290, %v1288
  %v1293 = vmul.f32 %v1291, %v1289
  %v1294 = vadd.f32 %v1292, 1.0
  %v1295 = vadd.f32 %v1293, 1.0
  %v1296 = vmul.f32 %v1232, %v1294
  %v1297 = vmul.f32 %v1233, %v1295
  %v1298 = vrot.slane %v1296, 7
  %v1299 = vrot.slane %v1297, 7
  %v1300 = vsel %vm140, %v1298, %v1299
  %v1301 = vsel %vm140, %v1299, %v1298
  %v1302 = vrot.slane %v1296, 1
  %v1303 = vrot.slane %v1297, 1
  %v1304 = vsel %vm145, %v1302, %v1303
  %v1305 = vsel %vm145, %v1303, %v1302
  %v1306 = vmul.f32 %v151, %v1301
  %v1307 = vmul.f32 %v156, %v1300
  %v1308 = vadd.f32 %v1296, %v1306
  %v1309 = vadd.f32 %v1297, %v1307
  %v1310 = vmul.f32 %v165, %v1304
  %v1311 = vmul.f32 %v170, %v1305
  %v1312 = vadd.f32 %v1308, %v1310
  %v1313 = vadd.f32 %v1309, %v1311
  %s1314 = scalar_lea.vmem %s6, 160
  %v1315 = vld [vmem:[%s1314] sm:$0xff]
  %v1316 = vld [vmem:[%s1314 + $0x8] sm:$0xff]
  %v1317 = vld [vmem:[%s1314 + $0x10] sm:$0xff]
  %v1318 = vld [vmem:[%s1314 + $0x18] sm:$0xff]
  %s1319 = scalar_lea.vmem %s7, 5
  %v1320 = vld [vmem:[%s1319] sm:$0x1]
  %v1322 = vlaneseq
  %v1323 = vshrl.u32 %v1322, 7
  %v1324 = vsub.s32 0, %v1323
  %v1325 = vrot.slane %v1320, %v1324
  %v1328 = vsel %vm187, %v1312, 0
  %v1331 = vsel %vm187, %v1313, 0
  %1333 = vmatprep.subr.mxu0 0.0
  %1334 = vmatpush1.msra.mxu0 %v1315
  %1335 = vmatprep.subr.mxu0 0.0
  %1336 = vmatpush1.msra.mxu0 %v1316
  %1337 = vmatprep.subr.mxu0 0.0
  %1338 = vmatpush1.msra.mxu0 %v1317
  %1339 = vmatprep.subr.mxu0 0.0
  %1340 = vmatpush1.msra.mxu0 %v1318
  %1341 = vmatprep.subr.mxu0 0.0
  %1342 = vmatpush1.msra.mxu0 0.0
  %1343 = vmatprep.subr.mxu0 0.0
  %1344 = vmatpush1.msra.mxu0 0.0
  %1345 = vmatprep.subr.mxu0 0.0
  %1346 = vmatpush1.msra.mxu0 0.0
  %1347 = vmatprep.subr.mxu0 0.0
  %1348 = vmatpush1.msra.mxu0 0.0
  %1349 = vmatprep.subr.mxu0 0.0
  %1350 = vmatpush1.msra.mxu0 0.0
  %1351 = vmatprep.subr.mxu0 0.0
  %1352 = vmatpush1.msra.mxu0 0.0
  %1353 = vmatprep.subr.mxu0 0.0
  %1354 = vmatpush1.msra.mxu0 0.0
  %1355 = vmatprep.subr.mxu0 0.0
  %1356 = vmatpush1.msra.mxu0 0.0
  %1357 = vmatprep.subr.mxu0 0.0
  %1358 = vmatpush1.msra.mxu0 0.0
  %1359 = vmatprep.subr.mxu0 0.0
  %1360 = vmatpush1.msra.mxu0 0.0
  %1361 = vmatprep.subr.mxu0 0.0
  %1362 = vmatpush1.msra.mxu0 0.0
  %1363 = vmatprep.subr.mxu0 0.0
  %1364 = vmatpush1.msra.mxu0 0.0
  %1365 = vmatprep.subr.mxu0 0.0
  %1366 = vmatpush1.msra.mxu0 0.0
  %1367 = vmatprep.subr.mxu0 0.0
  %1368 = vmatpush1.msra.mxu0 0.0
  %1369 = vmatprep.subr.mxu0 0.0
  %1370 = vmatpush1.msra.mxu0 0.0
  %1371 = vmatprep.subr.mxu0 0.0
  %1372 = vmatpush1.msra.mxu0 0.0
  %1373 = vmatprep.subr.mxu0 0.0
  %1374 = vmatpush1.msra.mxu0 0.0
  %1375 = vmatprep.subr.mxu0 0.0
  %1376 = vmatpush1.msra.mxu0 0.0
  %1377 = vmatprep.subr.mxu0 0.0
  %1378 = vmatpush1.msra.mxu0 0.0
  %1379 = vmatprep.subr.mxu0 0.0
  %1380 = vmatpush1.msra.mxu0 0.0
  %1381 = vmatprep.subr.mxu0 0.0
  %1382 = vmatpush1.msra.mxu0 0.0
  %1383 = vmatprep.subr.mxu0 0.0
  %1384 = vmatpush1.msra.mxu0 0.0
  %1385 = vmatprep.subr.mxu0 0.0
  %1386 = vmatpush1.msra.mxu0 0.0
  %1387 = vmatprep.subr.mxu0 0.0
  %1388 = vmatpush1.msra.mxu0 0.0
  %1389 = vmatprep.subr.mxu0 0.0
  %1390 = vmatpush1.msra.mxu0 0.0
  %1391 = vmatprep.subr.mxu0 0.0
  %1392 = vmatpush1.msra.mxu0 0.0
  %1393 = vmatprep.subr.mxu0 0.0
  %1394 = vmatpush1.msra.mxu0 0.0
  %1395 = vmatprep.subr.mxu0 0.0
  %1396 = vmatpush1.msra.mxu0 0.0
  %1397 = vmatprep.mubr.f32.mxu0 0.0
  %1398 = vmatmul.mubr.f32.gmra.mrb[0].mxu0 %v1328
  %v1399 = vpop.f32.mrb[0].mxu0
  %v1400 = vadd.f32 %v1325, %v1399
  %v1401 = vpop.f32.mrb[0].mxu0
  %1402 = vmatprep.mubr.f32.mxu0 0.0
  %1403 = vmatmul.mubr.f32.gmra.mrb[0].mxu0 %v1331
  %v1404 = vpop.f32.mrb[0].mxu0
  %v1405 = vadd.f32 %v1325, %v1404
  %v1406 = vpop.f32.mrb[0].mxu0
  %1407 = vdwg.mxu0
  %v1408 = vadd.f32 %v1296, %v1400
  %v1409 = vadd.f32 %v1297, %v1405
  %v1410 = vsel %vm187, %v1408, 0.0
  %1411 = vadd.xlane.f32.xlu0 %v1410
  %v1412 = vpop.xlane.xlu0 %1411
  %v1413 = vsel %vm187, %v1409, 0.0
  %1414 = vadd.xlane.f32.xlu0 %v1413
  %v1415 = vpop.xlane.xlu0 %1414
  %v1416 = vmul.f32 %v1412, %v277
  %v1417 = vmul.f32 %v1415, %v277
  %v1418 = vmul.f32 %v1408, %v1408
  %v1419 = vmul.f32 %v1409, %v1409
  %v1420 = vsel %vm187, %v1418, 0.0
  %1421 = vadd.xlane.f32.xlu0 %v1420
  %v1422 = vpop.xlane.xlu0 %1421
  %v1423 = vsel %vm187, %v1419, 0.0
  %1424 = vadd.xlane.f32.xlu0 %v1423
  %v1425 = vpop.xlane.xlu0 %1424
  %v1426 = vmul.f32 %v1422, %v277
  %v1427 = vmul.f32 %v1425, %v277
  %v1428 = vmul.f32 %v1416, %v1416
  %v1429 = vmul.f32 %v1417, %v1417
  %v1430 = vsub.f32 %v1426, %v1428
  %v1431 = vsub.f32 %v1427, %v1429
  %v1432 = vsub.f32 %v1408, %v1416
  %v1433 = vsub.f32 %v1409, %v1417
  %v1434 = vadd.f32 %v1430, 1e-05
  %v1435 = vadd.f32 %v1431, 1e-05
  %v1436 = vrsqrt.pop %v1434
  %v1437 = vrsqrt.pop %v1435
  %v1438 = vmul.f32 %v1432, %v1436
  %v1439 = vmul.f32 %v1433, %v1437
  %s1440 = scalar_lea.vmem %s8, 5
  %v1441 = vld [vmem:[%s1440] sm:$0x1]
  %v1443 = vlaneseq
  %v1444 = vshrl.u32 %v1443, 7
  %v1445 = vsub.s32 0, %v1444
  %v1446 = vrot.slane %v1441, %v1445
  %v1448 = vmul.f32 %v1438, %v1446
  %v1449 = vmul.f32 %v1439, %v1446
  %s1450 = scalar_lea.vmem %s9, 5
  %v1451 = vld [vmem:[%s1450] sm:$0x1]
  %v1453 = vlaneseq
  %v1454 = vshrl.u32 %v1453, 7
  %v1455 = vsub.s32 0, %v1454
  %v1456 = vrot.slane %v1451, %v1455
  %v1458 = vadd.f32 %v1448, %v1456
  %v1459 = vadd.f32 %v1449, %v1456
  %v1460 = vmul.f32 %v1458, 0.5
  %v1461 = vmul.f32 %v1459, 0.5
  %v1462 = vmul.f32 %v1458, 0.70710677
  %v1463 = vmul.f32 %v1459, 0.70710677
  %v1464 = vmax.f32 %v1462, -4.0
  %v1465 = vmax.f32 %v1463, -4.0
  %v1466 = vmin.f32 %v1464, 4.0
  %v1467 = vmin.f32 %v1465, 4.0
  %v1468 = vmul.f32 %v1466, %v1466
  %v1469 = vmul.f32 %v1467, %v1467
  %v1470 = vmul.f32 %v1468, 0.00022905065
  %v1471 = vmul.f32 %v1469, 0.00022905065
  %v1472 = vadd.f32 %v1470, 0.003408291
  %v1473 = vadd.f32 %v1471, 0.003408291
  %v1474 = vmul.f32 %v1472, %v1468
  %v1475 = vmul.f32 %v1473, %v1469
  %v1476 = vadd.f32 %v1474, 0.050955694
  %v1477 = vadd.f32 %v1475, 0.050955694
  %v1478 = vmul.f32 %v1476, %v1468
  %v1479 = vmul.f32 %v1477, %v1469
  %v1480 = vadd.f32 %v1478, 0.18520832
  %v1481 = vadd.f32 %v1479, 0.18520832
  %v1482 = vmul.f32 %v1480, %v1468
  %v1483 = vmul.f32 %v1481, %v1469
  %v1484 = vadd.f32 %v1482, 1.1283791
  %v1485 = vadd.f32 %v1483, 1.1283791
  %v1486 = vmul.f32 %v1468, -1.1791603e-07
  %v1487 = vmul.f32 %v1469, -1.1791603e-07
  %v1488 = vadd.f32 %v1486, 2.3547966e-05
  %v1489 = vadd.f32 %v1487, 2.3547966e-05
  %v1490 = vmul.f32 %v1488, %v1468
  %v1491 = vmul.f32 %v1489, %v1469
  %v1492 = vadd.f32 %v1490, 0.0010179626
  %v1493 = vadd.f32 %v1491, 0.0010179626
  %v1494 = vmul.f32 %v1492, %v1468
  %v1495 = vmul.f32 %v1493, %v1469
  %v1496 = vadd.f32 %v1494, 0.01407047
  %v1497 = vadd.f32 %v1495, 0.01407047
  %v1498 = vmul.f32 %v1496, %v1468
  %v1499 = vmul.f32 %v1497, %v1469
  %v1500 = vadd.f32 %v1498, 0.11098505
  %v1501 = vadd.f32 %v1499, 0.11098505
  %v1502 = vmul.f32 %v1500, %v1468
  %v1503 = vmul.f32 %v1501, %v1469
  %v1504 = vadd.f32 %v1502, 0.49746925
  %v1505 = vadd.f32 %v1503, 0.49746925
  %v1506 = vmul.f32 %v1504, %v1468
  %v1507 = vmul.f32 %v1505, %v1469
  %v1508 = vadd.f32 %v1506, 1.0
  %v1509 = vadd.f32 %v1507, 1.0
  %v1510 = vrcp.pop %v1508
  %v1511 = vrcp.pop %v1509
  %v1512 = vmul.f32 %v1508, %v1510
  %v1513 = vmul.f32 %v1509, %v1511
  %v1514 = vsub.f32 2.0, %v1512
  %v1515 = vsub.f32 2.0, %v1513
  %v1516 = vmul.f32 %v1510, %v1514
  %v1517 = vmul.f32 %v1511, %v1515
  %v1518 = vmul.f32 %v1466, %v1484
  %v1519 = vmul.f32 %v1467, %v1485
  %v1520 = vmul.f32 %v1518, %v1516
  %v1521 = vmul.f32 %v1519, %v1517
  %v1522 = vadd.f32 %v1520, 1.0
  %v1523 = vadd.f32 %v1521, 1.0
  %v1524 = vmul.f32 %v1460, %v1522
  %v1525 = vmul.f32 %v1461, %v1523
  %v1526 = vrot.slane %v1524, 7
  %v1527 = vrot.slane %v1525, 7
  %v1528 = vsel %vm140, %v1526, %v1527
  %v1529 = vsel %vm140, %v1527, %v1526
  %v1530 = vrot.slane %v1524, 1
  %v1531 = vrot.slane %v1525, 1
  %v1532 = vsel %vm145, %v1530, %v1531
  %v1533 = vsel %vm145, %v1531, %v1530
  %v1534 = vmul.f32 %v151, %v1529
  %v1535 = vmul.f32 %v156, %v1528
  %v1536 = vadd.f32 %v1524, %v1534
  %v1537 = vadd.f32 %v1525, %v1535
  %v1538 = vmul.f32 %v165, %v1532
  %v1539 = vmul.f32 %v170, %v1533
  %v1540 = vadd.f32 %v1536, %v1538
  %v1541 = vadd.f32 %v1537, %v1539
  %s1542 = scalar_lea.vmem %s6, 192
  %v1543 = vld [vmem:[%s1542] sm:$0xff]
  %v1544 = vld [vmem:[%s1542 + $0x8] sm:$0xff]
  %v1545 = vld [vmem:[%s1542 + $0x10] sm:$0xff]
  %v1546 = vld [vmem:[%s1542 + $0x18] sm:$0xff]
  %s1547 = scalar_lea.vmem %s7, 6
  %v1548 = vld [vmem:[%s1547] sm:$0x1]
  %v1550 = vlaneseq
  %v1551 = vshrl.u32 %v1550, 7
  %v1552 = vsub.s32 0, %v1551
  %v1553 = vrot.slane %v1548, %v1552
  %v1556 = vsel %vm187, %v1540, 0
  %v1559 = vsel %vm187, %v1541, 0
  %1561 = vmatprep.subr.mxu0 0.0
  %1562 = vmatpush1.msra.mxu0 %v1543
  %1563 = vmatprep.subr.mxu0 0.0
  %1564 = vmatpush1.msra.mxu0 %v1544
  %1565 = vmatprep.subr.mxu0 0.0
  %1566 = vmatpush1.msra.mxu0 %v1545
  %1567 = vmatprep.subr.mxu0 0.0
  %1568 = vmatpush1.msra.mxu0 %v1546
  %1569 = vmatprep.subr.mxu0 0.0
  %1570 = vmatpush1.msra.mxu0 0.0
  %1571 = vmatprep.subr.mxu0 0.0
  %1572 = vmatpush1.msra.mxu0 0.0
  %1573 = vmatprep.subr.mxu0 0.0
  %1574 = vmatpush1.msra.mxu0 0.0
  %1575 = vmatprep.subr.mxu0 0.0
  %1576 = vmatpush1.msra.mxu0 0.0
  %1577 = vmatprep.subr.mxu0 0.0
  %1578 = vmatpush1.msra.mxu0 0.0
  %1579 = vmatprep.subr.mxu0 0.0
  %1580 = vmatpush1.msra.mxu0 0.0
  %1581 = vmatprep.subr.mxu0 0.0
  %1582 = vmatpush1.msra.mxu0 0.0
  %1583 = vmatprep.subr.mxu0 0.0
  %1584 = vmatpush1.msra.mxu0 0.0
  %1585 = vmatprep.subr.mxu0 0.0
  %1586 = vmatpush1.msra.mxu0 0.0
  %1587 = vmatprep.subr.mxu0 0.0
  %1588 = vmatpush1.msra.mxu0 0.0
  %1589 = vmatprep.subr.mxu0 0.0
  %1590 = vmatpush1.msra.mxu0 0.0
  %1591 = vmatprep.subr.mxu0 0.0
  %1592 = vmatpush1.msra.mxu0 0.0
  %1593 = vmatprep.subr.mxu0 0.0
  %1594 = vmatpush1.msra.mxu0 0.0
  %1595 = vmatprep.subr.mxu0 0.0
  %1596 = vmatpush1.msra.mxu0 0.0
  %1597 = vmatprep.subr.mxu0 0.0
  %1598 = vmatpush1.msra.mxu0 0.0
  %1599 = vmatprep.subr.mxu0 0.0
  %1600 = vmatpush1.msra.mxu0 0.0
  %1601 = vmatprep.subr.mxu0 0.0
  %1602 = vmatpush1.msra.mxu0 0.0
  %1603 = vmatprep.subr.mxu0 0.0
  %1604 = vmatpush1.msra.mxu0 0.0
  %1605 = vmatprep.subr.mxu0 0.0
  %1606 = vmatpush1.msra.mxu0 0.0
  %1607 = vmatprep.subr.mxu0 0.0
  %1608 = vmatpush1.msra.mxu0 0.0
  %1609 = vmatprep.subr.mxu0 0.0
  %1610 = vmatpush1.msra.mxu0 0.0
  %1611 = vmatprep.subr.mxu0 0.0
  %1612 = vmatpush1.msra.mxu0 0.0
  %1613 = vmatprep.subr.mxu0 0.0
  %1614 = vmatpush1.msra.mxu0 0.0
  %1615 = vmatprep.subr.mxu0 0.0
  %1616 = vmatpush1.msra.mxu0 0.0
  %1617 = vmatprep.subr.mxu0 0.0
  %1618 = vmatpush1.msra.mxu0 0.0
  %1619 = vmatprep.subr.mxu0 0.0
  %1620 = vmatpush1.msra.mxu0 0.0
  %1621 = vmatprep.subr.mxu0 0.0
  %1622 = vmatpush1.msra.mxu0 0.0
  %1623 = vmatprep.subr.mxu0 0.0
  %1624 = vmatpush1.msra.mxu0 0.0
  %1625 = vmatprep.mubr.f32.mxu0 0.0
  %1626 = vmatmul.mubr.f32.gmra.mrb[0].mxu0 %v1556
  %v1627 = vpop.f32.mrb[0].mxu0
  %v1628 = vadd.f32 %v1553, %v1627
  %v1629 = vpop.f32.mrb[0].mxu0
  %1630 = vmatprep.mubr.f32.mxu0 0.0
  %1631 = vmatmul.mubr.f32.gmra.mrb[0].mxu0 %v1559
  %v1632 = vpop.f32.mrb[0].mxu0
  %v1633 = vadd.f32 %v1553, %v1632
  %v1634 = vpop.f32.mrb[0].mxu0
  %1635 = vdwg.mxu0
  %v1636 = vadd.f32 %v1524, %v1628
  %v1637 = vadd.f32 %v1525, %v1633
  %v1638 = vsel %vm187, %v1636, 0.0
  %1639 = vadd.xlane.f32.xlu0 %v1638
  %v1640 = vpop.xlane.xlu0 %1639
  %v1641 = vsel %vm187, %v1637, 0.0
  %1642 = vadd.xlane.f32.xlu0 %v1641
  %v1643 = vpop.xlane.xlu0 %1642
  %v1644 = vmul.f32 %v1640, %v277
  %v1645 = vmul.f32 %v1643, %v277
  %v1646 = vmul.f32 %v1636, %v1636
  %v1647 = vmul.f32 %v1637, %v1637
  %v1648 = vsel %vm187, %v1646, 0.0
  %1649 = vadd.xlane.f32.xlu0 %v1648
  %v1650 = vpop.xlane.xlu0 %1649
  %v1651 = vsel %vm187, %v1647, 0.0
  %1652 = vadd.xlane.f32.xlu0 %v1651
  %v1653 = vpop.xlane.xlu0 %1652
  %v1654 = vmul.f32 %v1650, %v277
  %v1655 = vmul.f32 %v1653, %v277
  %v1656 = vmul.f32 %v1644, %v1644
  %v1657 = vmul.f32 %v1645, %v1645
  %v1658 = vsub.f32 %v1654, %v1656
  %v1659 = vsub.f32 %v1655, %v1657
  %v1660 = vsub.f32 %v1636, %v1644
  %v1661 = vsub.f32 %v1637, %v1645
  %v1662 = vadd.f32 %v1658, 1e-05
  %v1663 = vadd.f32 %v1659, 1e-05
  %v1664 = vrsqrt.pop %v1662
  %v1665 = vrsqrt.pop %v1663
  %v1666 = vmul.f32 %v1660, %v1664
  %v1667 = vmul.f32 %v1661, %v1665
  %s1668 = scalar_lea.vmem %s8, 6
  %v1669 = vld [vmem:[%s1668] sm:$0x1]
  %v1671 = vlaneseq
  %v1672 = vshrl.u32 %v1671, 7
  %v1673 = vsub.s32 0, %v1672
  %v1674 = vrot.slane %v1669, %v1673
  %v1676 = vmul.f32 %v1666, %v1674
  %v1677 = vmul.f32 %v1667, %v1674
  %s1678 = scalar_lea.vmem %s9, 6
  %v1679 = vld [vmem:[%s1678] sm:$0x1]
  %v1681 = vlaneseq
  %v1682 = vshrl.u32 %v1681, 7
  %v1683 = vsub.s32 0, %v1682
  %v1684 = vrot.slane %v1679, %v1683
  %v1686 = vadd.f32 %v1676, %v1684
  %v1687 = vadd.f32 %v1677, %v1684
  %v1688 = vmul.f32 %v1686, 0.5
  %v1689 = vmul.f32 %v1687, 0.5
  %v1690 = vmul.f32 %v1686, 0.70710677
  %v1691 = vmul.f32 %v1687, 0.70710677
  %v1692 = vmax.f32 %v1690, -4.0
  %v1693 = vmax.f32 %v1691, -4.0
  %v1694 = vmin.f32 %v1692, 4.0
  %v1695 = vmin.f32 %v1693, 4.0
  %v1696 = vmul.f32 %v1694, %v1694
  %v1697 = vmul.f32 %v1695, %v1695
  %v1698 = vmul.f32 %v1696, 0.00022905065
  %v1699 = vmul.f32 %v1697, 0.00022905065
  %v1700 = vadd.f32 %v1698, 0.003408291
  %v1701 = vadd.f32 %v1699, 0.003408291
  %v1702 = vmul.f32 %v1700, %v1696
  %v1703 = vmul.f32 %v1701, %v1697
  %v1704 = vadd.f32 %v1702, 0.050955694
  %v1705 = vadd.f32 %v1703, 0.050955694
  %v1706 = vmul.f32 %v1704, %v1696
  %v1707 = vmul.f32 %v1705, %v1697
  %v1708 = vadd.f32 %v1706, 0.18520832
  %v1709 = vadd.f32 %v1707, 0.18520832
  %v1710 = vmul.f32 %v1708, %v1696
  %v1711 = vmul.f32 %v1709, %v1697
  %v1712 = vadd.f32 %v1710, 1.1283791
  %v1713 = vadd.f32 %v1711, 1.1283791
  %v1714 = vmul.f32 %v1696, -1.1791603e-07
  %v1715 = vmul.f32 %v1697, -1.1791603e-07
  %v1716 = vadd.f32 %v1714, 2.3547966e-05
  %v1717 = vadd.f32 %v1715, 2.3547966e-05
  %v1718 = vmul.f32 %v1716, %v1696
  %v1719 = vmul.f32 %v1717, %v1697
  %v1720 = vadd.f32 %v1718, 0.0010179626
  %v1721 = vadd.f32 %v1719, 0.0010179626
  %v1722 = vmul.f32 %v1720, %v1696
  %v1723 = vmul.f32 %v1721, %v1697
  %v1724 = vadd.f32 %v1722, 0.01407047
  %v1725 = vadd.f32 %v1723, 0.01407047
  %v1726 = vmul.f32 %v1724, %v1696
  %v1727 = vmul.f32 %v1725, %v1697
  %v1728 = vadd.f32 %v1726, 0.11098505
  %v1729 = vadd.f32 %v1727, 0.11098505
  %v1730 = vmul.f32 %v1728, %v1696
  %v1731 = vmul.f32 %v1729, %v1697
  %v1732 = vadd.f32 %v1730, 0.49746925
  %v1733 = vadd.f32 %v1731, 0.49746925
  %v1734 = vmul.f32 %v1732, %v1696
  %v1735 = vmul.f32 %v1733, %v1697
  %v1736 = vadd.f32 %v1734, 1.0
  %v1737 = vadd.f32 %v1735, 1.0
  %v1738 = vrcp.pop %v1736
  %v1739 = vrcp.pop %v1737
  %v1740 = vmul.f32 %v1736, %v1738
  %v1741 = vmul.f32 %v1737, %v1739
  %v1742 = vsub.f32 2.0, %v1740
  %v1743 = vsub.f32 2.0, %v1741
  %v1744 = vmul.f32 %v1738, %v1742
  %v1745 = vmul.f32 %v1739, %v1743
  %v1746 = vmul.f32 %v1694, %v1712
  %v1747 = vmul.f32 %v1695, %v1713
  %v1748 = vmul.f32 %v1746, %v1744
  %v1749 = vmul.f32 %v1747, %v1745
  %v1750 = vadd.f32 %v1748, 1.0
  %v1751 = vadd.f32 %v1749, 1.0
  %v1752 = vmul.f32 %v1688, %v1750
  %v1753 = vmul.f32 %v1689, %v1751
  %v1754 = vrot.slane %v1752, 7
  %v1755 = vrot.slane %v1753, 7
  %v1756 = vsel %vm140, %v1754, %v1755
  %v1757 = vsel %vm140, %v1755, %v1754
  %v1758 = vrot.slane %v1752, 1
  %v1759 = vrot.slane %v1753, 1
  %v1760 = vsel %vm145, %v1758, %v1759
  %v1761 = vsel %vm145, %v1759, %v1758
  %v1762 = vmul.f32 %v151, %v1757
  %v1763 = vmul.f32 %v156, %v1756
  %v1764 = vadd.f32 %v1752, %v1762
  %v1765 = vadd.f32 %v1753, %v1763
  %v1766 = vmul.f32 %v165, %v1760
  %v1767 = vmul.f32 %v170, %v1761
  %v1768 = vadd.f32 %v1764, %v1766
  %v1769 = vadd.f32 %v1765, %v1767
  %s1770 = scalar_lea.vmem %s6, 224
  %v1771 = vld [vmem:[%s1770] sm:$0xff]
  %v1772 = vld [vmem:[%s1770 + $0x8] sm:$0xff]
  %v1773 = vld [vmem:[%s1770 + $0x10] sm:$0xff]
  %v1774 = vld [vmem:[%s1770 + $0x18] sm:$0xff]
  %s1775 = scalar_lea.vmem %s7, 7
  %v1776 = vld [vmem:[%s1775] sm:$0x1]
  %v1778 = vlaneseq
  %v1779 = vshrl.u32 %v1778, 7
  %v1780 = vsub.s32 0, %v1779
  %v1781 = vrot.slane %v1776, %v1780
  %v1784 = vsel %vm187, %v1768, 0
  %v1787 = vsel %vm187, %v1769, 0
  %1789 = vmatprep.subr.mxu0 0.0
  %1790 = vmatpush1.msra.mxu0 %v1771
  %1791 = vmatprep.subr.mxu0 0.0
  %1792 = vmatpush1.msra.mxu0 %v1772
  %1793 = vmatprep.subr.mxu0 0.0
  %1794 = vmatpush1.msra.mxu0 %v1773
  %1795 = vmatprep.subr.mxu0 0.0
  %1796 = vmatpush1.msra.mxu0 %v1774
  %1797 = vmatprep.subr.mxu0 0.0
  %1798 = vmatpush1.msra.mxu0 0.0
  %1799 = vmatprep.subr.mxu0 0.0
  %1800 = vmatpush1.msra.mxu0 0.0
  %1801 = vmatprep.subr.mxu0 0.0
  %1802 = vmatpush1.msra.mxu0 0.0
  %1803 = vmatprep.subr.mxu0 0.0
  %1804 = vmatpush1.msra.mxu0 0.0
  %1805 = vmatprep.subr.mxu0 0.0
  %1806 = vmatpush1.msra.mxu0 0.0
  %1807 = vmatprep.subr.mxu0 0.0
  %1808 = vmatpush1.msra.mxu0 0.0
  %1809 = vmatprep.subr.mxu0 0.0
  %1810 = vmatpush1.msra.mxu0 0.0
  %1811 = vmatprep.subr.mxu0 0.0
  %1812 = vmatpush1.msra.mxu0 0.0
  %1813 = vmatprep.subr.mxu0 0.0
  %1814 = vmatpush1.msra.mxu0 0.0
  %1815 = vmatprep.subr.mxu0 0.0
  %1816 = vmatpush1.msra.mxu0 0.0
  %1817 = vmatprep.subr.mxu0 0.0
  %1818 = vmatpush1.msra.mxu0 0.0
  %1819 = vmatprep.subr.mxu0 0.0
  %1820 = vmatpush1.msra.mxu0 0.0
  %1821 = vmatprep.subr.mxu0 0.0
  %1822 = vmatpush1.msra.mxu0 0.0
  %1823 = vmatprep.subr.mxu0 0.0
  %1824 = vmatpush1.msra.mxu0 0.0
  %1825 = vmatprep.subr.mxu0 0.0
  %1826 = vmatpush1.msra.mxu0 0.0
  %1827 = vmatprep.subr.mxu0 0.0
  %1828 = vmatpush1.msra.mxu0 0.0
  %1829 = vmatprep.subr.mxu0 0.0
  %1830 = vmatpush1.msra.mxu0 0.0
  %1831 = vmatprep.subr.mxu0 0.0
  %1832 = vmatpush1.msra.mxu0 0.0
  %1833 = vmatprep.subr.mxu0 0.0
  %1834 = vmatpush1.msra.mxu0 0.0
  %1835 = vmatprep.subr.mxu0 0.0
  %1836 = vmatpush1.msra.mxu0 0.0
  %1837 = vmatprep.subr.mxu0 0.0
  %1838 = vmatpush1.msra.mxu0 0.0
  %1839 = vmatprep.subr.mxu0 0.0
  %1840 = vmatpush1.msra.mxu0 0.0
  %1841 = vmatprep.subr.mxu0 0.0
  %1842 = vmatpush1.msra.mxu0 0.0
  %1843 = vmatprep.subr.mxu0 0.0
  %1844 = vmatpush1.msra.mxu0 0.0
  %1845 = vmatprep.subr.mxu0 0.0
  %1846 = vmatpush1.msra.mxu0 0.0
  %1847 = vmatprep.subr.mxu0 0.0
  %1848 = vmatpush1.msra.mxu0 0.0
  %1849 = vmatprep.subr.mxu0 0.0
  %1850 = vmatpush1.msra.mxu0 0.0
  %1851 = vmatprep.subr.mxu0 0.0
  %1852 = vmatpush1.msra.mxu0 0.0
  %1853 = vmatprep.mubr.f32.mxu0 0.0
  %1854 = vmatmul.mubr.f32.gmra.mrb[0].mxu0 %v1784
  %v1855 = vpop.f32.mrb[0].mxu0
  %v1856 = vadd.f32 %v1781, %v1855
  %v1857 = vpop.f32.mrb[0].mxu0
  %1858 = vmatprep.mubr.f32.mxu0 0.0
  %1859 = vmatmul.mubr.f32.gmra.mrb[0].mxu0 %v1787
  %v1860 = vpop.f32.mrb[0].mxu0
  %v1861 = vadd.f32 %v1781, %v1860
  %v1862 = vpop.f32.mrb[0].mxu0
  %1863 = vdwg.mxu0
  %v1864 = vadd.f32 %v1752, %v1856
  %v1865 = vadd.f32 %v1753, %v1861
  %v1866 = vsel %vm187, %v1864, 0.0
  %1867 = vadd.xlane.f32.xlu0 %v1866
  %v1868 = vpop.xlane.xlu0 %1867
  %v1869 = vsel %vm187, %v1865, 0.0
  %1870 = vadd.xlane.f32.xlu0 %v1869
  %v1871 = vpop.xlane.xlu0 %1870
  %v1872 = vmul.f32 %v1868, %v277
  %v1873 = vmul.f32 %v1871, %v277
  %v1874 = vmul.f32 %v1864, %v1864
  %v1875 = vmul.f32 %v1865, %v1865
  %v1876 = vsel %vm187, %v1874, 0.0
  %1877 = vadd.xlane.f32.xlu0 %v1876
  %v1878 = vpop.xlane.xlu0 %1877
  %v1879 = vsel %vm187, %v1875, 0.0
  %1880 = vadd.xlane.f32.xlu0 %v1879
  %v1881 = vpop.xlane.xlu0 %1880
  %v1882 = vmul.f32 %v1878, %v277
  %v1883 = vmul.f32 %v1881, %v277
  %v1884 = vmul.f32 %v1872, %v1872
  %v1885 = vmul.f32 %v1873, %v1873
  %v1886 = vsub.f32 %v1882, %v1884
  %v1887 = vsub.f32 %v1883, %v1885
  %v1888 = vsub.f32 %v1864, %v1872
  %v1889 = vsub.f32 %v1865, %v1873
  %v1890 = vadd.f32 %v1886, 1e-05
  %v1891 = vadd.f32 %v1887, 1e-05
  %v1892 = vrsqrt.pop %v1890
  %v1893 = vrsqrt.pop %v1891
  %v1894 = vmul.f32 %v1888, %v1892
  %v1895 = vmul.f32 %v1889, %v1893
  %s1896 = scalar_lea.vmem %s8, 7
  %v1897 = vld [vmem:[%s1896] sm:$0x1]
  %v1899 = vlaneseq
  %v1900 = vshrl.u32 %v1899, 7
  %v1901 = vsub.s32 0, %v1900
  %v1902 = vrot.slane %v1897, %v1901
  %v1904 = vmul.f32 %v1894, %v1902
  %v1905 = vmul.f32 %v1895, %v1902
  %s1906 = scalar_lea.vmem %s9, 7
  %v1907 = vld [vmem:[%s1906] sm:$0x1]
  %v1909 = vlaneseq
  %v1910 = vshrl.u32 %v1909, 7
  %v1911 = vsub.s32 0, %v1910
  %v1912 = vrot.slane %v1907, %v1911
  %v1914 = vadd.f32 %v1904, %v1912
  %v1915 = vadd.f32 %v1905, %v1912
  %v1916 = vmul.f32 %v1914, 0.5
  %v1917 = vmul.f32 %v1915, 0.5
  %v1918 = vmul.f32 %v1914, 0.70710677
  %v1919 = vmul.f32 %v1915, 0.70710677
  %v1920 = vmax.f32 %v1918, -4.0
  %v1921 = vmax.f32 %v1919, -4.0
  %v1922 = vmin.f32 %v1920, 4.0
  %v1923 = vmin.f32 %v1921, 4.0
  %v1924 = vmul.f32 %v1922, %v1922
  %v1925 = vmul.f32 %v1923, %v1923
  %v1926 = vmul.f32 %v1924, 0.00022905065
  %v1927 = vmul.f32 %v1925, 0.00022905065
  %v1928 = vadd.f32 %v1926, 0.003408291
  %v1929 = vadd.f32 %v1927, 0.003408291
  %v1930 = vmul.f32 %v1928, %v1924
  %v1931 = vmul.f32 %v1929, %v1925
  %v1932 = vadd.f32 %v1930, 0.050955694
  %v1933 = vadd.f32 %v1931, 0.050955694
  %v1934 = vmul.f32 %v1932, %v1924
  %v1935 = vmul.f32 %v1933, %v1925
  %v1936 = vadd.f32 %v1934, 0.18520832
  %v1937 = vadd.f32 %v1935, 0.18520832
  %v1938 = vmul.f32 %v1936, %v1924
  %v1939 = vmul.f32 %v1937, %v1925
  %v1940 = vadd.f32 %v1938, 1.1283791
  %v1941 = vadd.f32 %v1939, 1.1283791
  %v1942 = vmul.f32 %v1924, -1.1791603e-07
  %v1943 = vmul.f32 %v1925, -1.1791603e-07
  %v1944 = vadd.f32 %v1942, 2.3547966e-05
  %v1945 = vadd.f32 %v1943, 2.3547966e-05
  %v1946 = vmul.f32 %v1944, %v1924
  %v1947 = vmul.f32 %v1945, %v1925
  %v1948 = vadd.f32 %v1946, 0.0010179626
  %v1949 = vadd.f32 %v1947, 0.0010179626
  %v1950 = vmul.f32 %v1948, %v1924
  %v1951 = vmul.f32 %v1949, %v1925
  %v1952 = vadd.f32 %v1950, 0.01407047
  %v1953 = vadd.f32 %v1951, 0.01407047
  %v1954 = vmul.f32 %v1952, %v1924
  %v1955 = vmul.f32 %v1953, %v1925
  %v1956 = vadd.f32 %v1954, 0.11098505
  %v1957 = vadd.f32 %v1955, 0.11098505
  %v1958 = vmul.f32 %v1956, %v1924
  %v1959 = vmul.f32 %v1957, %v1925
  %v1960 = vadd.f32 %v1958, 0.49746925
  %v1961 = vadd.f32 %v1959, 0.49746925
  %v1962 = vmul.f32 %v1960, %v1924
  %v1963 = vmul.f32 %v1961, %v1925
  %v1964 = vadd.f32 %v1962, 1.0
  %v1965 = vadd.f32 %v1963, 1.0
  %v1966 = vrcp.pop %v1964
  %v1967 = vrcp.pop %v1965
  %v1968 = vmul.f32 %v1964, %v1966
  %v1969 = vmul.f32 %v1965, %v1967
  %v1970 = vsub.f32 2.0, %v1968
  %v1971 = vsub.f32 2.0, %v1969
  %v1972 = vmul.f32 %v1966, %v1970
  %v1973 = vmul.f32 %v1967, %v1971
  %v1974 = vmul.f32 %v1922, %v1940
  %v1975 = vmul.f32 %v1923, %v1941
  %v1976 = vmul.f32 %v1974, %v1972
  %v1977 = vmul.f32 %v1975, %v1973
  %v1978 = vadd.f32 %v1976, 1.0
  %v1979 = vadd.f32 %v1977, 1.0
  %v1980 = vmul.f32 %v1916, %v1978
  %v1981 = vmul.f32 %v1917, %v1979
  %1982 = vst.msk [vmem:[%s10] sm:$0xff] %vm187, %v1980
  %1983 = vst.msk [vmem:[%s10 + $0x8] sm:$0xff] %vm187, %v1981
  // Predicated region
  $region42: #{coordinate_gcn_forward.1} parent=0 // pred_check
    _
  $region43: #{coordinate_gcn_forward.1} parent=0 // pred_check_branch
    %1985 = sbr.rel (0) target = $region45
  $region44: #{coordinate_gcn_forward.1} parent=0 // pred_region
    _
  $region45: #{coordinate_gcn_forward.1} parent=0 // pred_fallthru
    _
  // Predicated region
  $region46: #{coordinate_gcn_forward.1} parent=0 // pred_check
    _
  $region47: #{coordinate_gcn_forward.1} parent=0 // pred_check_branch
    %1987 = sbr.rel (0) target = $region49
  $region48: #{coordinate_gcn_forward.1} parent=0 // pred_region
    _
  $region49: #{coordinate_gcn_forward.1} parent=0 // pred_fallthru
    _

</llo_original>
